<compile_context>
chip_gen: v7x
topology: tpu7x:2x2x1
jax: 0.10.0
libtpu: 0.0.40
codegen_flags: <defaults>
</compile_context>

<pallas_src>
import functools

import jax
import jax.numpy as jnp
from jax.experimental import pallas as pl
from jax.experimental.pallas import tpu as pltpu

FEATURE_DIM_NODE = 3
HIDDEN_CHANNELS = 12
FC_HIDDEN_DIM = 128
NUM_GAT_LAYERS = 4          # total GAT layers = 1 + (NUM_GAT_LAYERS - 2) + 1
NUM_HEADS = 4
HEAD_DIM = HIDDEN_CHANNELS // NUM_HEADS
NUM_LOCATIONS = 15

# ---- packed-parameter slab layouts (rows) ----------------------------------
GAT_Q_OFF = 16              # gat_slab per layer: 0:12 W, 12:16 pad, then Qsrc, Qdst
CW2_ROW = 16                # cw_slab: 0:12 cw1, 12:16 pad, 16:144 cw2, 144 cw3^T
CW3_ROW = CW2_ROW + FC_HIDDEN_DIM
CW_ROWS = 152
FB_GATB_ROW = 0             # fb_slab (f32 [16,128]): rows 0:L GAT biases (cols 0:12)
FB_CB1_ROW = 4
FB_CB2_ROW = 5
FB_CB3_ROW = 6
FB_EW0_ROW = 8              # rows 8:12  type_embedding @ W0[:3]   (cols 0:12)
FB_WREQ_ROW = 12            # row 12     W0[3]  (requests column of layer-0 weight)
FB_WSTEP_ROW = 13           # row 13     W0[4]  (update_step column)
FB_ROWS = 16

_VMEM = pl.BlockSpec(memory_space=pltpu.MemorySpace.VMEM)


# ----------------------------------------------------------------------------
# Fused Pallas kernel: feature assembly + adjacency + 4 GAT layers + critic MLP
# ----------------------------------------------------------------------------
def _fused_forward_kernel(type_ref, req_ref, step_ref, edge_ref,
                          gat_ref, cw_ref, fb_ref, out_ref,
                          *, num_layers, heads, head_dim, num_locations):
    f32, bf16 = jnp.float32, jnp.bfloat16
    n = type_ref.shape[0]
    e_cnt = edge_ref.shape[1]
    hc = heads * head_dim
    hn = heads * n
    cnt = n - num_locations

    # ---------------- node features (fused glue) ----------------------------
    type_ids = type_ref[...]                                           # [n,1] i32
    toh = (jax.lax.broadcasted_iota(jnp.int32, (n, 4), 1) == type_ids).astype(f32)

    req = req_ref[...]                                                  # [n,1] f32
    row = jax.lax.broadcasted_iota(jnp.int32, (n, 1), 0)
    is_tail = row >= num_locations
    tail = jnp.where(is_tail, req, 0.0)
    mean = jnp.sum(tail, axis=0, keepdims=True) * (1.0 / cnt)           # [1,1]
    dev = jnp.where(is_tail, req - mean, 0.0)
    std = jnp.sqrt(jnp.sum(dev * dev, axis=0, keepdims=True) * (1.0 / (cnt - 1)))
    req_final = jnp.where(is_tail, (req - mean) / (std + 1e-6), req)    # [n,1]
    step = step_ref[...]                                                # [n,1]

    # layer-0 projection computed directly from raw features (x never materialized):
    # xp0 = one_hot(type) @ (E @ W0[:3]) + req_final * W0[3] + step * W0[4]
    ew0 = fb_ref[FB_EW0_ROW:FB_EW0_ROW + 4, 0:hc]                       # [4,hc] f32
    w_req = fb_ref[FB_WREQ_ROW:FB_WREQ_ROW + 1, 0:hc]                   # [1,hc]
    w_step = fb_ref[FB_WSTEP_ROW:FB_WSTEP_ROW + 1, 0:hc]
    xp = (jnp.dot(toh, ew0, preferred_element_type=f32)
          + req_final * w_req + step * w_step)                          # [n,hc] f32

    # ---------------- adjacency from edge_index (no XLA scatter) ------------
    esrc = edge_ref[0:1, :]                                             # [1,e] i32
    edst = edge_ref[1:2, :]
    nid = jax.lax.broadcasted_iota(jnp.int32, (n, e_cnt), 0)
    dst_oh = (nid == edst).astype(bf16)                                 # [n,e]
    src_oh = (nid == esrc).astype(bf16)                                 # [n,e]
    adj = jax.lax.dot_general(dst_oh, src_oh, (((1,), (1,)), ((), ())),
                              preferred_element_type=f32)               # [n,n] counts
    rr = jax.lax.broadcasted_iota(jnp.int32, (n, n), 0)
    cc = jax.lax.broadcasted_iota(jnp.int32, (n, n), 1)
    eye = (rr == cc).astype(f32)
    adj = jnp.maximum(jnp.minimum(adj, 1.0), eye)                       # + self loops
    edge_bias = (adj - 1.0) * 1e9                                       # 0 / -1e9

    # loop-invariant, hoisted once (heads stacked along sublanes)
    edge_bias_stack = jnp.concatenate([edge_bias] * heads, axis=0)      # [hn,n]
    eye_stack = jnp.concatenate([eye] * heads, axis=0)                  # [hn,n]
    col = jax.lax.broadcasted_iota(jnp.int32, (1, hc), 1)
    head_masks = [(col >= h * head_dim) & (col < (h + 1) * head_dim)
                  for h in range(heads)]

    # ---------------- GAT layers (heads batched: [H*n, n] tiles) ------------
    x = None
    for l in range(num_layers):                                         # static unroll
        if l > 0:
            w_l = gat_ref[l, 0:hc, :]                                   # [hc,hc] bf16
            xp = jnp.dot(x.astype(bf16), w_l, preferred_element_type=f32)
        xp_b = xp.astype(bf16)
        qsrc = gat_ref[l, GAT_Q_OFF:GAT_Q_OFF + hn, :]                  # [hn,hc] bf16
        qdst = gat_ref[l, GAT_Q_OFF + hn:GAT_Q_OFF + 2 * hn, :]
        # msrc[h*n+i, j] = a_src[j, h];  mdst[h*n+i, j] = a_dst[j, h]
        msrc = jax.lax.dot_general(qsrc, xp_b, (((1,), (1,)), ((), ())),
                                   preferred_element_type=f32)          # [hn,n]
        mdst = jax.lax.dot_general(qdst, xp_b, (((1,), (1,)), ((), ())),
                                   preferred_element_type=f32)          # [hn,n]
        a_dst_col = jnp.sum(mdst * eye_stack, axis=1, keepdims=True)    # a_dst[i,h]
        logits = a_dst_col + msrc                                       # [hn,n]
        logits = jnp.maximum(logits, 0.2 * logits)                      # LeakyReLU(0.2)
        logits = logits + edge_bias_stack                               # mask non-edges
        logits = logits - jnp.max(logits, axis=1, keepdims=True)        # softmax (src j)
        p = jnp.exp(logits)
        denom = jnp.sum(p, axis=1, keepdims=True)                       # >= 1 (self loop)
        alpha = p * pl.reciprocal(denom, approx=True)                   # EUP reciprocal
        ph = jnp.dot(alpha.astype(bf16), xp_b, preferred_element_type=f32)  # [hn,hc]
        # fold the H row-blocks, keeping each head's own output columns
        acc = jnp.zeros((n, hc), f32)
        for h in range(heads):
            acc = acc + jnp.where(head_masks[h], ph[h * n:(h + 1) * n, :], 0.0)
        x = acc + fb_ref[FB_GATB_ROW + l:FB_GATB_ROW + l + 1, 0:hc]     # + bias
        if l < num_layers - 1:
            x = jnp.maximum(x, 0.0)                                     # ReLU (not last)

    # ---------------- critic MLP + global mean pool -------------------------
    cw1 = cw_ref[0:hc, :]                                               # [hc,128] bf16
    cw2 = cw_ref[CW2_ROW:CW2_ROW + FC_HIDDEN_DIM, :]                    # [128,128] bf16
    cw3 = cw_ref[CW3_ROW:CW3_ROW + 1, :]                                # [1,128]  bf16
    cb1 = fb_ref[FB_CB1_ROW:FB_CB1_ROW + 1, :]                          # [1,128] f32
    cb2 = fb_ref[FB_CB2_ROW:FB_CB2_ROW + 1, :]
    cb3 = fb_ref[FB_CB3_ROW:FB_CB3_ROW + 1, 0:1]                        # [1,1]
    h1 = jnp.maximum(jnp.dot(x.astype(bf16), cw1, preferred_element_type=f32) + cb1, 0.0)
    h2 = jnp.maximum(jnp.dot(h1.astype(bf16), cw2, preferred_element_type=f32) + cb2, 0.0)
    v = jnp.maximum(jnp.sum(h2 * cw3.astype(f32), axis=1, keepdims=True) + cb3, 0.0)
    out_ref[...] = jnp.sum(v, axis=0, keepdims=True) * (1.0 / n)        # [1,1]


# ----------------------------------------------------------------------------
# One-time parameter preprocessing (hoisted out of the per-forward path)
# ----------------------------------------------------------------------------
def prepare_params(params, num_nodes):
    hc, H, n = HIDDEN_CHANNELS, NUM_HEADS, num_nodes
    layers = [params["att0"]] + list(params["hidden_atts"]) + [params["final_att"]]
    num_layers = len(layers)
    assert num_layers <= 4, "fb_slab layout assumes at most 4 GAT layers"

    def q_mat(att):  # [H, C] -> [H*n, hc]; row h*n+i holds att[h] in cols h*C:(h+1)*C
        blk = jnp.einsum("hc,hk->hkc", att, jnp.eye(H, dtype=jnp.float32)).reshape(H, hc)
        return jnp.repeat(blk, n, axis=0)

    slabs, gbias = [], []
    for lp in layers:
        w = lp["w"]
        if w.shape[0] < hc:                               # layer 0: zero-pad 5 -> 12 rows
            w = jnp.pad(w, ((0, hc - w.shape[0]), (0, 0)))
        slabs.append(jnp.concatenate(
            [w, jnp.zeros((GAT_Q_OFF - hc, hc), jnp.float32),
             q_mat(lp["att_src"]), q_mat(lp["att_dst"])], axis=0))
        gbias.append(lp["bias"])
    gat_slab = jnp.stack(slabs).astype(jnp.bfloat16)      # [L, 16 + 2*H*n, hc]

    c = params["critic"]
    cw_slab = jnp.concatenate(
        [c["w1"],
         jnp.zeros((CW2_ROW - hc, FC_HIDDEN_DIM), jnp.float32),
         c["w2"],
         c["w3"].T,
         jnp.zeros((CW_ROWS - CW3_ROW - 1, FC_HIDDEN_DIM), jnp.float32)],
        axis=0).astype(jnp.bfloat16)                      # [152, 128]

    w0 = params["att0"]["w"]                              # [5, hc]
    ew0 = params["type_embedding"].astype(jnp.float32) @ w0[:FEATURE_DIM_NODE]
    fb = jnp.zeros((FB_ROWS, FC_HIDDEN_DIM), jnp.float32)
    fb = fb.at[FB_GATB_ROW:FB_GATB_ROW + num_layers, :hc].set(jnp.stack(gbias))
    fb = fb.at[FB_CB1_ROW, :].set(c["b1"])
    fb = fb.at[FB_CB2_ROW, :].set(c["b2"])
    fb = fb.at[FB_CB3_ROW, 0].set(c["b3"][0])
    fb = fb.at[FB_EW0_ROW:FB_EW0_ROW + 4, :hc].set(ew0)
    fb = fb.at[FB_WREQ_ROW, :hc].set(w0[FEATURE_DIM_NODE])
    fb = fb.at[FB_WSTEP_ROW, :hc].set(w0[FEATURE_DIM_NODE + 1])

    return {"gat_slab": gat_slab, "cw_slab": cw_slab, "fb_slab": fb}


# ----------------------------------------------------------------------------
# Forward wrapper (single graph, batch=None)
# ----------------------------------------------------------------------------
def critic_swap_gnn_forward(prepared, type_ids, update_step, requests, edge_index,
                            *, num_locations=NUM_LOCATIONS):
    gat_slab = prepared["gat_slab"]
    num_layers = gat_slab.shape[0]
    n = type_ids.shape[0]
    assert gat_slab.shape[1] == GAT_Q_OFF + 2 * NUM_HEADS * n, \
        "prepared params were built for a different num_nodes"

    type_col = type_ids.astype(jnp.int32).reshape(n, 1)
    req_col = requests.astype(jnp.float32).reshape(n, 1)
    step_col = update_step.astype(jnp.float32).reshape(n, 1)
    edges = edge_index.astype(jnp.int32)

    kernel = functools.partial(
        _fused_forward_kernel, num_layers=num_layers, heads=NUM_HEADS,
        head_dim=HEAD_DIM, num_locations=num_locations)

    # TODO(synk): per-graph pooling with a non-None `batch` vector is not implemented.
    # TODO(synk): for rollout/training throughput, add a leading batch-of-graphs grid
    # axis with dimension_semantics=("parallel",) (mandatory to use both v7x TCs).
    return pl.pallas_call(
        kernel,
        out_shape=jax.ShapeDtypeStruct((1, 1), jnp.float32),
        in_specs=[_VMEM] * 7,
        out_specs=_VMEM,
    )(type_col, req_col, step_col, edges,
      gat_slab, prepared["cw_slab"], prepared["fb_slab"])


# ----------------------------------------------------------------------------
# Pure-JAX reference (same collapsed-duplicate-edge convention) for sanity check
# ----------------------------------------------------------------------------
def _reference_forward(params, type_ids, update_step, requests, edge_index,
                       num_locations=NUM_LOCATIONS):
    x = params["type_embedding"][type_ids]
    tail = requests[num_locations:]
    tail_n = (tail - jnp.mean(tail)) / (jnp.std(tail, ddof=1) + 1e-6)
    req_final = jnp.concatenate([requests[:num_locations], tail_n])
    x = jnp.concatenate([x, req_final[:, None], update_step[:, None]], axis=-1)
    n = x.shape[0]
    adj = jnp.zeros((n, n), jnp.float32).at[edge_index[1], edge_index[0]].set(1.0)
    adj = jnp.maximum(adj, jnp.eye(n, dtype=jnp.float32))
    layers = [params["att0"]] + list(params["hidden_atts"]) + [params["final_att"]]
    H, C = NUM_HEADS, HEAD_DIM
    for li, lp in enumerate(layers):
        xph = (x @ lp["w"]).reshape(n, H, C)
        a_src = jnp.einsum("nhc,hc->nh", xph, lp["att_src"])
        a_dst = jnp.einsum("nhc,hc->nh", xph, lp["att_dst"])
        logits = a_dst[:, None, :] + a_src[None, :, :]
        logits = jnp.where(logits > 0, logits, 0.2 * logits)
        logits = jnp.where(adj[:, :, None] > 0, logits, -1e9)
        alpha = jax.nn.softmax(logits, axis=1)
        x = jnp.einsum("ijh,jhc->ihc", alpha, xph).reshape(n, H * C) + lp["bias"]
        if li < len(layers) - 1:
            x = jax.nn.relu(x)
    c = params["critic"]
    h1 = jax.nn.relu(x @ c["w1"] + c["b1"])
    h2 = jax.nn.relu(h1 @ c["w2"] + c["b2"])
    v = jax.nn.relu(h2 @ c["w3"] + c["b3"])
    return jnp.mean(v, axis=0, keepdims=True)


# ----------------------------------------------------------------------------
# Deterministic parameter init (shapes from CriticSwapGNN.__init__ defaults)
# ----------------------------------------------------------------------------
def init_params(key):
    ks = iter(jax.random.split(key, 64))

    def nrm(shape, scale=0.1):
        return (scale * jax.random.normal(next(ks), shape)).astype(jnp.float32)

    def gat(in_dim):
        return {"w": nrm((in_dim, HIDDEN_CHANNELS)),
                "att_src": nrm((NUM_HEADS, HEAD_DIM)),
                "att_dst": nrm((NUM_HEADS, HEAD_DIM)),
                "bias": nrm((HIDDEN_CHANNELS,))}

    return {
        "type_embedding": nrm((4, FEATURE_DIM_NODE), 1.0),
        "att0": gat(FEATURE_DIM_NODE + 2),
        "hidden_atts": [gat(HIDDEN_CHANNELS) for _ in range(NUM_GAT_LAYERS - 2)],
        "final_att": gat(HIDDEN_CHANNELS),
        "critic": {
            "w1": nrm((HIDDEN_CHANNELS, FC_HIDDEN_DIM)), "b1": nrm((FC_HIDDEN_DIM,)),
            "w2": nrm((FC_HIDDEN_DIM, FC_HIDDEN_DIM)), "b2": nrm((FC_HIDDEN_DIM,)),
            "w3": nrm((FC_HIDDEN_DIM, 1)), "b3": nrm((1,)),
        },
    }


if __name__ == "__main__":
    key = jax.random.PRNGKey(0)
    k_param, k_type, k_step, k_req, k_src, k_dst = jax.random.split(key, 6)

    N = 24            # num_locations=15 locations + 9 extra nodes
    E = 48            # synthetic edges

    params = init_params(k_param)
    prepared = prepare_params(params, num_nodes=N)     # one-time preprocessing

    type_ids = jax.random.randint(k_type, (N,), 0, 4)
    update_step = jax.random.uniform(k_step, (N,), jnp.float32)
    requests = jax.random.normal(k_req, (N,), jnp.float32)
    edge_index = jnp.stack([
        jax.random.randint(k_src, (E,), 0, N),          # sources
        jax.random.randint(k_dst, (E,), 0, N),          # targets
    ])

    fwd = jax.jit(functools.partial(critic_swap_gnn_forward,
                                    num_locations=NUM_LOCATIONS))
    graph_value = jax.block_until_ready(
        fwd(prepared, type_ids, update_step, requests, edge_index))

    assert graph_value.shape == (1, 1) and graph_value.dtype == jnp.float32
    assert bool(jnp.isfinite(graph_value).all())

    ref = _reference_forward(params, type_ids, update_step, requests, edge_index)
    assert bool(jnp.allclose(graph_value, ref, rtol=5e-2, atol=5e-2)), (graph_value, ref)
    print("KERNEL_OK")
</pallas_src>

<mosaic_0001>
module attributes {stable_mosaic.version = 11 : i64} {
  func.func @_fused_forward_kernel(%arg0: memref<24x1xi32, #tpu.memory_space<vmem>>, %arg1: memref<24x1xf32, #tpu.memory_space<vmem>>, %arg2: memref<24x1xf32, #tpu.memory_space<vmem>>, %arg3: memref<2x48xi32, #tpu.memory_space<vmem>>, %arg4: memref<4x208x12xbf16, #tpu.memory_space<vmem>>, %arg5: memref<152x128xbf16, #tpu.memory_space<vmem>>, %arg6: memref<16x128xf32, #tpu.memory_space<vmem>>, %arg7: memref<1x1xf32, #tpu.memory_space<vmem>>) attributes {dimension_semantics = [], scalar_prefetch = 0 : i64, scratch_operands = 0 : i64, tpu.core_type = #tpu.core_type<tc>} {
    %c0 = arith.constant 0 : index
    %c0_0 = arith.constant 0 : index
    %0 = vector.load %arg0[%c0, %c0_0] : memref<24x1xi32, #tpu.memory_space<vmem>>, vector<24x1xi32>
    %1 = tpu.iota {dimensions = array<i32: 1>} : vector<24x4xi32>
    %2 = vector.broadcast %0 : vector<24x1xi32> to vector<24x4xi32>
    %3 = arith.cmpi eq, %1, %2 : vector<24x4xi32>
    %4 = arith.extui %3 : vector<24x4xi1> to vector<24x4xi32>
    %5 = arith.sitofp %4 : vector<24x4xi32> to vector<24x4xf32>
    %c0_1 = arith.constant 0 : index
    %c0_2 = arith.constant 0 : index
    %6 = vector.load %arg1[%c0_1, %c0_2] : memref<24x1xf32, #tpu.memory_space<vmem>>, vector<24x1xf32>
    %7 = tpu.iota {dimensions = array<i32: 0>} : vector<24x1xi32>
    %c15_i32 = arith.constant 15 : i32
    %8 = vector.broadcast %c15_i32 : i32 to vector<24x1xi32>
    %9 = arith.cmpi sge, %7, %8 : vector<24x1xi32>
    %cst = arith.constant 0.000000e+00 : f32
    %10 = vector.broadcast %cst : f32 to vector<24x1xf32>
    %11 = arith.select %9, %6, %10 : vector<24x1xi1>, vector<24x1xf32>
    %cst_3 = arith.constant dense<0.000000e+00> : vector<1xf32>
    %12 = vector.multi_reduction <add>, %11, %cst_3 [0] : vector<24x1xf32> to vector<1xf32>
    %13 = vector.shape_cast %12 : vector<1xf32> to vector<1x1xf32>
    %cst_4 = arith.constant 0.111111112 : f32
    %14 = vector.broadcast %cst_4 : f32 to vector<1x1xf32>
    %15 = arith.mulf %13, %14 : vector<1x1xf32>
    %16 = vector.broadcast %15 : vector<1x1xf32> to vector<24x1xf32>
    %17 = arith.subf %6, %16 : vector<24x1xf32>
    %cst_5 = arith.constant 0.000000e+00 : f32
    %18 = vector.broadcast %cst_5 : f32 to vector<24x1xf32>
    %19 = arith.select %9, %17, %18 : vector<24x1xi1>, vector<24x1xf32>
    %20 = arith.mulf %19, %19 : vector<24x1xf32>
    %cst_6 = arith.constant dense<0.000000e+00> : vector<1xf32>
    %21 = vector.multi_reduction <add>, %20, %cst_6 [0] : vector<24x1xf32> to vector<1xf32>
    %22 = vector.shape_cast %21 : vector<1xf32> to vector<1x1xf32>
    %cst_7 = arith.constant 1.250000e-01 : f32
    %23 = vector.broadcast %cst_7 : f32 to vector<1x1xf32>
    %24 = arith.mulf %22, %23 : vector<1x1xf32>
    %25 = math.sqrt %24 : vector<1x1xf32>
    %26 = vector.broadcast %15 : vector<1x1xf32> to vector<24x1xf32>
    %27 = arith.subf %6, %26 : vector<24x1xf32>
    %cst_8 = arith.constant 9.99999997E-7 : f32
    %28 = vector.broadcast %cst_8 : f32 to vector<1x1xf32>
    %29 = arith.addf %25, %28 : vector<1x1xf32>
    %30 = vector.broadcast %29 : vector<1x1xf32> to vector<24x1xf32>
    %31 = arith.divf %27, %30 : vector<24x1xf32>
    %32 = arith.select %9, %31, %6 : vector<24x1xi1>, vector<24x1xf32>
    %c0_9 = arith.constant 0 : index
    %c0_10 = arith.constant 0 : index
    %33 = vector.load %arg2[%c0_9, %c0_10] : memref<24x1xf32, #tpu.memory_space<vmem>>, vector<24x1xf32>
    %c8 = arith.constant 8 : index
    %c0_11 = arith.constant 0 : index
    %34 = vector.load %arg6[%c8, %c0_11] : memref<16x128xf32, #tpu.memory_space<vmem>>, vector<4x12xf32>
    %c12 = arith.constant 12 : index
    %c0_12 = arith.constant 0 : index
    %35 = vector.load %arg6[%c12, %c0_12] : memref<16x128xf32, #tpu.memory_space<vmem>>, vector<1x12xf32>
    %c13 = arith.constant 13 : index
    %c0_13 = arith.constant 0 : index
    %36 = vector.load %arg6[%c13, %c0_13] : memref<16x128xf32, #tpu.memory_space<vmem>>, vector<1x12xf32>
    %cst_14 = arith.constant dense<0.000000e+00> : vector<24x12xf32>
    %37 = tpu.matmul %5, %34, %cst_14 {dimension_numbers = #tpu.dot_dimension_numbers<[1], [0], [0], [1], [0, 0, 1, 1], [], []>} : vector<24x4xf32>, vector<4x12xf32>, vector<24x12xf32> -> vector<24x12xf32>
    %38 = vector.broadcast %32 : vector<24x1xf32> to vector<24x12xf32>
    %39 = vector.broadcast %35 : vector<1x12xf32> to vector<24x12xf32>
    %40 = arith.mulf %38, %39 : vector<24x12xf32>
    %41 = arith.addf %37, %40 : vector<24x12xf32>
    %42 = vector.broadcast %33 : vector<24x1xf32> to vector<24x12xf32>
    %43 = vector.broadcast %36 : vector<1x12xf32> to vector<24x12xf32>
    %44 = arith.mulf %42, %43 : vector<24x12xf32>
    %45 = arith.addf %41, %44 : vector<24x12xf32>
    %c0_15 = arith.constant 0 : index
    %c0_16 = arith.constant 0 : index
    %46 = vector.load %arg3[%c0_15, %c0_16] : memref<2x48xi32, #tpu.memory_space<vmem>>, vector<1x48xi32>
    %c1 = arith.constant 1 : index
    %c0_17 = arith.constant 0 : index
    %47 = vector.load %arg3[%c1, %c0_17] : memref<2x48xi32, #tpu.memory_space<vmem>>, vector<1x48xi32>
    %48 = tpu.iota {dimensions = array<i32: 0>} : vector<24x48xi32>
    %49 = vector.broadcast %47 : vector<1x48xi32> to vector<24x48xi32>
    %50 = arith.cmpi eq, %48, %49 : vector<24x48xi32>
    %51 = arith.extui %50 : vector<24x48xi1> to vector<24x48xi32>
    %52 = arith.sitofp %51 : vector<24x48xi32> to vector<24x48xf32>
    %53 = arith.truncf %52 : vector<24x48xf32> to vector<24x48xbf16>
    %54 = vector.broadcast %46 : vector<1x48xi32> to vector<24x48xi32>
    %55 = arith.cmpi eq, %48, %54 : vector<24x48xi32>
    %56 = arith.extui %55 : vector<24x48xi1> to vector<24x48xi32>
    %57 = arith.sitofp %56 : vector<24x48xi32> to vector<24x48xf32>
    %58 = arith.truncf %57 : vector<24x48xf32> to vector<24x48xbf16>
    %cst_18 = arith.constant dense<0.000000e+00> : vector<24x24xf32>
    %59 = tpu.matmul %53, %58, %cst_18 {dimension_numbers = #tpu.dot_dimension_numbers<[1], [1], [0], [0], [0, 0, 1, 0], [], []>} : vector<24x48xbf16>, vector<24x48xbf16>, vector<24x24xf32> -> vector<24x24xf32>
    %60 = tpu.iota {dimensions = array<i32: 0>} : vector<24x24xi32>
    %61 = tpu.iota {dimensions = array<i32: 1>} : vector<24x24xi32>
    %62 = arith.cmpi eq, %60, %61 : vector<24x24xi32>
    %63 = arith.extui %62 : vector<24x24xi1> to vector<24x24xi32>
    %64 = arith.sitofp %63 : vector<24x24xi32> to vector<24x24xf32>
    %cst_19 = arith.constant 1.000000e+00 : f32
    %65 = vector.broadcast %cst_19 : f32 to vector<24x24xf32>
    %66 = arith.minimumf %59, %65 : vector<24x24xf32>
    %67 = arith.maximumf %66, %64 : vector<24x24xf32>
    %cst_20 = arith.constant 1.000000e+00 : f32
    %68 = vector.broadcast %cst_20 : f32 to vector<24x24xf32>
    %69 = arith.subf %67, %68 : vector<24x24xf32>
    %cst_21 = arith.constant 1.000000e+09 : f32
    %70 = vector.broadcast %cst_21 : f32 to vector<24x24xf32>
    %71 = arith.mulf %69, %70 : vector<24x24xf32>
    %72 = tpu.concatenate %71, %71, %71, %71 in 0 : vector<24x24xf32>, vector<24x24xf32>, vector<24x24xf32>, vector<24x24xf32> -> vector<96x24xf32>
    %73 = tpu.concatenate %64, %64, %64, %64 in 0 : vector<24x24xf32>, vector<24x24xf32>, vector<24x24xf32>, vector<24x24xf32> -> vector<96x24xf32>
    %74 = tpu.iota {dimensions = array<i32: 1>} : vector<1x12xi32>
    %c0_i32 = arith.constant 0 : i32
    %75 = vector.broadcast %c0_i32 : i32 to vector<1x12xi32>
    %76 = arith.cmpi sge, %74, %75 : vector<1x12xi32>
    %c3_i32 = arith.constant 3 : i32
    %77 = vector.broadcast %c3_i32 : i32 to vector<1x12xi32>
    %78 = arith.cmpi slt, %74, %77 : vector<1x12xi32>
    %79 = arith.andi %76, %78 : vector<1x12xi1>
    %c3_i32_22 = arith.constant 3 : i32
    %80 = vector.broadcast %c3_i32_22 : i32 to vector<1x12xi32>
    %81 = arith.cmpi sge, %74, %80 : vector<1x12xi32>
    %c6_i32 = arith.constant 6 : i32
    %82 = vector.broadcast %c6_i32 : i32 to vector<1x12xi32>
    %83 = arith.cmpi slt, %74, %82 : vector<1x12xi32>
    %84 = arith.andi %81, %83 : vector<1x12xi1>
    %c6_i32_23 = arith.constant 6 : i32
    %85 = vector.broadcast %c6_i32_23 : i32 to vector<1x12xi32>
    %86 = arith.cmpi sge, %74, %85 : vector<1x12xi32>
    %c9_i32 = arith.constant 9 : i32
    %87 = vector.broadcast %c9_i32 : i32 to vector<1x12xi32>
    %88 = arith.cmpi slt, %74, %87 : vector<1x12xi32>
    %89 = arith.andi %86, %88 : vector<1x12xi1>
    %c9_i32_24 = arith.constant 9 : i32
    %90 = vector.broadcast %c9_i32_24 : i32 to vector<1x12xi32>
    %91 = arith.cmpi sge, %74, %90 : vector<1x12xi32>
    %c12_i32 = arith.constant 12 : i32
    %92 = vector.broadcast %c12_i32 : i32 to vector<1x12xi32>
    %93 = arith.cmpi slt, %74, %92 : vector<1x12xi32>
    %94 = arith.andi %91, %93 : vector<1x12xi1>
    %95 = arith.truncf %45 : vector<24x12xf32> to vector<24x12xbf16>
    %c0_25 = arith.constant 0 : index
    %c16 = arith.constant 16 : index
    %c0_26 = arith.constant 0 : index
    %96 = vector.load %arg4[%c0_25, %c16, %c0_26] : memref<4x208x12xbf16, #tpu.memory_space<vmem>>, vector<1x96x12xbf16>
    %97 = vector.shape_cast %96 : vector<1x96x12xbf16> to vector<96x12xbf16>
    %c0_27 = arith.constant 0 : index
    %c112 = arith.constant 112 : index
    %c0_28 = arith.constant 0 : index
    %98 = vector.load %arg4[%c0_27, %c112, %c0_28] : memref<4x208x12xbf16, #tpu.memory_space<vmem>>, vector<1x96x12xbf16>
    %99 = vector.shape_cast %98 : vector<1x96x12xbf16> to vector<96x12xbf16>
    %cst_29 = arith.constant dense<0.000000e+00> : vector<96x24xf32>
    %100 = tpu.matmul %97, %95, %cst_29 {dimension_numbers = #tpu.dot_dimension_numbers<[1], [1], [0], [0], [0, 0, 1, 0], [], []>} : vector<96x12xbf16>, vector<24x12xbf16>, vector<96x24xf32> -> vector<96x24xf32>
    %cst_30 = arith.constant dense<0.000000e+00> : vector<96x24xf32>
    %101 = tpu.matmul %99, %95, %cst_30 {dimension_numbers = #tpu.dot_dimension_numbers<[1], [1], [0], [0], [0, 0, 1, 0], [], []>} : vector<96x12xbf16>, vector<24x12xbf16>, vector<96x24xf32> -> vector<96x24xf32>
    %102 = arith.mulf %101, %73 : vector<96x24xf32>
    %cst_31 = arith.constant dense<0.000000e+00> : vector<96xf32>
    %103 = vector.multi_reduction <add>, %102, %cst_31 [1] : vector<96x24xf32> to vector<96xf32>
    %104 = vector.shape_cast %103 : vector<96xf32> to vector<96x1xf32>
    %105 = vector.broadcast %104 : vector<96x1xf32> to vector<96x24xf32>
    %106 = arith.addf %105, %100 : vector<96x24xf32>
    %cst_32 = arith.constant 2.000000e-01 : f32
    %107 = vector.broadcast %cst_32 : f32 to vector<96x24xf32>
    %108 = arith.mulf %107, %106 : vector<96x24xf32>
    %109 = arith.maximumf %106, %108 : vector<96x24xf32>
    %110 = arith.addf %109, %72 : vector<96x24xf32>
    %cst_33 = arith.constant dense<0xFF800000> : vector<96xf32>
    %111 = vector.multi_reduction <maximumf>, %110, %cst_33 [1] : vector<96x24xf32> to vector<96xf32>
    %112 = vector.shape_cast %111 : vector<96xf32> to vector<96x1xf32>
    %113 = vector.broadcast %112 : vector<96x1xf32> to vector<96x24xf32>
    %114 = arith.subf %110, %113 : vector<96x24xf32>
    %115 = math.exp %114 : vector<96x24xf32>
    %cst_34 = arith.constant dense<0.000000e+00> : vector<96xf32>
    %116 = vector.multi_reduction <add>, %115, %cst_34 [1] : vector<96x24xf32> to vector<96xf32>
    %117 = vector.shape_cast %116 : vector<96xf32> to vector<96x1xf32>
    %118 = tpu.reciprocal %117 {approx = true} : vector<96x1xf32> -> vector<96x1xf32>
    %119 = vector.broadcast %118 : vector<96x1xf32> to vector<96x24xf32>
    %120 = arith.mulf %115, %119 : vector<96x24xf32>
    %121 = arith.truncf %120 : vector<96x24xf32> to vector<96x24xbf16>
    %cst_35 = arith.constant dense<0.000000e+00> : vector<96x12xf32>
    %122 = tpu.matmul %121, %95, %cst_35 {dimension_numbers = #tpu.dot_dimension_numbers<[1], [0], [0], [1], [0, 0, 1, 1], [], []>} : vector<96x24xbf16>, vector<24x12xbf16>, vector<96x12xf32> -> vector<96x12xf32>
    %cst_36 = arith.constant 0.000000e+00 : f32
    %123 = vector.broadcast %cst_36 : f32 to vector<24x12xf32>
    %124 = vector.extract_strided_slice %122 {offsets = [0, 0], sizes = [24, 12], strides = [1, 1]} : vector<96x12xf32> to vector<24x12xf32>
    %cst_37 = arith.constant 0.000000e+00 : f32
    %125 = vector.shape_cast %79 : vector<1x12xi1> to vector<1x12xi1>
    %126 = vector.broadcast %125 : vector<1x12xi1> to vector<24x12xi1>
    %127 = vector.broadcast %cst_37 : f32 to vector<24x12xf32>
    %128 = arith.select %126, %124, %127 : vector<24x12xi1>, vector<24x12xf32>
    %129 = arith.addf %123, %128 : vector<24x12xf32>
    %130 = vector.extract_strided_slice %122 {offsets = [24, 0], sizes = [24, 12], strides = [1, 1]} : vector<96x12xf32> to vector<24x12xf32>
    %cst_38 = arith.constant 0.000000e+00 : f32
    %131 = vector.shape_cast %84 : vector<1x12xi1> to vector<1x12xi1>
    %132 = vector.broadcast %131 : vector<1x12xi1> to vector<24x12xi1>
    %133 = vector.broadcast %cst_38 : f32 to vector<24x12xf32>
    %134 = arith.select %132, %130, %133 : vector<24x12xi1>, vector<24x12xf32>
    %135 = arith.addf %129, %134 : vector<24x12xf32>
    %136 = vector.extract_strided_slice %122 {offsets = [48, 0], sizes = [24, 12], strides = [1, 1]} : vector<96x12xf32> to vector<24x12xf32>
    %cst_39 = arith.constant 0.000000e+00 : f32
    %137 = vector.shape_cast %89 : vector<1x12xi1> to vector<1x12xi1>
    %138 = vector.broadcast %137 : vector<1x12xi1> to vector<24x12xi1>
    %139 = vector.broadcast %cst_39 : f32 to vector<24x12xf32>
    %140 = arith.select %138, %136, %139 : vector<24x12xi1>, vector<24x12xf32>
    %141 = arith.addf %135, %140 : vector<24x12xf32>
    %142 = vector.extract_strided_slice %122 {offsets = [72, 0], sizes = [24, 12], strides = [1, 1]} : vector<96x12xf32> to vector<24x12xf32>
    %cst_40 = arith.constant 0.000000e+00 : f32
    %143 = vector.shape_cast %94 : vector<1x12xi1> to vector<1x12xi1>
    %144 = vector.broadcast %143 : vector<1x12xi1> to vector<24x12xi1>
    %145 = vector.broadcast %cst_40 : f32 to vector<24x12xf32>
    %146 = arith.select %144, %142, %145 : vector<24x12xi1>, vector<24x12xf32>
    %147 = arith.addf %141, %146 : vector<24x12xf32>
    %c0_41 = arith.constant 0 : index
    %c0_42 = arith.constant 0 : index
    %148 = vector.load %arg6[%c0_41, %c0_42] : memref<16x128xf32, #tpu.memory_space<vmem>>, vector<1x12xf32>
    %149 = vector.broadcast %148 : vector<1x12xf32> to vector<24x12xf32>
    %150 = arith.addf %147, %149 : vector<24x12xf32>
    %cst_43 = arith.constant 0.000000e+00 : f32
    %151 = vector.broadcast %cst_43 : f32 to vector<24x12xf32>
    %152 = arith.maximumf %150, %151 : vector<24x12xf32>
    %c1_44 = arith.constant 1 : index
    %c0_45 = arith.constant 0 : index
    %c0_46 = arith.constant 0 : index
    %153 = vector.load %arg4[%c1_44, %c0_45, %c0_46] : memref<4x208x12xbf16, #tpu.memory_space<vmem>>, vector<1x12x12xbf16>
    %154 = vector.shape_cast %153 : vector<1x12x12xbf16> to vector<12x12xbf16>
    %155 = arith.truncf %152 : vector<24x12xf32> to vector<24x12xbf16>
    %cst_47 = arith.constant dense<0.000000e+00> : vector<24x12xf32>
    %156 = tpu.matmul %155, %154, %cst_47 {dimension_numbers = #tpu.dot_dimension_numbers<[1], [0], [0], [1], [0, 0, 1, 1], [], []>} : vector<24x12xbf16>, vector<12x12xbf16>, vector<24x12xf32> -> vector<24x12xf32>
    %157 = arith.truncf %156 : vector<24x12xf32> to vector<24x12xbf16>
    %c1_48 = arith.constant 1 : index
    %c16_49 = arith.constant 16 : index
    %c0_50 = arith.constant 0 : index
    %158 = vector.load %arg4[%c1_48, %c16_49, %c0_50] : memref<4x208x12xbf16, #tpu.memory_space<vmem>>, vector<1x96x12xbf16>
    %159 = vector.shape_cast %158 : vector<1x96x12xbf16> to vector<96x12xbf16>
    %c1_51 = arith.constant 1 : index
    %c112_52 = arith.constant 112 : index
    %c0_53 = arith.constant 0 : index
    %160 = vector.load %arg4[%c1_51, %c112_52, %c0_53] : memref<4x208x12xbf16, #tpu.memory_space<vmem>>, vector<1x96x12xbf16>
    %161 = vector.shape_cast %160 : vector<1x96x12xbf16> to vector<96x12xbf16>
    %cst_54 = arith.constant dense<0.000000e+00> : vector<96x24xf32>
    %162 = tpu.matmul %159, %157, %cst_54 {dimension_numbers = #tpu.dot_dimension_numbers<[1], [1], [0], [0], [0, 0, 1, 0], [], []>} : vector<96x12xbf16>, vector<24x12xbf16>, vector<96x24xf32> -> vector<96x24xf32>
    %cst_55 = arith.constant dense<0.000000e+00> : vector<96x24xf32>
    %163 = tpu.matmul %161, %157, %cst_55 {dimension_numbers = #tpu.dot_dimension_numbers<[1], [1], [0], [0], [0, 0, 1, 0], [], []>} : vector<96x12xbf16>, vector<24x12xbf16>, vector<96x24xf32> -> vector<96x24xf32>
    %164 = arith.mulf %163, %73 : vector<96x24xf32>
    %cst_56 = arith.constant dense<0.000000e+00> : vector<96xf32>
    %165 = vector.multi_reduction <add>, %164, %cst_56 [1] : vector<96x24xf32> to vector<96xf32>
    %166 = vector.shape_cast %165 : vector<96xf32> to vector<96x1xf32>
    %167 = vector.broadcast %166 : vector<96x1xf32> to vector<96x24xf32>
    %168 = arith.addf %167, %162 : vector<96x24xf32>
    %cst_57 = arith.constant 2.000000e-01 : f32
    %169 = vector.broadcast %cst_57 : f32 to vector<96x24xf32>
    %170 = arith.mulf %169, %168 : vector<96x24xf32>
    %171 = arith.maximumf %168, %170 : vector<96x24xf32>
    %172 = arith.addf %171, %72 : vector<96x24xf32>
    %cst_58 = arith.constant dense<0xFF800000> : vector<96xf32>
    %173 = vector.multi_reduction <maximumf>, %172, %cst_58 [1] : vector<96x24xf32> to vector<96xf32>
    %174 = vector.shape_cast %173 : vector<96xf32> to vector<96x1xf32>
    %175 = vector.broadcast %174 : vector<96x1xf32> to vector<96x24xf32>
    %176 = arith.subf %172, %175 : vector<96x24xf32>
    %177 = math.exp %176 : vector<96x24xf32>
    %cst_59 = arith.constant dense<0.000000e+00> : vector<96xf32>
    %178 = vector.multi_reduction <add>, %177, %cst_59 [1] : vector<96x24xf32> to vector<96xf32>
    %179 = vector.shape_cast %178 : vector<96xf32> to vector<96x1xf32>
    %180 = tpu.reciprocal %179 {approx = true} : vector<96x1xf32> -> vector<96x1xf32>
    %181 = vector.broadcast %180 : vector<96x1xf32> to vector<96x24xf32>
    %182 = arith.mulf %177, %181 : vector<96x24xf32>
    %183 = arith.truncf %182 : vector<96x24xf32> to vector<96x24xbf16>
    %cst_60 = arith.constant dense<0.000000e+00> : vector<96x12xf32>
    %184 = tpu.matmul %183, %157, %cst_60 {dimension_numbers = #tpu.dot_dimension_numbers<[1], [0], [0], [1], [0, 0, 1, 1], [], []>} : vector<96x24xbf16>, vector<24x12xbf16>, vector<96x12xf32> -> vector<96x12xf32>
    %cst_61 = arith.constant 0.000000e+00 : f32
    %185 = vector.broadcast %cst_61 : f32 to vector<24x12xf32>
    %186 = vector.extract_strided_slice %184 {offsets = [0, 0], sizes = [24, 12], strides = [1, 1]} : vector<96x12xf32> to vector<24x12xf32>
    %cst_62 = arith.constant 0.000000e+00 : f32
    %187 = vector.shape_cast %79 : vector<1x12xi1> to vector<1x12xi1>
    %188 = vector.broadcast %187 : vector<1x12xi1> to vector<24x12xi1>
    %189 = vector.broadcast %cst_62 : f32 to vector<24x12xf32>
    %190 = arith.select %188, %186, %189 : vector<24x12xi1>, vector<24x12xf32>
    %191 = arith.addf %185, %190 : vector<24x12xf32>
    %192 = vector.extract_strided_slice %184 {offsets = [24, 0], sizes = [24, 12], strides = [1, 1]} : vector<96x12xf32> to vector<24x12xf32>
    %cst_63 = arith.constant 0.000000e+00 : f32
    %193 = vector.shape_cast %84 : vector<1x12xi1> to vector<1x12xi1>
    %194 = vector.broadcast %193 : vector<1x12xi1> to vector<24x12xi1>
    %195 = vector.broadcast %cst_63 : f32 to vector<24x12xf32>
    %196 = arith.select %194, %192, %195 : vector<24x12xi1>, vector<24x12xf32>
    %197 = arith.addf %191, %196 : vector<24x12xf32>
    %198 = vector.extract_strided_slice %184 {offsets = [48, 0], sizes = [24, 12], strides = [1, 1]} : vector<96x12xf32> to vector<24x12xf32>
    %cst_64 = arith.constant 0.000000e+00 : f32
    %199 = vector.shape_cast %89 : vector<1x12xi1> to vector<1x12xi1>
    %200 = vector.broadcast %199 : vector<1x12xi1> to vector<24x12xi1>
    %201 = vector.broadcast %cst_64 : f32 to vector<24x12xf32>
    %202 = arith.select %200, %198, %201 : vector<24x12xi1>, vector<24x12xf32>
    %203 = arith.addf %197, %202 : vector<24x12xf32>
    %204 = vector.extract_strided_slice %184 {offsets = [72, 0], sizes = [24, 12], strides = [1, 1]} : vector<96x12xf32> to vector<24x12xf32>
    %cst_65 = arith.constant 0.000000e+00 : f32
    %205 = vector.shape_cast %94 : vector<1x12xi1> to vector<1x12xi1>
    %206 = vector.broadcast %205 : vector<1x12xi1> to vector<24x12xi1>
    %207 = vector.broadcast %cst_65 : f32 to vector<24x12xf32>
    %208 = arith.select %206, %204, %207 : vector<24x12xi1>, vector<24x12xf32>
    %209 = arith.addf %203, %208 : vector<24x12xf32>
    %c1_66 = arith.constant 1 : index
    %c0_67 = arith.constant 0 : index
    %210 = vector.load %arg6[%c1_66, %c0_67] : memref<16x128xf32, #tpu.memory_space<vmem>>, vector<1x12xf32>
    %211 = vector.broadcast %210 : vector<1x12xf32> to vector<24x12xf32>
    %212 = arith.addf %209, %211 : vector<24x12xf32>
    %cst_68 = arith.constant 0.000000e+00 : f32
    %213 = vector.broadcast %cst_68 : f32 to vector<24x12xf32>
    %214 = arith.maximumf %212, %213 : vector<24x12xf32>
    %c2 = arith.constant 2 : index
    %c0_69 = arith.constant 0 : index
    %c0_70 = arith.constant 0 : index
    %215 = vector.load %arg4[%c2, %c0_69, %c0_70] : memref<4x208x12xbf16, #tpu.memory_space<vmem>>, vector<1x12x12xbf16>
    %216 = vector.shape_cast %215 : vector<1x12x12xbf16> to vector<12x12xbf16>
    %217 = arith.truncf %214 : vector<24x12xf32> to vector<24x12xbf16>
    %cst_71 = arith.constant dense<0.000000e+00> : vector<24x12xf32>
    %218 = tpu.matmul %217, %216, %cst_71 {dimension_numbers = #tpu.dot_dimension_numbers<[1], [0], [0], [1], [0, 0, 1, 1], [], []>} : vector<24x12xbf16>, vector<12x12xbf16>, vector<24x12xf32> -> vector<24x12xf32>
    %219 = arith.truncf %218 : vector<24x12xf32> to vector<24x12xbf16>
    %c2_72 = arith.constant 2 : index
    %c16_73 = arith.constant 16 : index
    %c0_74 = arith.constant 0 : index
    %220 = vector.load %arg4[%c2_72, %c16_73, %c0_74] : memref<4x208x12xbf16, #tpu.memory_space<vmem>>, vector<1x96x12xbf16>
    %221 = vector.shape_cast %220 : vector<1x96x12xbf16> to vector<96x12xbf16>
    %c2_75 = arith.constant 2 : index
    %c112_76 = arith.constant 112 : index
    %c0_77 = arith.constant 0 : index
    %222 = vector.load %arg4[%c2_75, %c112_76, %c0_77] : memref<4x208x12xbf16, #tpu.memory_space<vmem>>, vector<1x96x12xbf16>
    %223 = vector.shape_cast %222 : vector<1x96x12xbf16> to vector<96x12xbf16>
    %cst_78 = arith.constant dense<0.000000e+00> : vector<96x24xf32>
    %224 = tpu.matmul %221, %219, %cst_78 {dimension_numbers = #tpu.dot_dimension_numbers<[1], [1], [0], [0], [0, 0, 1, 0], [], []>} : vector<96x12xbf16>, vector<24x12xbf16>, vector<96x24xf32> -> vector<96x24xf32>
    %cst_79 = arith.constant dense<0.000000e+00> : vector<96x24xf32>
    %225 = tpu.matmul %223, %219, %cst_79 {dimension_numbers = #tpu.dot_dimension_numbers<[1], [1], [0], [0], [0, 0, 1, 0], [], []>} : vector<96x12xbf16>, vector<24x12xbf16>, vector<96x24xf32> -> vector<96x24xf32>
    %226 = arith.mulf %225, %73 : vector<96x24xf32>
    %cst_80 = arith.constant dense<0.000000e+00> : vector<96xf32>
    %227 = vector.multi_reduction <add>, %226, %cst_80 [1] : vector<96x24xf32> to vector<96xf32>
    %228 = vector.shape_cast %227 : vector<96xf32> to vector<96x1xf32>
    %229 = vector.broadcast %228 : vector<96x1xf32> to vector<96x24xf32>
    %230 = arith.addf %229, %224 : vector<96x24xf32>
    %cst_81 = arith.constant 2.000000e-01 : f32
    %231 = vector.broadcast %cst_81 : f32 to vector<96x24xf32>
    %232 = arith.mulf %231, %230 : vector<96x24xf32>
    %233 = arith.maximumf %230, %232 : vector<96x24xf32>
    %234 = arith.addf %233, %72 : vector<96x24xf32>
    %cst_82 = arith.constant dense<0xFF800000> : vector<96xf32>
    %235 = vector.multi_reduction <maximumf>, %234, %cst_82 [1] : vector<96x24xf32> to vector<96xf32>
    %236 = vector.shape_cast %235 : vector<96xf32> to vector<96x1xf32>
    %237 = vector.broadcast %236 : vector<96x1xf32> to vector<96x24xf32>
    %238 = arith.subf %234, %237 : vector<96x24xf32>
    %239 = math.exp %238 : vector<96x24xf32>
    %cst_83 = arith.constant dense<0.000000e+00> : vector<96xf32>
    %240 = vector.multi_reduction <add>, %239, %cst_83 [1] : vector<96x24xf32> to vector<96xf32>
    %241 = vector.shape_cast %240 : vector<96xf32> to vector<96x1xf32>
    %242 = tpu.reciprocal %241 {approx = true} : vector<96x1xf32> -> vector<96x1xf32>
    %243 = vector.broadcast %242 : vector<96x1xf32> to vector<96x24xf32>
    %244 = arith.mulf %239, %243 : vector<96x24xf32>
    %245 = arith.truncf %244 : vector<96x24xf32> to vector<96x24xbf16>
    %cst_84 = arith.constant dense<0.000000e+00> : vector<96x12xf32>
    %246 = tpu.matmul %245, %219, %cst_84 {dimension_numbers = #tpu.dot_dimension_numbers<[1], [0], [0], [1], [0, 0, 1, 1], [], []>} : vector<96x24xbf16>, vector<24x12xbf16>, vector<96x12xf32> -> vector<96x12xf32>
    %cst_85 = arith.constant 0.000000e+00 : f32
    %247 = vector.broadcast %cst_85 : f32 to vector<24x12xf32>
    %248 = vector.extract_strided_slice %246 {offsets = [0, 0], sizes = [24, 12], strides = [1, 1]} : vector<96x12xf32> to vector<24x12xf32>
    %cst_86 = arith.constant 0.000000e+00 : f32
    %249 = vector.shape_cast %79 : vector<1x12xi1> to vector<1x12xi1>
    %250 = vector.broadcast %249 : vector<1x12xi1> to vector<24x12xi1>
    %251 = vector.broadcast %cst_86 : f32 to vector<24x12xf32>
    %252 = arith.select %250, %248, %251 : vector<24x12xi1>, vector<24x12xf32>
    %253 = arith.addf %247, %252 : vector<24x12xf32>
    %254 = vector.extract_strided_slice %246 {offsets = [24, 0], sizes = [24, 12], strides = [1, 1]} : vector<96x12xf32> to vector<24x12xf32>
    %cst_87 = arith.constant 0.000000e+00 : f32
    %255 = vector.shape_cast %84 : vector<1x12xi1> to vector<1x12xi1>
    %256 = vector.broadcast %255 : vector<1x12xi1> to vector<24x12xi1>
    %257 = vector.broadcast %cst_87 : f32 to vector<24x12xf32>
    %258 = arith.select %256, %254, %257 : vector<24x12xi1>, vector<24x12xf32>
    %259 = arith.addf %253, %258 : vector<24x12xf32>
    %260 = vector.extract_strided_slice %246 {offsets = [48, 0], sizes = [24, 12], strides = [1, 1]} : vector<96x12xf32> to vector<24x12xf32>
    %cst_88 = arith.constant 0.000000e+00 : f32
    %261 = vector.shape_cast %89 : vector<1x12xi1> to vector<1x12xi1>
    %262 = vector.broadcast %261 : vector<1x12xi1> to vector<24x12xi1>
    %263 = vector.broadcast %cst_88 : f32 to vector<24x12xf32>
    %264 = arith.select %262, %260, %263 : vector<24x12xi1>, vector<24x12xf32>
    %265 = arith.addf %259, %264 : vector<24x12xf32>
    %266 = vector.extract_strided_slice %246 {offsets = [72, 0], sizes = [24, 12], strides = [1, 1]} : vector<96x12xf32> to vector<24x12xf32>
    %cst_89 = arith.constant 0.000000e+00 : f32
    %267 = vector.shape_cast %94 : vector<1x12xi1> to vector<1x12xi1>
    %268 = vector.broadcast %267 : vector<1x12xi1> to vector<24x12xi1>
    %269 = vector.broadcast %cst_89 : f32 to vector<24x12xf32>
    %270 = arith.select %268, %266, %269 : vector<24x12xi1>, vector<24x12xf32>
    %271 = arith.addf %265, %270 : vector<24x12xf32>
    %c2_90 = arith.constant 2 : index
    %c0_91 = arith.constant 0 : index
    %272 = vector.load %arg6[%c2_90, %c0_91] : memref<16x128xf32, #tpu.memory_space<vmem>>, vector<1x12xf32>
    %273 = vector.broadcast %272 : vector<1x12xf32> to vector<24x12xf32>
    %274 = arith.addf %271, %273 : vector<24x12xf32>
    %cst_92 = arith.constant 0.000000e+00 : f32
    %275 = vector.broadcast %cst_92 : f32 to vector<24x12xf32>
    %276 = arith.maximumf %274, %275 : vector<24x12xf32>
    %c3 = arith.constant 3 : index
    %c0_93 = arith.constant 0 : index
    %c0_94 = arith.constant 0 : index
    %277 = vector.load %arg4[%c3, %c0_93, %c0_94] : memref<4x208x12xbf16, #tpu.memory_space<vmem>>, vector<1x12x12xbf16>
    %278 = vector.shape_cast %277 : vector<1x12x12xbf16> to vector<12x12xbf16>
    %279 = arith.truncf %276 : vector<24x12xf32> to vector<24x12xbf16>
    %cst_95 = arith.constant dense<0.000000e+00> : vector<24x12xf32>
    %280 = tpu.matmul %279, %278, %cst_95 {dimension_numbers = #tpu.dot_dimension_numbers<[1], [0], [0], [1], [0, 0, 1, 1], [], []>} : vector<24x12xbf16>, vector<12x12xbf16>, vector<24x12xf32> -> vector<24x12xf32>
    %281 = arith.truncf %280 : vector<24x12xf32> to vector<24x12xbf16>
    %c3_96 = arith.constant 3 : index
    %c16_97 = arith.constant 16 : index
    %c0_98 = arith.constant 0 : index
    %282 = vector.load %arg4[%c3_96, %c16_97, %c0_98] : memref<4x208x12xbf16, #tpu.memory_space<vmem>>, vector<1x96x12xbf16>
    %283 = vector.shape_cast %282 : vector<1x96x12xbf16> to vector<96x12xbf16>
    %c3_99 = arith.constant 3 : index
    %c112_100 = arith.constant 112 : index
    %c0_101 = arith.constant 0 : index
    %284 = vector.load %arg4[%c3_99, %c112_100, %c0_101] : memref<4x208x12xbf16, #tpu.memory_space<vmem>>, vector<1x96x12xbf16>
    %285 = vector.shape_cast %284 : vector<1x96x12xbf16> to vector<96x12xbf16>
    %cst_102 = arith.constant dense<0.000000e+00> : vector<96x24xf32>
    %286 = tpu.matmul %283, %281, %cst_102 {dimension_numbers = #tpu.dot_dimension_numbers<[1], [1], [0], [0], [0, 0, 1, 0], [], []>} : vector<96x12xbf16>, vector<24x12xbf16>, vector<96x24xf32> -> vector<96x24xf32>
    %cst_103 = arith.constant dense<0.000000e+00> : vector<96x24xf32>
    %287 = tpu.matmul %285, %281, %cst_103 {dimension_numbers = #tpu.dot_dimension_numbers<[1], [1], [0], [0], [0, 0, 1, 0], [], []>} : vector<96x12xbf16>, vector<24x12xbf16>, vector<96x24xf32> -> vector<96x24xf32>
    %288 = arith.mulf %287, %73 : vector<96x24xf32>
    %cst_104 = arith.constant dense<0.000000e+00> : vector<96xf32>
    %289 = vector.multi_reduction <add>, %288, %cst_104 [1] : vector<96x24xf32> to vector<96xf32>
    %290 = vector.shape_cast %289 : vector<96xf32> to vector<96x1xf32>
    %291 = vector.broadcast %290 : vector<96x1xf32> to vector<96x24xf32>
    %292 = arith.addf %291, %286 : vector<96x24xf32>
    %cst_105 = arith.constant 2.000000e-01 : f32
    %293 = vector.broadcast %cst_105 : f32 to vector<96x24xf32>
    %294 = arith.mulf %293, %292 : vector<96x24xf32>
    %295 = arith.maximumf %292, %294 : vector<96x24xf32>
    %296 = arith.addf %295, %72 : vector<96x24xf32>
    %cst_106 = arith.constant dense<0xFF800000> : vector<96xf32>
    %297 = vector.multi_reduction <maximumf>, %296, %cst_106 [1] : vector<96x24xf32> to vector<96xf32>
    %298 = vector.shape_cast %297 : vector<96xf32> to vector<96x1xf32>
    %299 = vector.broadcast %298 : vector<96x1xf32> to vector<96x24xf32>
    %300 = arith.subf %296, %299 : vector<96x24xf32>
    %301 = math.exp %300 : vector<96x24xf32>
    %cst_107 = arith.constant dense<0.000000e+00> : vector<96xf32>
    %302 = vector.multi_reduction <add>, %301, %cst_107 [1] : vector<96x24xf32> to vector<96xf32>
    %303 = vector.shape_cast %302 : vector<96xf32> to vector<96x1xf32>
    %304 = tpu.reciprocal %303 {approx = true} : vector<96x1xf32> -> vector<96x1xf32>
    %305 = vector.broadcast %304 : vector<96x1xf32> to vector<96x24xf32>
    %306 = arith.mulf %301, %305 : vector<96x24xf32>
    %307 = arith.truncf %306 : vector<96x24xf32> to vector<96x24xbf16>
    %cst_108 = arith.constant dense<0.000000e+00> : vector<96x12xf32>
    %308 = tpu.matmul %307, %281, %cst_108 {dimension_numbers = #tpu.dot_dimension_numbers<[1], [0], [0], [1], [0, 0, 1, 1], [], []>} : vector<96x24xbf16>, vector<24x12xbf16>, vector<96x12xf32> -> vector<96x12xf32>
    %cst_109 = arith.constant 0.000000e+00 : f32
    %309 = vector.broadcast %cst_109 : f32 to vector<24x12xf32>
    %310 = vector.extract_strided_slice %308 {offsets = [0, 0], sizes = [24, 12], strides = [1, 1]} : vector<96x12xf32> to vector<24x12xf32>
    %cst_110 = arith.constant 0.000000e+00 : f32
    %311 = vector.shape_cast %79 : vector<1x12xi1> to vector<1x12xi1>
    %312 = vector.broadcast %311 : vector<1x12xi1> to vector<24x12xi1>
    %313 = vector.broadcast %cst_110 : f32 to vector<24x12xf32>
    %314 = arith.select %312, %310, %313 : vector<24x12xi1>, vector<24x12xf32>
    %315 = arith.addf %309, %314 : vector<24x12xf32>
    %316 = vector.extract_strided_slice %308 {offsets = [24, 0], sizes = [24, 12], strides = [1, 1]} : vector<96x12xf32> to vector<24x12xf32>
    %cst_111 = arith.constant 0.000000e+00 : f32
    %317 = vector.shape_cast %84 : vector<1x12xi1> to vector<1x12xi1>
    %318 = vector.broadcast %317 : vector<1x12xi1> to vector<24x12xi1>
    %319 = vector.broadcast %cst_111 : f32 to vector<24x12xf32>
    %320 = arith.select %318, %316, %319 : vector<24x12xi1>, vector<24x12xf32>
    %321 = arith.addf %315, %320 : vector<24x12xf32>
    %322 = vector.extract_strided_slice %308 {offsets = [48, 0], sizes = [24, 12], strides = [1, 1]} : vector<96x12xf32> to vector<24x12xf32>
    %cst_112 = arith.constant 0.000000e+00 : f32
    %323 = vector.shape_cast %89 : vector<1x12xi1> to vector<1x12xi1>
    %324 = vector.broadcast %323 : vector<1x12xi1> to vector<24x12xi1>
    %325 = vector.broadcast %cst_112 : f32 to vector<24x12xf32>
    %326 = arith.select %324, %322, %325 : vector<24x12xi1>, vector<24x12xf32>
    %327 = arith.addf %321, %326 : vector<24x12xf32>
    %328 = vector.extract_strided_slice %308 {offsets = [72, 0], sizes = [24, 12], strides = [1, 1]} : vector<96x12xf32> to vector<24x12xf32>
    %cst_113 = arith.constant 0.000000e+00 : f32
    %329 = vector.shape_cast %94 : vector<1x12xi1> to vector<1x12xi1>
    %330 = vector.broadcast %329 : vector<1x12xi1> to vector<24x12xi1>
    %331 = vector.broadcast %cst_113 : f32 to vector<24x12xf32>
    %332 = arith.select %330, %328, %331 : vector<24x12xi1>, vector<24x12xf32>
    %333 = arith.addf %327, %332 : vector<24x12xf32>
    %c3_114 = arith.constant 3 : index
    %c0_115 = arith.constant 0 : index
    %334 = vector.load %arg6[%c3_114, %c0_115] : memref<16x128xf32, #tpu.memory_space<vmem>>, vector<1x12xf32>
    %335 = vector.broadcast %334 : vector<1x12xf32> to vector<24x12xf32>
    %336 = arith.addf %333, %335 : vector<24x12xf32>
    %c0_116 = arith.constant 0 : index
    %c0_117 = arith.constant 0 : index
    %337 = vector.load %arg5[%c0_116, %c0_117] : memref<152x128xbf16, #tpu.memory_space<vmem>>, vector<12x128xbf16>
    %c16_118 = arith.constant 16 : index
    %c0_119 = arith.constant 0 : index
    %338 = vector.load %arg5[%c16_118, %c0_119] : memref<152x128xbf16, #tpu.memory_space<vmem>>, vector<128x128xbf16>
    %c144 = arith.constant 144 : index
    %c0_120 = arith.constant 0 : index
    %339 = vector.load %arg5[%c144, %c0_120] : memref<152x128xbf16, #tpu.memory_space<vmem>>, vector<1x128xbf16>
    %c4 = arith.constant 4 : index
    %c0_121 = arith.constant 0 : index
    %340 = vector.load %arg6[%c4, %c0_121] : memref<16x128xf32, #tpu.memory_space<vmem>>, vector<1x128xf32>
    %c5 = arith.constant 5 : index
    %c0_122 = arith.constant 0 : index
    %341 = vector.load %arg6[%c5, %c0_122] : memref<16x128xf32, #tpu.memory_space<vmem>>, vector<1x128xf32>
    %c6 = arith.constant 6 : index
    %c0_123 = arith.constant 0 : index
    %342 = vector.load %arg6[%c6, %c0_123] : memref<16x128xf32, #tpu.memory_space<vmem>>, vector<1x1xf32>
    %343 = arith.truncf %336 : vector<24x12xf32> to vector<24x12xbf16>
    %cst_124 = arith.constant dense<0.000000e+00> : vector<24x128xf32>
    %344 = tpu.matmul %343, %337, %cst_124 {dimension_numbers = #tpu.dot_dimension_numbers<[1], [0], [0], [1], [0, 0, 1, 1], [], []>} : vector<24x12xbf16>, vector<12x128xbf16>, vector<24x128xf32> -> vector<24x128xf32>
    %345 = vector.broadcast %340 : vector<1x128xf32> to vector<24x128xf32>
    %346 = arith.addf %344, %345 : vector<24x128xf32>
    %cst_125 = arith.constant 0.000000e+00 : f32
    %347 = vector.broadcast %cst_125 : f32 to vector<24x128xf32>
    %348 = arith.maximumf %346, %347 : vector<24x128xf32>
    %349 = arith.truncf %348 : vector<24x128xf32> to vector<24x128xbf16>
    %cst_126 = arith.constant dense<0.000000e+00> : vector<24x128xf32>
    %350 = tpu.matmul %349, %338, %cst_126 {dimension_numbers = #tpu.dot_dimension_numbers<[1], [0], [0], [1], [0, 0, 1, 1], [], []>} : vector<24x128xbf16>, vector<128x128xbf16>, vector<24x128xf32> -> vector<24x128xf32>
    %351 = vector.broadcast %341 : vector<1x128xf32> to vector<24x128xf32>
    %352 = arith.addf %350, %351 : vector<24x128xf32>
    %cst_127 = arith.constant 0.000000e+00 : f32
    %353 = vector.broadcast %cst_127 : f32 to vector<24x128xf32>
    %354 = arith.maximumf %352, %353 : vector<24x128xf32>
    %355 = arith.extf %339 : vector<1x128xbf16> to vector<1x128xf32>
    %356 = vector.broadcast %355 : vector<1x128xf32> to vector<24x128xf32>
    %357 = arith.mulf %354, %356 : vector<24x128xf32>
    %cst_128 = arith.constant dense<0.000000e+00> : vector<24xf32>
    %358 = vector.multi_reduction <add>, %357, %cst_128 [1] : vector<24x128xf32> to vector<24xf32>
    %359 = vector.shape_cast %358 : vector<24xf32> to vector<24x1xf32>
    %360 = vector.broadcast %342 : vector<1x1xf32> to vector<24x1xf32>
    %361 = arith.addf %359, %360 : vector<24x1xf32>
    %cst_129 = arith.constant 0.000000e+00 : f32
    %362 = vector.broadcast %cst_129 : f32 to vector<24x1xf32>
    %363 = arith.maximumf %361, %362 : vector<24x1xf32>
    %cst_130 = arith.constant dense<0.000000e+00> : vector<1xf32>
    %364 = vector.multi_reduction <add>, %363, %cst_130 [0] : vector<24x1xf32> to vector<1xf32>
    %365 = vector.shape_cast %364 : vector<1xf32> to vector<1x1xf32>
    %cst_131 = arith.constant 0.0416666679 : f32
    %366 = vector.broadcast %cst_131 : f32 to vector<1x1xf32>
    %367 = arith.mulf %365, %366 : vector<1x1xf32>
    %c0_132 = arith.constant 0 : index
    %c0_133 = arith.constant 0 : index
    %368 = vector.load %arg7[%c0_132, %c0_133] : memref<1x1xf32, #tpu.memory_space<vmem>>, vector<1x1xf32>
    tpu.vector_store %arg7[%c0_132, %c0_133], %367 {strides = array<i32>} : memref<1x1xf32, #tpu.memory_space<vmem>>, vector<1x1xf32>,
    return
  }
}

</mosaic_0001>

<llo_original>
// kernel: critic_swap_gnn_forward.1
$region0: #{critic_swap_gnn_forward.1}
  #allocation0 [shape = 'u32[]', space=smem, size = 0x4, offset = 0x4, fixed_abs, tag = 'smem constant byte address 0x4 - core index']
  #allocation1 [shape = 'u32[144,128]{1,0:T(1,128)}', space=vmem, size = 0x12000, scoped, tag = 'internal scratch']
  %s0 = inlined_call_operand.vmem [shape: s32[24,1], index: 0, kind: input, shape index: {}]
  %s1 = inlined_call_operand.vmem [shape: f32[24,1], index: 1, kind: input, shape index: {}]
  %s2 = inlined_call_operand.vmem [shape: f32[24,1], index: 2, kind: input, shape index: {}]
  %s3 = inlined_call_operand.vmem [shape: s32[2,48], index: 3, kind: input, shape index: {}]
  %s4 = inlined_call_operand.vmem [shape: bf16[4,208,12], index: 4, kind: input, shape index: {}]
  %s5 = inlined_call_operand.vmem [shape: bf16[152,128], index: 5, kind: input, shape index: {}]
  %s6 = inlined_call_operand.vmem [shape: f32[16,128], index: 6, kind: input, shape index: {}]
  %s7 = inlined_call_operand.hbm [shape: f32[1,1], index: 7, kind: output, shape index: {}]
  %s8 = sld [smem:[#allocation0]]
  $region38: #{critic_swap_gnn_forward.1} parent=0
    _
  %s10 = ssub.s32 1, %s8
  %s11 = scalar_select 0, %s10, %s8
  $region1: #{critic_swap_gnn_forward.1} parent=0
    #allocation2 [shape = 'u8[512]{0}', space=vmem, size = 0x400, scoped, tag = 'output window, operand 0, single buffered']
    #allocation3 [shape = 's32[1]{0}', space=sflag, size = 0x4, scoped, tag = 'scoped memory for critic_swap_gnn_forward.1']
    %12 = vsyncpa [#allocation3], 0
    // Predicated region
    $region2: #{critic_swap_gnn_forward.1} parent=1 // pred_check
      _
    $region3: #{critic_swap_gnn_forward.1} parent=1 // pred_check_branch
      %14 = sbr.rel (0) target = $region5
    $region4: #{critic_swap_gnn_forward.1} parent=1 // pred_region
      _
    $region5: #{critic_swap_gnn_forward.1} parent=1 // pred_fallthru
      _
    // Predicated region
    $region6: #{critic_swap_gnn_forward.1} parent=1 // pred_check
      _
    $region7: #{critic_swap_gnn_forward.1} parent=1 // pred_check_branch
      %16 = sbr.rel (0) target = $region9
    $region8: #{critic_swap_gnn_forward.1} parent=1 // pred_region
      _
    $region9: #{critic_swap_gnn_forward.1} parent=1 // pred_fallthru
      _
    // Predicated region
    $region10: #{critic_swap_gnn_forward.1} parent=1 // pred_check
      _
    $region11: #{critic_swap_gnn_forward.1} parent=1 // pred_check_branch
      %18 = sbr.rel (0) target = $region13
    $region12: #{critic_swap_gnn_forward.1} parent=1 // pred_region
      _
    $region13: #{critic_swap_gnn_forward.1} parent=1 // pred_fallthru
      _
    // Predicated region
    $region14: #{critic_swap_gnn_forward.1} parent=1 // pred_check
      _
    $region15: #{critic_swap_gnn_forward.1} parent=1 // pred_check_branch
      %20 = sbr.rel (0) target = $region17
    $region16: #{critic_swap_gnn_forward.1} parent=1 // pred_region
      _
    $region17: #{critic_swap_gnn_forward.1} parent=1 // pred_fallthru
      _
    // Predicated region
    $region18: #{critic_swap_gnn_forward.1} parent=1 // pred_check
      _
    $region19: #{critic_swap_gnn_forward.1} parent=1 // pred_check_branch
      %22 = sbr.rel (0) target = $region21
    $region20: #{critic_swap_gnn_forward.1} parent=1 // pred_region
      _
    $region21: #{critic_swap_gnn_forward.1} parent=1 // pred_fallthru
      _
    // Predicated region
    $region22: #{critic_swap_gnn_forward.1} parent=1 // pred_check
      _
    $region23: #{critic_swap_gnn_forward.1} parent=1 // pred_check_branch
      %24 = sbr.rel (0) target = $region25
    $region24: #{critic_swap_gnn_forward.1} parent=1 // pred_region
      _
    $region25: #{critic_swap_gnn_forward.1} parent=1 // pred_fallthru
      _
    // Predicated region
    $region26: #{critic_swap_gnn_forward.1} parent=1 // pred_check
      _
    $region27: #{critic_swap_gnn_forward.1} parent=1 // pred_check_branch
      %26 = sbr.rel (0) target = $region29
    $region28: #{critic_swap_gnn_forward.1} parent=1 // pred_region
      _
    $region29: #{critic_swap_gnn_forward.1} parent=1 // pred_fallthru
      _
    %v28 = vld [vmem:[%s0] sm:$0xff]
    %v29 = vld [vmem:[%s0 + $0x8] sm:$0xff]
    %v30 = vld [vmem:[%s0 + $0x10] sm:$0xff]
    %v31 = vlaneseq
    %v32 = vand.u32 %v31, 127
    %33 = vset.pattern.permute.xlu0 0
    %34 = vperm.xlu0 %33, %v28
    %v35 = vpop.permute.xlu0 %34
    %36 = vset.pattern.permute.xlu0 0
    %37 = vperm.xlu0 %36, %v29
    %v38 = vpop.permute.xlu0 %37
    %39 = vset.pattern.permute.xlu0 0
    %40 = vperm.xlu0 %39, %v30
    %v41 = vpop.permute.xlu0 %40
    %vm42 = vcmp.eq.s32.totalorder %v32, %v35
    %vm43 = vcmp.eq.s32.totalorder %v32, %v38
    %vm44 = vcmp.eq.s32.totalorder %v32, %v41
    %v45 = vsel %vm42, 1, 0
    %v46 = vsel %vm43, 1, 0
    %v47 = vsel %vm44, 1, 0
    %v48 = vcvt.s32.f32 %v45
    %v49 = vcvt.s32.f32 %v46
    %v50 = vcvt.s32.f32 %v47
    %v51 = vld [vmem:[%s1] sm:$0xff]
    %v52 = vld [vmem:[%s1 + $0x8] sm:$0xff]
    %v53 = vld [vmem:[%s1 + $0x10] sm:$0xff]
    %v54 = vlaneseq
    %v55 = vshrl.u32 %v54, 7
    %v56 = vadd.s32 %v55, 8
    %v57 = vadd.s32 %v55, 16
    %vm58 = vcmp.ge.s32.totalorder %v55, 15
    %vm59 = vcmp.ge.s32.totalorder %v56, 15
    %vm60 = vcmp.ge.s32.totalorder %v57, 15
    %v61 = vsel %vm58, %v51, 0.0
    %v62 = vsel %vm59, %v52, 0.0
    %v63 = vsel %vm60, %v53, 0.0
    %vm64 = vcmask 7168
    %v65 = vsel %vm64, %v61, 0.0
    %v66 = vsel %vm64, %v62, 0.0
    %v67 = vadd.f32 %v65, %v66
    %v68 = vsel %vm64, %v63, 0.0
    %v69 = vadd.f32 %v67, %v68
    %v70 = vrot.slane %v69, 4
    %v71 = vadd.f32 %v69, %v70
    %v72 = vrot.slane %v71, 2
    %v73 = vadd.f32 %v71, %v72
    %v74 = vrot.slane %v73, 1
    %v75 = vadd.f32 %v73, %v74
    %v76 = vmul.f32 %v75, 0.11111111
    %v77 = vsub.f32 %v51, %v76
    %v78 = vsub.f32 %v52, %v76
    %v79 = vsub.f32 %v53, %v76
    %v80 = vsel %vm58, %v77, 0.0
    %v81 = vsel %vm59, %v78, 0.0
    %v82 = vsel %vm60, %v79, 0.0
    %v83 = vmul.f32 %v80, %v80
    %v84 = vmul.f32 %v81, %v81
    %v85 = vmul.f32 %v82, %v82
    %v86 = vsel %vm64, %v83, 0.0
    %v87 = vsel %vm64, %v84, 0.0
    %v88 = vadd.f32 %v86, %v87
    %v89 = vsel %vm64, %v85, 0.0
    %v90 = vadd.f32 %v88, %v89
    %v91 = vrot.slane %v90, 4
    %v92 = vadd.f32 %v90, %v91
    %v93 = vrot.slane %v92, 2
    %v94 = vadd.f32 %v92, %v93
    %v95 = vrot.slane %v94, 1
    %v96 = vadd.f32 %v94, %v95
    %v97 = vmul.f32 %v96, 0.125
    %v98 = vrsqrt.pop %v97
    %v99 = vmul.f32 %v97, %v98
    %vm100 = vcmp.eq.f32.partialorder %v97, inf
    %v101 = vsel %vm100, %v97, %v99
    %vm102 = vcmp.eq.f32.partialorder %v97, 0.0
    %v103 = vand.u32 %v97, 2147483648
    %v104 = vsel %vm102, %v103, %v101
    %v105 = vadd.f32 %v104, 1e-06
    %v106 = vrcp.pop %v105
    %v107 = vmul.f32 %v77, %v106
    %v108 = vmul.f32 %v78, %v106
    %v109 = vmul.f32 %v79, %v106
    %v110 = vsel %vm58, %v107, %v51
    %v111 = vsel %vm59, %v108, %v52
    %v112 = vsel %vm60, %v109, %v53
    %v113 = vld [vmem:[%s2] sm:$0xff]
    %v114 = vld [vmem:[%s2 + $0x8] sm:$0xff]
    %v115 = vld [vmem:[%s2 + $0x10] sm:$0xff]
    %v116 = vld [vmem:[%s6 + $0x8] sm:$0xf]
    %v117 = vld [vmem:[%s6 + $0xc] sm:$0x1]
    %v118 = vld [vmem:[%s6 + $0xd] sm:$0x1]
    %120 = vset.pattern.permute.xlu0 0
    %121 = vperm.xlu0 %120, %v110
    %v122 = vpop.permute.xlu0 %121
    %125 = vset.pattern.permute.xlu0 0
    %126 = vperm.xlu0 %125, %v111
    %v127 = vpop.permute.xlu0 %126
    %130 = vset.pattern.permute.xlu0 0
    %131 = vperm.xlu0 %130, %v112
    %v132 = vpop.permute.xlu0 %131
    %v134 = vlaneseq
    %v135 = vshrl.u32 %v134, 7
    %v136 = vsub.s32 0, %v135
    %v137 = vrot.slane %v117, %v136
    %v138 = vmul.f32 %v122, %v137
    %v139 = vmul.f32 %v127, %v137
    %v140 = vmul.f32 %v132, %v137
    %vm141 = vcmask 31744
    %v143 = vsel %vm141, %v48, 0
    %v146 = vsel %vm141, %v49, 0
    %v149 = vsel %vm141, %v50, 0
    %vm151 = vcmask 1043456
    %v153 = vsel %vm151, %v116, 0
    %155 = vmatprep.subr.mxu0 0.0
    %156 = vmatpush1.msra.mxu0 %v153
    %157 = vmatprep.subr.mxu0 0.0
    %158 = vmatpush1.msra.mxu0 0.0
    %159 = vmatprep.subr.mxu0 0.0
    %160 = vmatpush1.msra.mxu0 0.0
    %161 = vmatprep.subr.mxu0 0.0
    %162 = vmatpush1.msra.mxu0 0.0
    %163 = vmatprep.subr.mxu0 0.0
    %164 = vmatpush1.msra.mxu0 0.0
    %165 = vmatprep.subr.mxu0 0.0
    %166 = vmatpush1.msra.mxu0 0.0
    %167 = vmatprep.subr.mxu0 0.0
    %168 = vmatpush1.msra.mxu0 0.0
    %169 = vmatprep.subr.mxu0 0.0
    %170 = vmatpush1.msra.mxu0 0.0
    %171 = vmatprep.subr.mxu0 0.0
    %172 = vmatpush1.msra.mxu0 0.0
    %173 = vmatprep.subr.mxu0 0.0
    %174 = vmatpush1.msra.mxu0 0.0
    %175 = vmatprep.subr.mxu0 0.0
    %176 = vmatpush1.msra.mxu0 0.0
    %177 = vmatprep.subr.mxu0 0.0
    %178 = vmatpush1.msra.mxu0 0.0
    %179 = vmatprep.subr.mxu0 0.0
    %180 = vmatpush1.msra.mxu0 0.0
    %181 = vmatprep.subr.mxu0 0.0
    %182 = vmatpush1.msra.mxu0 0.0
    %183 = vmatprep.subr.mxu0 0.0
    %184 = vmatpush1.msra.mxu0 0.0
    %185 = vmatprep.subr.mxu0 0.0
    %186 = vmatpush1.msra.mxu0 0.0
    %187 = vmatprep.subr.mxu0 0.0
    %188 = vmatpush1.msra.mxu0 0.0
    %189 = vmatprep.subr.mxu0 0.0
    %190 = vmatpush1.msra.mxu0 0.0
    %191 = vmatprep.subr.mxu0 0.0
    %192 = vmatpush1.msra.mxu0 0.0
    %193 = vmatprep.subr.mxu0 0.0
    %194 = vmatpush1.msra.mxu0 0.0
    %195 = vmatprep.subr.mxu0 0.0
    %196 = vmatpush1.msra.mxu0 0.0
    %197 = vmatprep.subr.mxu0 0.0
    %198 = vmatpush1.msra.mxu0 0.0
    %199 = vmatprep.subr.mxu0 0.0
    %200 = vmatpush1.msra.mxu0 0.0
    %201 = vmatprep.subr.mxu0 0.0
    %202 = vmatpush1.msra.mxu0 0.0
    %203 = vmatprep.subr.mxu0 0.0
    %204 = vmatpush1.msra.mxu0 0.0
    %205 = vmatprep.subr.mxu0 0.0
    %206 = vmatpush1.msra.mxu0 0.0
    %207 = vmatprep.subr.mxu0 0.0
    %208 = vmatpush1.msra.mxu0 0.0
    %209 = vmatprep.subr.mxu0 0.0
    %210 = vmatpush1.msra.mxu0 0.0
    %211 = vmatprep.subr.mxu0 0.0
    %212 = vmatpush1.msra.mxu0 0.0
    %213 = vmatprep.subr.mxu0 0.0
    %214 = vmatpush1.msra.mxu0 0.0
    %215 = vmatprep.subr.mxu0 0.0
    %216 = vmatpush1.msra.mxu0 0.0
    %217 = vmatprep.subr.mxu0 0.0
    %218 = vmatpush1.msra.mxu0 0.0
    %219 = vmatprep.mubr.f32.mxu0 0.0
    %220 = vmatmul.mubr.f32.gmra.mrb[0].mxu0 %v143
    %v221 = vpop.f32.mrb[0].mxu0
    %v222 = vadd.f32 %v138, %v221
    %v223 = vpop.f32.mrb[0].mxu0
    %224 = vmatprep.mubr.f32.mxu0 0.0
    %225 = vmatmul.mubr.f32.gmra.mrb[0].mxu0 %v146
    %v226 = vpop.f32.mrb[0].mxu0
    %v227 = vadd.f32 %v139, %v226
    %v228 = vpop.f32.mrb[0].mxu0
    %229 = vmatprep.mubr.f32.mxu0 0.0
    %230 = vmatmul.mubr.f32.gmra.mrb[0].mxu0 %v149
    %v231 = vpop.f32.mrb[0].mxu0
    %v232 = vadd.f32 %v140, %v231
    %v233 = vpop.f32.mrb[0].mxu0
    %234 = vdwg.mxu0
    %236 = vset.pattern.permute.xlu0 0
    %237 = vperm.xlu0 %236, %v113
    %v238 = vpop.permute.xlu0 %237
    %241 = vset.pattern.permute.xlu0 0
    %242 = vperm.xlu0 %241, %v114
    %v243 = vpop.permute.xlu0 %242
    %246 = vset.pattern.permute.xlu0 0
    %247 = vperm.xlu0 %246, %v115
    %v248 = vpop.permute.xlu0 %247
    %v250 = vlaneseq
    %v251 = vshrl.u32 %v250, 7
    %v252 = vsub.s32 0, %v251
    %v253 = vrot.slane %v118, %v252
    %v254 = vmul.f32 %v238, %v253
    %v255 = vmul.f32 %v243, %v253
    %v256 = vmul.f32 %v248, %v253
    %v257 = vadd.f32 %v222, %v254
    %v258 = vadd.f32 %v227, %v255
    %v259 = vadd.f32 %v232, %v256
    %v260 = vld [vmem:[%s3] sm:$0x1]
    %v261 = vld [vmem:[%s3 + $0x1] sm:$0x1]
    %v262 = vlaneseq
    %v263 = vshrl.u32 %v262, 7
    %v264 = vsub.s32 0, %v263
    %v265 = vrot.slane %v261, %v264
    %vm266 = vcmp.eq.s32.totalorder %v55, %v265
    %vm267 = vcmp.eq.s32.totalorder %v56, %v265
    %vm268 = vcmp.eq.s32.totalorder %v57, %v265
    %v269 = vsel %vm266, 1, 0
    %v270 = vsel %vm267, 1, 0
    %v271 = vsel %vm268, 1, 0
    %v272 = vcvt.s32.f32 %v269
    %v273 = vcvt.s32.f32 %v270
    %v274 = vcvt.s32.f32 %v271
    %v275 = vpack.c.bf16 %v273, %v272
    %v276 = vpack.c.bf16 %v274, %v274
    %v277 = vlaneseq
    %v278 = vshrl.u32 %v277, 7
    %v279 = vsub.s32 0, %v278
    %v280 = vrot.slane %v260, %v279
    %vm281 = vcmp.eq.s32.totalorder %v55, %v280
    %vm282 = vcmp.eq.s32.totalorder %v56, %v280
    %vm283 = vcmp.eq.s32.totalorder %v57, %v280
    %v284 = vsel %vm281, 1, 0
    %v285 = vsel %vm282, 1, 0
    %v286 = vsel %vm283, 1, 0
    %v287 = vcvt.s32.f32 %v284
    %v288 = vcvt.s32.f32 %v285
    %v289 = vcvt.s32.f32 %v286
    %v290 = vpack.c.bf16 %v288, %v287
    %v291 = vpack.c.bf16 %v289, %v289
    %vm292 = vcmask 392192
    %v294 = vsel %vm292, %v275, 0
    %v297 = vsel %vm292, %v276, 0
    %v300 = vsel %vm292, %v290, 0
    %v303 = vsel %vm292, %v291, 0
    %305 = vmatprep.subr.bf16.mxu0 0
    %306 = vmatpush1.bf16.xpose.msra.mxu0 %v300
    %307 = vmatprep.subr.bf16.mxu0 0
    %308 = vmatpush1.bf16.xpose.msra.mxu0 %v303
    %309 = vmatprep.subr.bf16.mxu0 0
    %310 = vmatpush1.bf16.xpose.msra.mxu0 0
    %311 = vmatprep.subr.bf16.mxu0 0
    %312 = vmatpush1.bf16.xpose.msra.mxu0 0
    %313 = vmatprep.subr.bf16.mxu0 0
    %314 = vmatpush1.bf16.xpose.msra.mxu0 0
    %315 = vmatprep.subr.bf16.mxu0 0
    %316 = vmatpush1.bf16.xpose.msra.mxu0 0
    %317 = vmatprep.subr.bf16.mxu0 0
    %318 = vmatpush1.bf16.xpose.msra.mxu0 0
    %319 = vmatprep.subr.bf16.mxu0 0
    %320 = vmatpush1.bf16.xpose.msra.mxu0 0
    %321 = vmatprep.subr.bf16.mxu0 0
    %322 = vmatpush1.bf16.xpose.msra.mxu0 0
    %323 = vmatprep.subr.bf16.mxu0 0
    %324 = vmatpush1.bf16.xpose.msra.mxu0 0
    %325 = vmatprep.subr.bf16.mxu0 0
    %326 = vmatpush1.bf16.xpose.msra.mxu0 0
    %327 = vmatprep.subr.bf16.mxu0 0
    %328 = vmatpush1.bf16.xpose.msra.mxu0 0
    %329 = vmatprep.subr.bf16.mxu0 0
    %330 = vmatpush1.bf16.xpose.msra.mxu0 0
    %331 = vmatprep.subr.bf16.mxu0 0
    %332 = vmatpush1.bf16.xpose.msra.mxu0 0
    %333 = vmatprep.subr.bf16.mxu0 0
    %334 = vmatpush1.bf16.xpose.msra.mxu0 0
    %335 = vmatprep.subr.bf16.mxu0 0
    %336 = vmatpush1.bf16.xpose.msra.mxu0 0
    %337 = vmatprep.mubr.bf16.mxu0 0
    %338 = vmatmul.mubr.bf16.gmra.mrb[0].mxu0 %v294
    %v339 = vpop.f32.mrb[0].mxu0
    %v340 = vadd.f32 0.0, %v339
    %v341 = vpop.f32.mrb[0].mxu0
    %v342 = vpop.f32.mrb[0].mxu0
    %v343 = vadd.f32 0.0, %v342
    %v344 = vpop.f32.mrb[0].mxu0
    %345 = vmatprep.mubr.bf16.mxu0 0
    %346 = vmatmul.mubr.bf16.gmra.mrb[0].mxu0 %v297
    %v347 = vpop.f32.mrb[0].mxu0
    %v348 = vadd.f32 0.0, %v347
    %v349 = vpop.f32.mrb[0].mxu0
    %v350 = vpop.f32.mrb[0].mxu0
    %v351 = vpop.f32.mrb[0].mxu0
    %352 = vdwg.mxu0
    %vm353 = vcmp.eq.s32.totalorder %v55, %v32
    %vm354 = vcmp.eq.s32.totalorder %v56, %v32
    %vm355 = vcmp.eq.s32.totalorder %v57, %v32
    %v356 = vsel %vm353, 1, 0
    %v357 = vsel %vm354, 1, 0
    %v358 = vsel %vm355, 1, 0
    %v359 = vcvt.s32.f32 %v356
    %v360 = vcvt.s32.f32 %v357
    %v361 = vcvt.s32.f32 %v358
    %v362 = vmin.f32 %v340, 1.0
    %v363 = vmin.f32 %v343, 1.0
    %v364 = vmin.f32 %v348, 1.0
    %v365 = vmax.f32 %v362, %v359
    %v366 = vmax.f32 %v363, %v360
    %v367 = vmax.f32 %v364, %v361
    %v368 = vsub.f32 %v365, 1.0
    %v369 = vsub.f32 %v366, 1.0
    %v370 = vsub.f32 %v367, 1.0
    %v371 = vmul.f32 %v368, 1e+09
    %v372 = vmul.f32 %v369, 1e+09
    %v373 = vmul.f32 %v370, 1e+09
    %vm374 = vcmp.ge.s32.totalorder %v32, 0
    %vm375 = vcmp.lt.s32.totalorder %v32, 3
    %vm376 = vmand %vm374, %vm375
    %vm377 = vcmp.ge.s32.totalorder %v32, 3
    %vm378 = vcmp.lt.s32.totalorder %v32, 6
    %vm379 = vmand %vm377, %vm378
    %vm380 = vcmp.ge.s32.totalorder %v32, 6
    %vm381 = vcmp.lt.s32.totalorder %v32, 9
    %vm382 = vmand %vm380, %vm381
    %vm383 = vcmp.ge.s32.totalorder %v32, 9
    %vm384 = vcmp.lt.s32.totalorder %v32, 12
    %vm385 = vmand %vm383, %vm384
    %v386 = vpack.c.bf16 %v258, %v257
    %v387 = vpack.c.bf16 %v259, %v259
    %v388 = vld [vmem:[%s4 + $0x8] sm:$0xf]
    %v389 = vld [vmem:[%s4 + $0xc] sm:$0xf]
    %v390 = vld [vmem:[%s4 + $0x10] sm:$0xf]
    %v391 = vld [vmem:[%s4 + $0x14] sm:$0xf]
    %v392 = vld [vmem:[%s4 + $0x18] sm:$0xf]
    %v393 = vld [vmem:[%s4 + $0x1c] sm:$0xf]
    %v394 = vld [vmem:[%s4 + $0x20] sm:$0xf]
    %v395 = vld [vmem:[%s4 + $0x24] sm:$0xf]
    %v396 = vld [vmem:[%s4 + $0x28] sm:$0xf]
    %v397 = vld [vmem:[%s4 + $0x2c] sm:$0xf]
    %v398 = vld [vmem:[%s4 + $0x30] sm:$0xf]
    %v399 = vld [vmem:[%s4 + $0x34] sm:$0xf]
    %v400 = vld [vmem:[%s4 + $0x38] sm:$0xf]
    %v401 = vld [vmem:[%s4 + $0x3c] sm:$0xf]
    %v402 = vld [vmem:[%s4 + $0x40] sm:$0xf]
    %v403 = vld [vmem:[%s4 + $0x44] sm:$0xf]
    %v404 = vld [vmem:[%s4 + $0x48] sm:$0xf]
    %v405 = vld [vmem:[%s4 + $0x4c] sm:$0xf]
    %v406 = vld [vmem:[%s4 + $0x50] sm:$0xf]
    %v407 = vld [vmem:[%s4 + $0x54] sm:$0xf]
    %v408 = vld [vmem:[%s4 + $0x58] sm:$0xf]
    %v409 = vld [vmem:[%s4 + $0x5c] sm:$0xf]
    %v410 = vld [vmem:[%s4 + $0x60] sm:$0xf]
    %v411 = vld [vmem:[%s4 + $0x64] sm:$0xf]
    %v424 = vunpack.c.l.b16 %v388
    %v425 = vunpack.c.l.b16 %v389
    %v426 = vunpack.c.l.b16 %v390
    %v427 = vunpack.c.l.b16 %v391
    %v428 = vunpack.c.l.b16 %v392
    %v429 = vunpack.c.l.b16 %v393
    %v430 = vunpack.c.l.b16 %v394
    %v431 = vunpack.c.l.b16 %v395
    %v432 = vunpack.c.l.b16 %v396
    %v433 = vunpack.c.l.b16 %v397
    %v434 = vunpack.c.l.b16 %v398
    %v435 = vunpack.c.l.b16 %v399
    %v436 = vpack.c.b16 %v425, %v424
    %v437 = vpack.c.b16 %v427, %v426
    %v438 = vpack.c.b16 %v429, %v428
    %v439 = vpack.c.b16 %v431, %v430
    %v440 = vpack.c.b16 %v433, %v432
    %v441 = vpack.c.b16 %v435, %v434
    %vm442 = vcmask 97280
    %v444 = vsel %vm442, %v436, 0
    %v447 = vsel %vm442, %v437, 0
    %v450 = vsel %vm442, %v438, 0
    %v453 = vsel %vm442, %v439, 0
    %v456 = vsel %vm442, %v440, 0
    %v459 = vsel %vm442, %v441, 0
    %v462 = vsel %vm442, %v386, 0
    %v465 = vsel %vm442, %v387, 0
    %467 = vmatprep.subr.bf16.mxu0 0
    %468 = vmatpush1.bf16.xpose.msra.mxu0 %v462
    %469 = vmatprep.subr.bf16.mxu0 0
    %470 = vmatpush1.bf16.xpose.msra.mxu0 %v465
    %471 = vmatprep.subr.bf16.mxu0 0
    %472 = vmatpush1.bf16.xpose.msra.mxu0 0
    %473 = vmatprep.subr.bf16.mxu0 0
    %474 = vmatpush1.bf16.xpose.msra.mxu0 0
    %475 = vmatprep.subr.bf16.mxu0 0
    %476 = vmatpush1.bf16.xpose.msra.mxu0 0
    %477 = vmatprep.subr.bf16.mxu0 0
    %478 = vmatpush1.bf16.xpose.msra.mxu0 0
    %479 = vmatprep.subr.bf16.mxu0 0
    %480 = vmatpush1.bf16.xpose.msra.mxu0 0
    %481 = vmatprep.subr.bf16.mxu0 0
    %482 = vmatpush1.bf16.xpose.msra.mxu0 0
    %483 = vmatprep.subr.bf16.mxu0 0
    %484 = vmatpush1.bf16.xpose.msra.mxu0 0
    %485 = vmatprep.subr.bf16.mxu0 0
    %486 = vmatpush1.bf16.xpose.msra.mxu0 0
    %487 = vmatprep.subr.bf16.mxu0 0
    %488 = vmatpush1.bf16.xpose.msra.mxu0 0
    %489 = vmatprep.subr.bf16.mxu0 0
    %490 = vmatpush1.bf16.xpose.msra.mxu0 0
    %491 = vmatprep.subr.bf16.mxu0 0
    %492 = vmatpush1.bf16.xpose.msra.mxu0 0
    %493 = vmatprep.subr.bf16.mxu0 0
    %494 = vmatpush1.bf16.xpose.msra.mxu0 0
    %495 = vmatprep.subr.bf16.mxu0 0
    %496 = vmatpush1.bf16.xpose.msra.mxu0 0
    %497 = vmatprep.subr.bf16.mxu0 0
    %498 = vmatpush1.bf16.xpose.msra.mxu0 0
    %499 = vmatprep.mubr.bf16.mxu0 0
    %500 = vmatmul.mubr.bf16.gmra.mrb[0].mxu0 %v444
    %v501 = vpop.f32.mrb[0].mxu0
    %v502 = vadd.f32 0.0, %v501
    %v503 = vpop.f32.mrb[0].mxu0
    %v504 = vpop.f32.mrb[0].mxu0
    %v505 = vadd.f32 0.0, %v504
    %v506 = vpop.f32.mrb[0].mxu0
    %507 = vmatprep.mubr.bf16.mxu0 0
    %508 = vmatmul.mubr.bf16.gmra.mrb[0].mxu0 %v447
    %v509 = vpop.f32.mrb[0].mxu0
    %v510 = vadd.f32 0.0, %v509
    %v511 = vpop.f32.mrb[0].mxu0
    %v512 = vpop.f32.mrb[0].mxu0
    %v513 = vadd.f32 0.0, %v512
    %v514 = vpop.f32.mrb[0].mxu0
    %515 = vmatprep.mubr.bf16.mxu0 0
    %516 = vmatmul.mubr.bf16.gmra.mrb[0].mxu0 %v450
    %v517 = vpop.f32.mrb[0].mxu0
    %v518 = vadd.f32 0.0, %v517
    %v519 = vpop.f32.mrb[0].mxu0
    %v520 = vpop.f32.mrb[0].mxu0
    %v521 = vadd.f32 0.0, %v520
    %v522 = vpop.f32.mrb[0].mxu0
    %523 = vmatprep.mubr.bf16.mxu0 0
    %524 = vmatmul.mubr.bf16.gmra.mrb[0].mxu0 %v453
    %v525 = vpop.f32.mrb[0].mxu0
    %v526 = vadd.f32 0.0, %v525
    %v527 = vpop.f32.mrb[0].mxu0
    %v528 = vpop.f32.mrb[0].mxu0
    %v529 = vadd.f32 0.0, %v528
    %v530 = vpop.f32.mrb[0].mxu0
    %531 = vmatprep.mubr.bf16.mxu0 0
    %532 = vmatmul.mubr.bf16.gmra.mrb[0].mxu0 %v456
    %v533 = vpop.f32.mrb[0].mxu0
    %v534 = vadd.f32 0.0, %v533
    %v535 = vpop.f32.mrb[0].mxu0
    %v536 = vpop.f32.mrb[0].mxu0
    %v537 = vadd.f32 0.0, %v536
    %v538 = vpop.f32.mrb[0].mxu0
    %539 = vmatprep.mubr.bf16.mxu0 0
    %540 = vmatmul.mubr.bf16.gmra.mrb[0].mxu0 %v459
    %v541 = vpop.f32.mrb[0].mxu0
    %v542 = vadd.f32 0.0, %v541
    %v543 = vpop.f32.mrb[0].mxu0
    %v544 = vpop.f32.mrb[0].mxu0
    %v545 = vadd.f32 0.0, %v544
    %v546 = vpop.f32.mrb[0].mxu0
    %547 = vdwg.mxu0
    %v560 = vunpack.c.l.b16 %v400
    %v561 = vunpack.c.l.b16 %v401
    %v562 = vunpack.c.l.b16 %v402
    %v563 = vunpack.c.l.b16 %v403
    %v564 = vunpack.c.l.b16 %v404
    %v565 = vunpack.c.l.b16 %v405
    %v566 = vunpack.c.l.b16 %v406
    %v567 = vunpack.c.l.b16 %v407
    %v568 = vunpack.c.l.b16 %v408
    %v569 = vunpack.c.l.b16 %v409
    %v570 = vunpack.c.l.b16 %v410
    %v571 = vunpack.c.l.b16 %v411
    %v572 = vpack.c.b16 %v561, %v560
    %v573 = vpack.c.b16 %v563, %v562
    %v574 = vpack.c.b16 %v565, %v564
    %v575 = vpack.c.b16 %v567, %v566
    %v576 = vpack.c.b16 %v569, %v568
    %v577 = vpack.c.b16 %v571, %v570
    %v579 = vsel %vm442, %v572, 0
    %v582 = vsel %vm442, %v573, 0
    %v585 = vsel %vm442, %v574, 0
    %v588 = vsel %vm442, %v575, 0
    %v591 = vsel %vm442, %v576, 0
    %v594 = vsel %vm442, %v577, 0
    %596 = vmatprep.subr.bf16.mxu0 0
    %597 = vmatpush1.bf16.xpose.msra.mxu0 %v462
    %598 = vmatprep.subr.bf16.mxu0 0
    %599 = vmatpush1.bf16.xpose.msra.mxu0 %v465
    %600 = vmatprep.subr.bf16.mxu0 0
    %601 = vmatpush1.bf16.xpose.msra.mxu0 0
    %602 = vmatprep.subr.bf16.mxu0 0
    %603 = vmatpush1.bf16.xpose.msra.mxu0 0
    %604 = vmatprep.subr.bf16.mxu0 0
    %605 = vmatpush1.bf16.xpose.msra.mxu0 0
    %606 = vmatprep.subr.bf16.mxu0 0
    %607 = vmatpush1.bf16.xpose.msra.mxu0 0
    %608 = vmatprep.subr.bf16.mxu0 0
    %609 = vmatpush1.bf16.xpose.msra.mxu0 0
    %610 = vmatprep.subr.bf16.mxu0 0
    %611 = vmatpush1.bf16.xpose.msra.mxu0 0
    %612 = vmatprep.subr.bf16.mxu0 0
    %613 = vmatpush1.bf16.xpose.msra.mxu0 0
    %614 = vmatprep.subr.bf16.mxu0 0
    %615 = vmatpush1.bf16.xpose.msra.mxu0 0
    %616 = vmatprep.subr.bf16.mxu0 0
    %617 = vmatpush1.bf16.xpose.msra.mxu0 0
    %618 = vmatprep.subr.bf16.mxu0 0
    %619 = vmatpush1.bf16.xpose.msra.mxu0 0
    %620 = vmatprep.subr.bf16.mxu0 0
    %621 = vmatpush1.bf16.xpose.msra.mxu0 0
    %622 = vmatprep.subr.bf16.mxu0 0
    %623 = vmatpush1.bf16.xpose.msra.mxu0 0
    %624 = vmatprep.subr.bf16.mxu0 0
    %625 = vmatpush1.bf16.xpose.msra.mxu0 0
    %626 = vmatprep.subr.bf16.mxu0 0
    %627 = vmatpush1.bf16.xpose.msra.mxu0 0
    %628 = vmatprep.mubr.bf16.mxu0 0
    %629 = vmatmul.mubr.bf16.gmra.mrb[0].mxu0 %v579
    %v630 = vpop.f32.mrb[0].mxu0
    %v631 = vadd.f32 0.0, %v630
    %v632 = vpop.f32.mrb[0].mxu0
    %v633 = vpop.f32.mrb[0].mxu0
    %v634 = vadd.f32 0.0, %v633
    %v635 = vpop.f32.mrb[0].mxu0
    %636 = vmatprep.mubr.bf16.mxu0 0
    %637 = vmatmul.mubr.bf16.gmra.mrb[0].mxu0 %v582
    %v638 = vpop.f32.mrb[0].mxu0
    %v639 = vadd.f32 0.0, %v638
    %v640 = vpop.f32.mrb[0].mxu0
    %v641 = vpop.f32.mrb[0].mxu0
    %v642 = vadd.f32 0.0, %v641
    %v643 = vpop.f32.mrb[0].mxu0
    %644 = vmatprep.mubr.bf16.mxu0 0
    %645 = vmatmul.mubr.bf16.gmra.mrb[0].mxu0 %v585
    %v646 = vpop.f32.mrb[0].mxu0
    %v647 = vadd.f32 0.0, %v646
    %v648 = vpop.f32.mrb[0].mxu0
    %v649 = vpop.f32.mrb[0].mxu0
    %v650 = vadd.f32 0.0, %v649
    %v651 = vpop.f32.mrb[0].mxu0
    %652 = vmatprep.mubr.bf16.mxu0 0
    %653 = vmatmul.mubr.bf16.gmra.mrb[0].mxu0 %v588
    %v654 = vpop.f32.mrb[0].mxu0
    %v655 = vadd.f32 0.0, %v654
    %v656 = vpop.f32.mrb[0].mxu0
    %v657 = vpop.f32.mrb[0].mxu0
    %v658 = vadd.f32 0.0, %v657
    %v659 = vpop.f32.mrb[0].mxu0
    %660 = vmatprep.mubr.bf16.mxu0 0
    %661 = vmatmul.mubr.bf16.gmra.mrb[0].mxu0 %v591
    %v662 = vpop.f32.mrb[0].mxu0
    %v663 = vadd.f32 0.0, %v662
    %v664 = vpop.f32.mrb[0].mxu0
    %v665 = vpop.f32.mrb[0].mxu0
    %v666 = vadd.f32 0.0, %v665
    %v667 = vpop.f32.mrb[0].mxu0
    %668 = vmatprep.mubr.bf16.mxu0 0
    %669 = vmatmul.mubr.bf16.gmra.mrb[0].mxu0 %v594
    %v670 = vpop.f32.mrb[0].mxu0
    %v671 = vadd.f32 0.0, %v670
    %v672 = vpop.f32.mrb[0].mxu0
    %v673 = vpop.f32.mrb[0].mxu0
    %v674 = vadd.f32 0.0, %v673
    %v675 = vpop.f32.mrb[0].mxu0
    %676 = vdwg.mxu0
    %v677 = vmul.f32 %v631, %v359
    %v678 = vmul.f32 %v634, %v360
    %v679 = vmul.f32 %v639, %v361
    %v680 = vmul.f32 %v642, %v359
    %v681 = vmul.f32 %v647, %v360
    %v682 = vmul.f32 %v650, %v361
    %v683 = vmul.f32 %v655, %v359
    %v684 = vmul.f32 %v658, %v360
    %v685 = vmul.f32 %v663, %v361
    %v686 = vmul.f32 %v666, %v359
    %v687 = vmul.f32 %v671, %v360
    %v688 = vmul.f32 %v674, %v361
    %vm689 = vcmask 195584
    %v690 = vsel %vm689, %v677, 0.0
    %691 = vadd.xlane.f32.xlu0 %v690
    %v692 = vpop.xlane.xlu0 %691
    %v693 = vsel %vm689, %v678, 0.0
    %694 = vadd.xlane.f32.xlu0 %v693
    %v695 = vpop.xlane.xlu0 %694
    %v696 = vsel %vm689, %v679, 0.0
    %697 = vadd.xlane.f32.xlu0 %v696
    %v698 = vpop.xlane.xlu0 %697
    %v699 = vsel %vm689, %v680, 0.0
    %700 = vadd.xlane.f32.xlu0 %v699
    %v701 = vpop.xlane.xlu0 %700
    %v702 = vsel %vm689, %v681, 0.0
    %703 = vadd.xlane.f32.xlu0 %v702
    %v704 = vpop.xlane.xlu0 %703
    %v705 = vsel %vm689, %v682, 0.0
    %706 = vadd.xlane.f32.xlu0 %v705
    %v707 = vpop.xlane.xlu0 %706
    %v708 = vsel %vm689, %v683, 0.0
    %709 = vadd.xlane.f32.xlu0 %v708
    %v710 = vpop.xlane.xlu0 %709
    %v711 = vsel %vm689, %v684, 0.0
    %712 = vadd.xlane.f32.xlu0 %v711
    %v713 = vpop.xlane.xlu0 %712
    %v714 = vsel %vm689, %v685, 0.0
    %715 = vadd.xlane.f32.xlu0 %v714
    %v716 = vpop.xlane.xlu0 %715
    %v717 = vsel %vm689, %v686, 0.0
    %718 = vadd.xlane.f32.xlu0 %v717
    %v719 = vpop.xlane.xlu0 %718
    %v720 = vsel %vm689, %v687, 0.0
    %721 = vadd.xlane.f32.xlu0 %v720
    %v722 = vpop.xlane.xlu0 %721
    %v723 = vsel %vm689, %v688, 0.0
    %724 = vadd.xlane.f32.xlu0 %v723
    %v725 = vpop.xlane.xlu0 %724
    %v726 = vadd.f32 %v692, %v502
    %v727 = vadd.f32 %v695, %v505
    %v728 = vadd.f32 %v698, %v510
    %v729 = vadd.f32 %v701, %v513
    %v730 = vadd.f32 %v704, %v518
    %v731 = vadd.f32 %v707, %v521
    %v732 = vadd.f32 %v710, %v526
    %v733 = vadd.f32 %v713, %v529
    %v734 = vadd.f32 %v716, %v534
    %v735 = vadd.f32 %v719, %v537
    %v736 = vadd.f32 %v722, %v542
    %v737 = vadd.f32 %v725, %v545
    %v738 = vmul.f32 %v726, 0.2
    %v739 = vmul.f32 %v727, 0.2
    %v740 = vmul.f32 %v728, 0.2
    %v741 = vmul.f32 %v729, 0.2
    %v742 = vmul.f32 %v730, 0.2
    %v743 = vmul.f32 %v731, 0.2
    %v744 = vmul.f32 %v732, 0.2
    %v745 = vmul.f32 %v733, 0.2
    %v746 = vmul.f32 %v734, 0.2
    %v747 = vmul.f32 %v735, 0.2
    %v748 = vmul.f32 %v736, 0.2
    %v749 = vmul.f32 %v737, 0.2
    %v750 = vmax.f32 %v726, %v738
    %v751 = vmax.f32 %v727, %v739
    %v752 = vmax.f32 %v728, %v740
    %v753 = vmax.f32 %v729, %v741
    %v754 = vmax.f32 %v730, %v742
    %v755 = vmax.f32 %v731, %v743
    %v756 = vmax.f32 %v732, %v744
    %v757 = vmax.f32 %v733, %v745
    %v758 = vmax.f32 %v734, %v746
    %v759 = vmax.f32 %v735, %v747
    %v760 = vmax.f32 %v736, %v748
    %v761 = vmax.f32 %v737, %v749
    %v762 = vadd.f32 %v750, %v371
    %v763 = vadd.f32 %v751, %v372
    %v764 = vadd.f32 %v752, %v373
    %v765 = vadd.f32 %v753, %v371
    %v766 = vadd.f32 %v754, %v372
    %v767 = vadd.f32 %v755, %v373
    %v768 = vadd.f32 %v756, %v371
    %v769 = vadd.f32 %v757, %v372
    %v770 = vadd.f32 %v758, %v373
    %v771 = vadd.f32 %v759, %v371
    %v772 = vadd.f32 %v760, %v372
    %v773 = vadd.f32 %v761, %v373
    %v774 = vsel %vm689, %v762, -inf
    %775 = vmax.xlane.f32.xlu0 %v774
    %v776 = vpop.xlane.xlu0 %775
    %v777 = vsel %vm689, %v763, -inf
    %778 = vmax.xlane.f32.xlu0 %v777
    %v779 = vpop.xlane.xlu0 %778
    %v780 = vsel %vm689, %v764, -inf
    %781 = vmax.xlane.f32.xlu0 %v780
    %v782 = vpop.xlane.xlu0 %781
    %v783 = vsel %vm689, %v765, -inf
    %784 = vmax.xlane.f32.xlu0 %v783
    %v785 = vpop.xlane.xlu0 %784
    %v786 = vsel %vm689, %v766, -inf
    %787 = vmax.xlane.f32.xlu0 %v786
    %v788 = vpop.xlane.xlu0 %787
    %v789 = vsel %vm689, %v767, -inf
    %790 = vmax.xlane.f32.xlu0 %v789
    %v791 = vpop.xlane.xlu0 %790
    %v792 = vsel %vm689, %v768, -inf
    %793 = vmax.xlane.f32.xlu0 %v792
    %v794 = vpop.xlane.xlu0 %793
    %v795 = vsel %vm689, %v769, -inf
    %796 = vmax.xlane.f32.xlu0 %v795
    %v797 = vpop.xlane.xlu0 %796
    %v798 = vsel %vm689, %v770, -inf
    %799 = vmax.xlane.f32.xlu0 %v798
    %v800 = vpop.xlane.xlu0 %799
    %v801 = vsel %vm689, %v771, -inf
    %802 = vmax.xlane.f32.xlu0 %v801
    %v803 = vpop.xlane.xlu0 %802
    %v804 = vsel %vm689, %v772, -inf
    %805 = vmax.xlane.f32.xlu0 %v804
    %v806 = vpop.xlane.xlu0 %805
    %v807 = vsel %vm689, %v773, -inf
    %808 = vmax.xlane.f32.xlu0 %v807
    %v809 = vpop.xlane.xlu0 %808
    %v810 = vsub.f32 %v762, %v776
    %v811 = vsub.f32 %v763, %v779
    %v812 = vsub.f32 %v764, %v782
    %v813 = vsub.f32 %v765, %v785
    %v814 = vsub.f32 %v766, %v788
    %v815 = vsub.f32 %v767, %v791
    %v816 = vsub.f32 %v768, %v794
    %v817 = vsub.f32 %v769, %v797
    %v818 = vsub.f32 %v770, %v800
    %v819 = vsub.f32 %v771, %v803
    %v820 = vsub.f32 %v772, %v806
    %v821 = vsub.f32 %v773, %v809
    %v822 = vmul.f32 %v810, 1.442695
    %v823 = vpow.pop %v822
    %v824 = vmul.f32 %v811, 1.442695
    %v825 = vpow.pop %v824
    %v826 = vmul.f32 %v812, 1.442695
    %v827 = vpow.pop %v826
    %v828 = vmul.f32 %v813, 1.442695
    %v829 = vpow.pop %v828
    %v830 = vmul.f32 %v814, 1.442695
    %v831 = vpow.pop %v830
    %v832 = vmul.f32 %v815, 1.442695
    %v833 = vpow.pop %v832
    %v834 = vmul.f32 %v816, 1.442695
    %v835 = vpow.pop %v834
    %v836 = vmul.f32 %v817, 1.442695
    %v837 = vpow.pop %v836
    %v838 = vmul.f32 %v818, 1.442695
    %v839 = vpow.pop %v838
    %v840 = vmul.f32 %v819, 1.442695
    %v841 = vpow.pop %v840
    %v842 = vmul.f32 %v820, 1.442695
    %v843 = vpow.pop %v842
    %v844 = vmul.f32 %v821, 1.442695
    %v845 = vpow.pop %v844
    %v846 = vsel %vm689, %v823, 0.0
    %847 = vadd.xlane.f32.xlu0 %v846
    %v848 = vpop.xlane.xlu0 %847
    %v849 = vsel %vm689, %v825, 0.0
    %850 = vadd.xlane.f32.xlu0 %v849
    %v851 = vpop.xlane.xlu0 %850
    %v852 = vsel %vm689, %v827, 0.0
    %853 = vadd.xlane.f32.xlu0 %v852
    %v854 = vpop.xlane.xlu0 %853
    %v855 = vsel %vm689, %v829, 0.0
    %856 = vadd.xlane.f32.xlu0 %v855
    %v857 = vpop.xlane.xlu0 %856
    %v858 = vsel %vm689, %v831, 0.0
    %859 = vadd.xlane.f32.xlu0 %v858
    %v860 = vpop.xlane.xlu0 %859
    %v861 = vsel %vm689, %v833, 0.0
    %862 = vadd.xlane.f32.xlu0 %v861
    %v863 = vpop.xlane.xlu0 %862
    %v864 = vsel %vm689, %v835, 0.0
    %865 = vadd.xlane.f32.xlu0 %v864
    %v866 = vpop.xlane.xlu0 %865
    %v867 = vsel %vm689, %v837, 0.0
    %868 = vadd.xlane.f32.xlu0 %v867
    %v869 = vpop.xlane.xlu0 %868
    %v870 = vsel %vm689, %v839, 0.0
    %871 = vadd.xlane.f32.xlu0 %v870
    %v872 = vpop.xlane.xlu0 %871
    %v873 = vsel %vm689, %v841, 0.0
    %874 = vadd.xlane.f32.xlu0 %v873
    %v875 = vpop.xlane.xlu0 %874
    %v876 = vsel %vm689, %v843, 0.0
    %877 = vadd.xlane.f32.xlu0 %v876
    %v878 = vpop.xlane.xlu0 %877
    %v879 = vsel %vm689, %v845, 0.0
    %880 = vadd.xlane.f32.xlu0 %v879
    %v881 = vpop.xlane.xlu0 %880
    %v882 = vrcp.pop %v848
    %v883 = vrcp.pop %v851
    %v884 = vrcp.pop %v854
    %v885 = vrcp.pop %v857
    %v886 = vrcp.pop %v860
    %v887 = vrcp.pop %v863
    %v888 = vrcp.pop %v866
    %v889 = vrcp.pop %v869
    %v890 = vrcp.pop %v872
    %v891 = vrcp.pop %v875
    %v892 = vrcp.pop %v878
    %v893 = vrcp.pop %v881
    %v894 = vmul.f32 %v823, %v882
    %v895 = vmul.f32 %v825, %v883
    %v896 = vmul.f32 %v827, %v884
    %v897 = vmul.f32 %v829, %v885
    %v898 = vmul.f32 %v831, %v886
    %v899 = vmul.f32 %v833, %v887
    %v900 = vmul.f32 %v835, %v888
    %v901 = vmul.f32 %v837, %v889
    %v902 = vmul.f32 %v839, %v890
    %v903 = vmul.f32 %v841, %v891
    %v904 = vmul.f32 %v843, %v892
    %v905 = vmul.f32 %v845, %v893
    %v906 = vpack.c.bf16 %v895, %v894
    %v907 = vpack.c.bf16 %v897, %v896
    %v908 = vpack.c.bf16 %v899, %v898
    %v909 = vpack.c.bf16 %v901, %v900
    %v910 = vpack.c.bf16 %v903, %v902
    %v911 = vpack.c.bf16 %v905, %v904
    %v913 = vsel %vm689, %v906, 0
    %v916 = vsel %vm689, %v907, 0
    %v919 = vsel %vm689, %v908, 0
    %v922 = vsel %vm689, %v909, 0
    %v925 = vsel %vm689, %v910, 0
    %v928 = vsel %vm689, %v911, 0
    %v930 = vsel %vm151, %v387, 0
    %932 = vmatprep.subr.bf16.mxu0 0
    %933 = vmatpush1.bf16.msra.mxu0 %v386
    %934 = vmatprep.subr.bf16.mxu0 0
    %935 = vmatpush1.bf16.msra.mxu0 %v930
    %936 = vmatprep.subr.bf16.mxu0 0
    %937 = vmatpush1.bf16.msra.mxu0 0
    %938 = vmatprep.subr.bf16.mxu0 0
    %939 = vmatpush1.bf16.msra.mxu0 0
    %940 = vmatprep.subr.bf16.mxu0 0
    %941 = vmatpush1.bf16.msra.mxu0 0
    %942 = vmatprep.subr.bf16.mxu0 0
    %943 = vmatpush1.bf16.msra.mxu0 0
    %944 = vmatprep.subr.bf16.mxu0 0
    %945 = vmatpush1.bf16.msra.mxu0 0
    %946 = vmatprep.subr.bf16.mxu0 0
    %947 = vmatpush1.bf16.msra.mxu0 0
    %948 = vmatprep.subr.bf16.mxu0 0
    %949 = vmatpush1.bf16.msra.mxu0 0
    %950 = vmatprep.subr.bf16.mxu0 0
    %951 = vmatpush1.bf16.msra.mxu0 0
    %952 = vmatprep.subr.bf16.mxu0 0
    %953 = vmatpush1.bf16.msra.mxu0 0
    %954 = vmatprep.subr.bf16.mxu0 0
    %955 = vmatpush1.bf16.msra.mxu0 0
    %956 = vmatprep.subr.bf16.mxu0 0
    %957 = vmatpush1.bf16.msra.mxu0 0
    %958 = vmatprep.subr.bf16.mxu0 0
    %959 = vmatpush1.bf16.msra.mxu0 0
    %960 = vmatprep.subr.bf16.mxu0 0
    %961 = vmatpush1.bf16.msra.mxu0 0
    %962 = vmatprep.subr.bf16.mxu0 0
    %963 = vmatpush1.bf16.msra.mxu0 0
    %964 = vmatprep.mubr.bf16.mxu0 0
    %965 = vmatmul.mubr.bf16.gmra.mrb[0].mxu0 %v913
    %v966 = vpop.f32.mrb[0].mxu0
    %v967 = vadd.f32 0.0, %v966
    %v968 = vpop.f32.mrb[0].mxu0
    %v969 = vpop.f32.mrb[0].mxu0
    %v970 = vadd.f32 0.0, %v969
    %v971 = vpop.f32.mrb[0].mxu0
    %972 = vmatprep.mubr.bf16.mxu0 0
    %973 = vmatmul.mubr.bf16.gmra.mrb[0].mxu0 %v916
    %v974 = vpop.f32.mrb[0].mxu0
    %v975 = vadd.f32 0.0, %v974
    %v976 = vpop.f32.mrb[0].mxu0
    %v977 = vpop.f32.mrb[0].mxu0
    %v978 = vadd.f32 0.0, %v977
    %v979 = vpop.f32.mrb[0].mxu0
    %980 = vmatprep.mubr.bf16.mxu0 0
    %981 = vmatmul.mubr.bf16.gmra.mrb[0].mxu0 %v919
    %v982 = vpop.f32.mrb[0].mxu0
    %v983 = vadd.f32 0.0, %v982
    %v984 = vpop.f32.mrb[0].mxu0
    %v985 = vpop.f32.mrb[0].mxu0
    %v986 = vadd.f32 0.0, %v985
    %v987 = vpop.f32.mrb[0].mxu0
    %988 = vmatprep.mubr.bf16.mxu0 0
    %989 = vmatmul.mubr.bf16.gmra.mrb[0].mxu0 %v922
    %v990 = vpop.f32.mrb[0].mxu0
    %v991 = vadd.f32 0.0, %v990
    %v992 = vpop.f32.mrb[0].mxu0
    %v993 = vpop.f32.mrb[0].mxu0
    %v994 = vadd.f32 0.0, %v993
    %v995 = vpop.f32.mrb[0].mxu0
    %996 = vmatprep.mubr.bf16.mxu0 0
    %997 = vmatmul.mubr.bf16.gmra.mrb[0].mxu0 %v925
    %v998 = vpop.f32.mrb[0].mxu0
    %v999 = vadd.f32 0.0, %v998
    %v1000 = vpop.f32.mrb[0].mxu0
    %v1001 = vpop.f32.mrb[0].mxu0
    %v1002 = vadd.f32 0.0, %v1001
    %v1003 = vpop.f32.mrb[0].mxu0
    %1004 = vmatprep.mubr.bf16.mxu0 0
    %1005 = vmatmul.mubr.bf16.gmra.mrb[0].mxu0 %v928
    %v1006 = vpop.f32.mrb[0].mxu0
    %v1007 = vadd.f32 0.0, %v1006
    %v1008 = vpop.f32.mrb[0].mxu0
    %v1009 = vpop.f32.mrb[0].mxu0
    %v1010 = vadd.f32 0.0, %v1009
    %v1011 = vpop.f32.mrb[0].mxu0
    %1012 = vdwg.mxu0
    %v1013 = vsel %vm376, 1, 0
    %vm1014 = vcmp.eq.s32.totalorder %v1013, 1
    %v1015 = vsel %vm1014, %v967, 0.0
    %v1016 = vsel %vm1014, %v970, 0.0
    %v1017 = vsel %vm1014, %v975, 0.0
    %v1018 = vadd.f32 %v1015, 0.0
    %v1019 = vadd.f32 %v1016, 0.0
    %v1020 = vadd.f32 %v1017, 0.0
    %v1021 = vsel %vm379, 1, 0
    %vm1022 = vcmp.eq.s32.totalorder %v1021, 1
    %v1023 = vsel %vm1022, %v978, 0.0
    %v1024 = vsel %vm1022, %v983, 0.0
    %v1025 = vsel %vm1022, %v986, 0.0
    %v1026 = vadd.f32 %v1018, %v1023
    %v1027 = vadd.f32 %v1019, %v1024
    %v1028 = vadd.f32 %v1020, %v1025
    %v1029 = vsel %vm382, 1, 0
    %vm1030 = vcmp.eq.s32.totalorder %v1029, 1
    %v1031 = vsel %vm1030, %v991, 0.0
    %v1032 = vsel %vm1030, %v994, 0.0
    %v1033 = vsel %vm1030, %v999, 0.0
    %v1034 = vadd.f32 %v1026, %v1031
    %v1035 = vadd.f32 %v1027, %v1032
    %v1036 = vadd.f32 %v1028, %v1033
    %v1037 = vsel %vm385, 1, 0
    %vm1038 = vcmp.eq.s32.totalorder %v1037, 1
    %v1039 = vsel %vm1038, %v1002, 0.0
    %v1040 = vsel %vm1038, %v1007, 0.0
    %v1041 = vsel %vm1038, %v1010, 0.0
    %v1042 = vadd.f32 %v1034, %v1039
    %v1043 = vadd.f32 %v1035, %v1040
    %v1044 = vadd.f32 %v1036, %v1041
    %v1045 = vld [vmem:[%s6] sm:$0x1]
    %v1046 = vlaneseq
    %v1047 = vshrl.u32 %v1046, 7
    %v1048 = vsub.s32 0, %v1047
    %v1049 = vrot.slane %v1045, %v1048
    %v1050 = vadd.f32 %v1042, %v1049
    %v1051 = vadd.f32 %v1043, %v1049
    %v1052 = vadd.f32 %v1044, %v1049
    %v1053 = vmax.f32 %v1050, 0.0
    %v1054 = vmax.f32 %v1051, 0.0
    %v1055 = vmax.f32 %v1052, 0.0
    %s1056 = scalar_lea.vmem %s4, 104
    %v1057 = vld [vmem:[%s1056] sm:$0xf]
    %v1058 = vld [vmem:[%s1056 + $0x4] sm:$0x3]
    %v1059 = vpack.c.bf16 %v1054, %v1053
    %v1060 = vpack.c.bf16 %v1055, %v1055
    %v1063 = vunpack.c.l.b16 %v1057
    %v1064 = vunpack.c.l.b16 %v1058
    %v1065 = vpack.c.b16 %v1064, %v1063
    %v1067 = vsel %vm442, %v1059, 0
    %v1070 = vsel %vm442, %v1060, 0
    %vm1072 = vcmask 1045504
    %v1074 = vsel %vm1072, %v1065, 0
    %1076 = vmatprep.subr.bf16.mxu0 0
    %1077 = vmatpush1.bf16.msra.mxu0 %v1074
    %1078 = vmatprep.subr.bf16.mxu0 0
    %1079 = vmatpush1.bf16.msra.mxu0 0
    %1080 = vmatprep.subr.bf16.mxu0 0
    %1081 = vmatpush1.bf16.msra.mxu0 0
    %1082 = vmatprep.subr.bf16.mxu0 0
    %1083 = vmatpush1.bf16.msra.mxu0 0
    %1084 = vmatprep.subr.bf16.mxu0 0
    %1085 = vmatpush1.bf16.msra.mxu0 0
    %1086 = vmatprep.subr.bf16.mxu0 0
    %1087 = vmatpush1.bf16.msra.mxu0 0
    %1088 = vmatprep.subr.bf16.mxu0 0
    %1089 = vmatpush1.bf16.msra.mxu0 0
    %1090 = vmatprep.subr.bf16.mxu0 0
    %1091 = vmatpush1.bf16.msra.mxu0 0
    %1092 = vmatprep.subr.bf16.mxu0 0
    %1093 = vmatpush1.bf16.msra.mxu0 0
    %1094 = vmatprep.subr.bf16.mxu0 0
    %1095 = vmatpush1.bf16.msra.mxu0 0
    %1096 = vmatprep.subr.bf16.mxu0 0
    %1097 = vmatpush1.bf16.msra.mxu0 0
    %1098 = vmatprep.subr.bf16.mxu0 0
    %1099 = vmatpush1.bf16.msra.mxu0 0
    %1100 = vmatprep.subr.bf16.mxu0 0
    %1101 = vmatpush1.bf16.msra.mxu0 0
    %1102 = vmatprep.subr.bf16.mxu0 0
    %1103 = vmatpush1.bf16.msra.mxu0 0
    %1104 = vmatprep.subr.bf16.mxu0 0
    %1105 = vmatpush1.bf16.msra.mxu0 0
    %1106 = vmatprep.subr.bf16.mxu0 0
    %1107 = vmatpush1.bf16.msra.mxu0 0
    %1108 = vmatprep.mubr.bf16.mxu0 0
    %1109 = vmatmul.mubr.bf16.gmra.mrb[0].mxu0 %v1067
    %v1110 = vpop.f32.mrb[0].mxu0
    %v1111 = vadd.f32 0.0, %v1110
    %v1112 = vpop.f32.mrb[0].mxu0
    %v1113 = vpop.f32.mrb[0].mxu0
    %v1114 = vadd.f32 0.0, %v1113
    %v1115 = vpop.f32.mrb[0].mxu0
    %1116 = vmatprep.mubr.bf16.mxu0 0
    %1117 = vmatmul.mubr.bf16.gmra.mrb[0].mxu0 %v1070
    %v1118 = vpop.f32.mrb[0].mxu0
    %v1119 = vadd.f32 0.0, %v1118
    %v1120 = vpop.f32.mrb[0].mxu0
    %v1121 = vpop.f32.mrb[0].mxu0
    %v1122 = vpop.f32.mrb[0].mxu0
    %1123 = vdwg.mxu0
    %v1124 = vpack.c.bf16 %v1114, %v1111
    %v1125 = vpack.c.bf16 %v1119, %v1119
    %v1126 = vld [vmem:[%s1056 + $0x8] sm:$0xf]
    %v1127 = vld [vmem:[%s1056 + $0xc] sm:$0xf]
    %v1128 = vld [vmem:[%s1056 + $0x10] sm:$0xf]
    %v1129 = vld [vmem:[%s1056 + $0x14] sm:$0xf]
    %v1130 = vld [vmem:[%s1056 + $0x18] sm:$0xf]
    %v1131 = vld [vmem:[%s1056 + $0x1c] sm:$0xf]
    %v1132 = vld [vmem:[%s1056 + $0x20] sm:$0xf]
    %v1133 = vld [vmem:[%s1056 + $0x24] sm:$0xf]
    %v1134 = vld [vmem:[%s1056 + $0x28] sm:$0xf]
    %v1135 = vld [vmem:[%s1056 + $0x2c] sm:$0xf]
    %v1136 = vld [vmem:[%s1056 + $0x30] sm:$0xf]
    %v1137 = vld [vmem:[%s1056 + $0x34] sm:$0xf]
    %v1138 = vld [vmem:[%s1056 + $0x38] sm:$0xf]
    %v1139 = vld [vmem:[%s1056 + $0x3c] sm:$0xf]
    %v1140 = vld [vmem:[%s1056 + $0x40] sm:$0xf]
    %v1141 = vld [vmem:[%s1056 + $0x44] sm:$0xf]
    %v1142 = vld [vmem:[%s1056 + $0x48] sm:$0xf]
    %v1143 = vld [vmem:[%s1056 + $0x4c] sm:$0xf]
    %v1144 = vld [vmem:[%s1056 + $0x50] sm:$0xf]
    %v1145 = vld [vmem:[%s1056 + $0x54] sm:$0xf]
    %v1146 = vld [vmem:[%s1056 + $0x58] sm:$0xf]
    %v1147 = vld [vmem:[%s1056 + $0x5c] sm:$0xf]
    %v1148 = vld [vmem:[%s1056 + $0x60] sm:$0xf]
    %v1149 = vld [vmem:[%s1056 + $0x64] sm:$0xf]
    %v1162 = vunpack.c.l.b16 %v1126
    %v1163 = vunpack.c.l.b16 %v1127
    %v1164 = vunpack.c.l.b16 %v1128
    %v1165 = vunpack.c.l.b16 %v1129
    %v1166 = vunpack.c.l.b16 %v1130
    %v1167 = vunpack.c.l.b16 %v1131
    %v1168 = vunpack.c.l.b16 %v1132
    %v1169 = vunpack.c.l.b16 %v1133
    %v1170 = vunpack.c.l.b16 %v1134
    %v1171 = vunpack.c.l.b16 %v1135
    %v1172 = vunpack.c.l.b16 %v1136
    %v1173 = vunpack.c.l.b16 %v1137
    %v1174 = vpack.c.b16 %v1163, %v1162
    %v1175 = vpack.c.b16 %v1165, %v1164
    %v1176 = vpack.c.b16 %v1167, %v1166
    %v1177 = vpack.c.b16 %v1169, %v1168
    %v1178 = vpack.c.b16 %v1171, %v1170
    %v1179 = vpack.c.b16 %v1173, %v1172
    %v1181 = vsel %vm442, %v1174, 0
    %v1184 = vsel %vm442, %v1175, 0
    %v1187 = vsel %vm442, %v1176, 0
    %v1190 = vsel %vm442, %v1177, 0
    %v1193 = vsel %vm442, %v1178, 0
    %v1196 = vsel %vm442, %v1179, 0
    %v1199 = vsel %vm442, %v1124, 0
    %v1202 = vsel %vm442, %v1125, 0
    %1204 = vmatprep.subr.bf16.mxu0 0
    %1205 = vmatpush1.bf16.xpose.msra.mxu0 %v1199
    %1206 = vmatprep.subr.bf16.mxu0 0
    %1207 = vmatpush1.bf16.xpose.msra.mxu0 %v1202
    %1208 = vmatprep.subr.bf16.mxu0 0
    %1209 = vmatpush1.bf16.xpose.msra.mxu0 0
    %1210 = vmatprep.subr.bf16.mxu0 0
    %1211 = vmatpush1.bf16.xpose.msra.mxu0 0
    %1212 = vmatprep.subr.bf16.mxu0 0
    %1213 = vmatpush1.bf16.xpose.msra.mxu0 0
    %1214 = vmatprep.subr.bf16.mxu0 0
    %1215 = vmatpush1.bf16.xpose.msra.mxu0 0
    %1216 = vmatprep.subr.bf16.mxu0 0
    %1217 = vmatpush1.bf16.xpose.msra.mxu0 0
    %1218 = vmatprep.subr.bf16.mxu0 0
    %1219 = vmatpush1.bf16.xpose.msra.mxu0 0
    %1220 = vmatprep.subr.bf16.mxu0 0
    %1221 = vmatpush1.bf16.xpose.msra.mxu0 0
    %1222 = vmatprep.subr.bf16.mxu0 0
    %1223 = vmatpush1.bf16.xpose.msra.mxu0 0
    %1224 = vmatprep.subr.bf16.mxu0 0
    %1225 = vmatpush1.bf16.xpose.msra.mxu0 0
    %1226 = vmatprep.subr.bf16.mxu0 0
    %1227 = vmatpush1.bf16.xpose.msra.mxu0 0
    %1228 = vmatprep.subr.bf16.mxu0 0
    %1229 = vmatpush1.bf16.xpose.msra.mxu0 0
    %1230 = vmatprep.subr.bf16.mxu0 0
    %1231 = vmatpush1.bf16.xpose.msra.mxu0 0
    %1232 = vmatprep.subr.bf16.mxu0 0
    %1233 = vmatpush1.bf16.xpose.msra.mxu0 0
    %1234 = vmatprep.subr.bf16.mxu0 0
    %1235 = vmatpush1.bf16.xpose.msra.mxu0 0
    %1236 = vmatprep.mubr.bf16.mxu0 0
    %1237 = vmatmul.mubr.bf16.gmra.mrb[0].mxu0 %v1181
    %v1238 = vpop.f32.mrb[0].mxu0
    %v1239 = vadd.f32 0.0, %v1238
    %v1240 = vpop.f32.mrb[0].mxu0
    %v1241 = vpop.f32.mrb[0].mxu0
    %v1242 = vadd.f32 0.0, %v1241
    %v1243 = vpop.f32.mrb[0].mxu0
    %1244 = vmatprep.mubr.bf16.mxu0 0
    %1245 = vmatmul.mubr.bf16.gmra.mrb[0].mxu0 %v1184
    %v1246 = vpop.f32.mrb[0].mxu0
    %v1247 = vadd.f32 0.0, %v1246
    %v1248 = vpop.f32.mrb[0].mxu0
    %v1249 = vpop.f32.mrb[0].mxu0
    %v1250 = vadd.f32 0.0, %v1249
    %v1251 = vpop.f32.mrb[0].mxu0
    %1252 = vmatprep.mubr.bf16.mxu0 0
    %1253 = vmatmul.mubr.bf16.gmra.mrb[0].mxu0 %v1187
    %v1254 = vpop.f32.mrb[0].mxu0
    %v1255 = vadd.f32 0.0, %v1254
    %v1256 = vpop.f32.mrb[0].mxu0
    %v1257 = vpop.f32.mrb[0].mxu0
    %v1258 = vadd.f32 0.0, %v1257
    %v1259 = vpop.f32.mrb[0].mxu0
    %1260 = vmatprep.mubr.bf16.mxu0 0
    %1261 = vmatmul.mubr.bf16.gmra.mrb[0].mxu0 %v1190
    %v1262 = vpop.f32.mrb[0].mxu0
    %v1263 = vadd.f32 0.0, %v1262
    %v1264 = vpop.f32.mrb[0].mxu0
    %v1265 = vpop.f32.mrb[0].mxu0
    %v1266 = vadd.f32 0.0, %v1265
    %v1267 = vpop.f32.mrb[0].mxu0
    %1268 = vmatprep.mubr.bf16.mxu0 0
    %1269 = vmatmul.mubr.bf16.gmra.mrb[0].mxu0 %v1193
    %v1270 = vpop.f32.mrb[0].mxu0
    %v1271 = vadd.f32 0.0, %v1270
    %v1272 = vpop.f32.mrb[0].mxu0
    %v1273 = vpop.f32.mrb[0].mxu0
    %v1274 = vadd.f32 0.0, %v1273
    %v1275 = vpop.f32.mrb[0].mxu0
    %1276 = vmatprep.mubr.bf16.mxu0 0
    %1277 = vmatmul.mubr.bf16.gmra.mrb[0].mxu0 %v1196
    %v1278 = vpop.f32.mrb[0].mxu0
    %v1279 = vadd.f32 0.0, %v1278
    %v1280 = vpop.f32.mrb[0].mxu0
    %v1281 = vpop.f32.mrb[0].mxu0
    %v1282 = vadd.f32 0.0, %v1281
    %v1283 = vpop.f32.mrb[0].mxu0
    %1284 = vdwg.mxu0
    %v1297 = vunpack.c.l.b16 %v1138
    %v1298 = vunpack.c.l.b16 %v1139
    %v1299 = vunpack.c.l.b16 %v1140
    %v1300 = vunpack.c.l.b16 %v1141
    %v1301 = vunpack.c.l.b16 %v1142
    %v1302 = vunpack.c.l.b16 %v1143
    %v1303 = vunpack.c.l.b16 %v1144
    %v1304 = vunpack.c.l.b16 %v1145
    %v1305 = vunpack.c.l.b16 %v1146
    %v1306 = vunpack.c.l.b16 %v1147
    %v1307 = vunpack.c.l.b16 %v1148
    %v1308 = vunpack.c.l.b16 %v1149
    %v1309 = vpack.c.b16 %v1298, %v1297
    %v1310 = vpack.c.b16 %v1300, %v1299
    %v1311 = vpack.c.b16 %v1302, %v1301
    %v1312 = vpack.c.b16 %v1304, %v1303
    %v1313 = vpack.c.b16 %v1306, %v1305
    %v1314 = vpack.c.b16 %v1308, %v1307
    %v1316 = vsel %vm442, %v1309, 0
    %v1319 = vsel %vm442, %v1310, 0
    %v1322 = vsel %vm442, %v1311, 0
    %v1325 = vsel %vm442, %v1312, 0
    %v1328 = vsel %vm442, %v1313, 0
    %v1331 = vsel %vm442, %v1314, 0
    %1333 = vmatprep.subr.bf16.mxu0 0
    %1334 = vmatpush1.bf16.xpose.msra.mxu0 %v1199
    %1335 = vmatprep.subr.bf16.mxu0 0
    %1336 = vmatpush1.bf16.xpose.msra.mxu0 %v1202
    %1337 = vmatprep.subr.bf16.mxu0 0
    %1338 = vmatpush1.bf16.xpose.msra.mxu0 0
    %1339 = vmatprep.subr.bf16.mxu0 0
    %1340 = vmatpush1.bf16.xpose.msra.mxu0 0
    %1341 = vmatprep.subr.bf16.mxu0 0
    %1342 = vmatpush1.bf16.xpose.msra.mxu0 0
    %1343 = vmatprep.subr.bf16.mxu0 0
    %1344 = vmatpush1.bf16.xpose.msra.mxu0 0
    %1345 = vmatprep.subr.bf16.mxu0 0
    %1346 = vmatpush1.bf16.xpose.msra.mxu0 0
    %1347 = vmatprep.subr.bf16.mxu0 0
    %1348 = vmatpush1.bf16.xpose.msra.mxu0 0
    %1349 = vmatprep.subr.bf16.mxu0 0
    %1350 = vmatpush1.bf16.xpose.msra.mxu0 0
    %1351 = vmatprep.subr.bf16.mxu0 0
    %1352 = vmatpush1.bf16.xpose.msra.mxu0 0
    %1353 = vmatprep.subr.bf16.mxu0 0
    %1354 = vmatpush1.bf16.xpose.msra.mxu0 0
    %1355 = vmatprep.subr.bf16.mxu0 0
    %1356 = vmatpush1.bf16.xpose.msra.mxu0 0
    %1357 = vmatprep.subr.bf16.mxu0 0
    %1358 = vmatpush1.bf16.xpose.msra.mxu0 0
    %1359 = vmatprep.subr.bf16.mxu0 0
    %1360 = vmatpush1.bf16.xpose.msra.mxu0 0
    %1361 = vmatprep.subr.bf16.mxu0 0
    %1362 = vmatpush1.bf16.xpose.msra.mxu0 0
    %1363 = vmatprep.subr.bf16.mxu0 0
    %1364 = vmatpush1.bf16.xpose.msra.mxu0 0
    %1365 = vmatprep.mubr.bf16.mxu0 0
    %1366 = vmatmul.mubr.bf16.gmra.mrb[0].mxu0 %v1316
    %v1367 = vpop.f32.mrb[0].mxu0
    %v1368 = vadd.f32 0.0, %v1367
    %v1369 = vpop.f32.mrb[0].mxu0
    %v1370 = vpop.f32.mrb[0].mxu0
    %v1371 = vadd.f32 0.0, %v1370
    %v1372 = vpop.f32.mrb[0].mxu0
    %1373 = vmatprep.mubr.bf16.mxu0 0
    %1374 = vmatmul.mubr.bf16.gmra.mrb[0].mxu0 %v1319
    %v1375 = vpop.f32.mrb[0].mxu0
    %v1376 = vadd.f32 0.0, %v1375
    %v1377 = vpop.f32.mrb[0].mxu0
    %v1378 = vpop.f32.mrb[0].mxu0
    %v1379 = vadd.f32 0.0, %v1378
    %v1380 = vpop.f32.mrb[0].mxu0
    %1381 = vmatprep.mubr.bf16.mxu0 0
    %1382 = vmatmul.mubr.bf16.gmra.mrb[0].mxu0 %v1322
    %v1383 = vpop.f32.mrb[0].mxu0
    %v1384 = vadd.f32 0.0, %v1383
    %v1385 = vpop.f32.mrb[0].mxu0
    %v1386 = vpop.f32.mrb[0].mxu0
    %v1387 = vadd.f32 0.0, %v1386
    %v1388 = vpop.f32.mrb[0].mxu0
    %1389 = vmatprep.mubr.bf16.mxu0 0
    %1390 = vmatmul.mubr.bf16.gmra.mrb[0].mxu0 %v1325
    %v1391 = vpop.f32.mrb[0].mxu0
    %v1392 = vadd.f32 0.0, %v1391
    %v1393 = vpop.f32.mrb[0].mxu0
    %v1394 = vpop.f32.mrb[0].mxu0
    %v1395 = vadd.f32 0.0, %v1394
    %v1396 = vpop.f32.mrb[0].mxu0
    %1397 = vmatprep.mubr.bf16.mxu0 0
    %1398 = vmatmul.mubr.bf16.gmra.mrb[0].mxu0 %v1328
    %v1399 = vpop.f32.mrb[0].mxu0
    %v1400 = vadd.f32 0.0, %v1399
    %v1401 = vpop.f32.mrb[0].mxu0
    %v1402 = vpop.f32.mrb[0].mxu0
    %v1403 = vadd.f32 0.0, %v1402
    %v1404 = vpop.f32.mrb[0].mxu0
    %1405 = vmatprep.mubr.bf16.mxu0 0
    %1406 = vmatmul.mubr.bf16.gmra.mrb[0].mxu0 %v1331
    %v1407 = vpop.f32.mrb[0].mxu0
    %v1408 = vadd.f32 0.0, %v1407
    %v1409 = vpop.f32.mrb[0].mxu0
    %v1410 = vpop.f32.mrb[0].mxu0
    %v1411 = vadd.f32 0.0, %v1410
    %v1412 = vpop.f32.mrb[0].mxu0
    %1413 = vdwg.mxu0
    %v1414 = vmul.f32 %v1368, %v359
    %v1415 = vmul.f32 %v1371, %v360
    %v1416 = vmul.f32 %v1376, %v361
    %v1417 = vmul.f32 %v1379, %v359
    %v1418 = vmul.f32 %v1384, %v360
    %v1419 = vmul.f32 %v1387, %v361
    %v1420 = vmul.f32 %v1392, %v359
    %v1421 = vmul.f32 %v1395, %v360
    %v1422 = vmul.f32 %v1400, %v361
    %v1423 = vmul.f32 %v1403, %v359
    %v1424 = vmul.f32 %v1408, %v360
    %v1425 = vmul.f32 %v1411, %v361
    %v1426 = vsel %vm689, %v1414, 0.0
    %1427 = vadd.xlane.f32.xlu0 %v1426
    %v1428 = vpop.xlane.xlu0 %1427
    %v1429 = vsel %vm689, %v1415, 0.0
    %1430 = vadd.xlane.f32.xlu0 %v1429
    %v1431 = vpop.xlane.xlu0 %1430
    %v1432 = vsel %vm689, %v1416, 0.0
    %1433 = vadd.xlane.f32.xlu0 %v1432
    %v1434 = vpop.xlane.xlu0 %1433
    %v1435 = vsel %vm689, %v1417, 0.0
    %1436 = vadd.xlane.f32.xlu0 %v1435
    %v1437 = vpop.xlane.xlu0 %1436
    %v1438 = vsel %vm689, %v1418, 0.0
    %1439 = vadd.xlane.f32.xlu0 %v1438
    %v1440 = vpop.xlane.xlu0 %1439
    %v1441 = vsel %vm689, %v1419, 0.0
    %1442 = vadd.xlane.f32.xlu0 %v1441
    %v1443 = vpop.xlane.xlu0 %1442
    %v1444 = vsel %vm689, %v1420, 0.0
    %1445 = vadd.xlane.f32.xlu0 %v1444
    %v1446 = vpop.xlane.xlu0 %1445
    %v1447 = vsel %vm689, %v1421, 0.0
    %1448 = vadd.xlane.f32.xlu0 %v1447
    %v1449 = vpop.xlane.xlu0 %1448
    %v1450 = vsel %vm689, %v1422, 0.0
    %1451 = vadd.xlane.f32.xlu0 %v1450
    %v1452 = vpop.xlane.xlu0 %1451
    %v1453 = vsel %vm689, %v1423, 0.0
    %1454 = vadd.xlane.f32.xlu0 %v1453
    %v1455 = vpop.xlane.xlu0 %1454
    %v1456 = vsel %vm689, %v1424, 0.0
    %1457 = vadd.xlane.f32.xlu0 %v1456
    %v1458 = vpop.xlane.xlu0 %1457
    %v1459 = vsel %vm689, %v1425, 0.0
    %1460 = vadd.xlane.f32.xlu0 %v1459
    %v1461 = vpop.xlane.xlu0 %1460
    %v1462 = vadd.f32 %v1428, %v1239
    %v1463 = vadd.f32 %v1431, %v1242
    %v1464 = vadd.f32 %v1434, %v1247
    %v1465 = vadd.f32 %v1437, %v1250
    %v1466 = vadd.f32 %v1440, %v1255
    %v1467 = vadd.f32 %v1443, %v1258
    %v1468 = vadd.f32 %v1446, %v1263
    %v1469 = vadd.f32 %v1449, %v1266
    %v1470 = vadd.f32 %v1452, %v1271
    %v1471 = vadd.f32 %v1455, %v1274
    %v1472 = vadd.f32 %v1458, %v1279
    %v1473 = vadd.f32 %v1461, %v1282
    %v1474 = vmul.f32 %v1462, 0.2
    %v1475 = vmul.f32 %v1463, 0.2
    %v1476 = vmul.f32 %v1464, 0.2
    %v1477 = vmul.f32 %v1465, 0.2
    %v1478 = vmul.f32 %v1466, 0.2
    %v1479 = vmul.f32 %v1467, 0.2
    %v1480 = vmul.f32 %v1468, 0.2
    %v1481 = vmul.f32 %v1469, 0.2
    %v1482 = vmul.f32 %v1470, 0.2
    %v1483 = vmul.f32 %v1471, 0.2
    %v1484 = vmul.f32 %v1472, 0.2
    %v1485 = vmul.f32 %v1473, 0.2
    %v1486 = vmax.f32 %v1462, %v1474
    %v1487 = vmax.f32 %v1463, %v1475
    %v1488 = vmax.f32 %v1464, %v1476
    %v1489 = vmax.f32 %v1465, %v1477
    %v1490 = vmax.f32 %v1466, %v1478
    %v1491 = vmax.f32 %v1467, %v1479
    %v1492 = vmax.f32 %v1468, %v1480
    %v1493 = vmax.f32 %v1469, %v1481
    %v1494 = vmax.f32 %v1470, %v1482
    %v1495 = vmax.f32 %v1471, %v1483
    %v1496 = vmax.f32 %v1472, %v1484
    %v1497 = vmax.f32 %v1473, %v1485
    %v1498 = vadd.f32 %v1486, %v371
    %v1499 = vadd.f32 %v1487, %v372
    %v1500 = vadd.f32 %v1488, %v373
    %v1501 = vadd.f32 %v1489, %v371
    %v1502 = vadd.f32 %v1490, %v372
    %v1503 = vadd.f32 %v1491, %v373
    %v1504 = vadd.f32 %v1492, %v371
    %v1505 = vadd.f32 %v1493, %v372
    %v1506 = vadd.f32 %v1494, %v373
    %v1507 = vadd.f32 %v1495, %v371
    %v1508 = vadd.f32 %v1496, %v372
    %v1509 = vadd.f32 %v1497, %v373
    %v1510 = vsel %vm689, %v1498, -inf
    %1511 = vmax.xlane.f32.xlu0 %v1510
    %v1512 = vpop.xlane.xlu0 %1511
    %v1513 = vsel %vm689, %v1499, -inf
    %1514 = vmax.xlane.f32.xlu0 %v1513
    %v1515 = vpop.xlane.xlu0 %1514
    %v1516 = vsel %vm689, %v1500, -inf
    %1517 = vmax.xlane.f32.xlu0 %v1516
    %v1518 = vpop.xlane.xlu0 %1517
    %v1519 = vsel %vm689, %v1501, -inf
    %1520 = vmax.xlane.f32.xlu0 %v1519
    %v1521 = vpop.xlane.xlu0 %1520
    %v1522 = vsel %vm689, %v1502, -inf
    %1523 = vmax.xlane.f32.xlu0 %v1522
    %v1524 = vpop.xlane.xlu0 %1523
    %v1525 = vsel %vm689, %v1503, -inf
    %1526 = vmax.xlane.f32.xlu0 %v1525
    %v1527 = vpop.xlane.xlu0 %1526
    %v1528 = vsel %vm689, %v1504, -inf
    %1529 = vmax.xlane.f32.xlu0 %v1528
    %v1530 = vpop.xlane.xlu0 %1529
    %v1531 = vsel %vm689, %v1505, -inf
    %1532 = vmax.xlane.f32.xlu0 %v1531
    %v1533 = vpop.xlane.xlu0 %1532
    %v1534 = vsel %vm689, %v1506, -inf
    %1535 = vmax.xlane.f32.xlu0 %v1534
    %v1536 = vpop.xlane.xlu0 %1535
    %v1537 = vsel %vm689, %v1507, -inf
    %1538 = vmax.xlane.f32.xlu0 %v1537
    %v1539 = vpop.xlane.xlu0 %1538
    %v1540 = vsel %vm689, %v1508, -inf
    %1541 = vmax.xlane.f32.xlu0 %v1540
    %v1542 = vpop.xlane.xlu0 %1541
    %v1543 = vsel %vm689, %v1509, -inf
    %1544 = vmax.xlane.f32.xlu0 %v1543
    %v1545 = vpop.xlane.xlu0 %1544
    %v1546 = vsub.f32 %v1498, %v1512
    %v1547 = vsub.f32 %v1499, %v1515
    %v1548 = vsub.f32 %v1500, %v1518
    %v1549 = vsub.f32 %v1501, %v1521
    %v1550 = vsub.f32 %v1502, %v1524
    %v1551 = vsub.f32 %v1503, %v1527
    %v1552 = vsub.f32 %v1504, %v1530
    %v1553 = vsub.f32 %v1505, %v1533
    %v1554 = vsub.f32 %v1506, %v1536
    %v1555 = vsub.f32 %v1507, %v1539
    %v1556 = vsub.f32 %v1508, %v1542
    %v1557 = vsub.f32 %v1509, %v1545
    %v1558 = vmul.f32 %v1546, 1.442695
    %v1559 = vpow.pop %v1558
    %v1560 = vmul.f32 %v1547, 1.442695
    %v1561 = vpow.pop %v1560
    %v1562 = vmul.f32 %v1548, 1.442695
    %v1563 = vpow.pop %v1562
    %v1564 = vmul.f32 %v1549, 1.442695
    %v1565 = vpow.pop %v1564
    %v1566 = vmul.f32 %v1550, 1.442695
    %v1567 = vpow.pop %v1566
    %v1568 = vmul.f32 %v1551, 1.442695
    %v1569 = vpow.pop %v1568
    %v1570 = vmul.f32 %v1552, 1.442695
    %v1571 = vpow.pop %v1570
    %v1572 = vmul.f32 %v1553, 1.442695
    %v1573 = vpow.pop %v1572
    %v1574 = vmul.f32 %v1554, 1.442695
    %v1575 = vpow.pop %v1574
    %v1576 = vmul.f32 %v1555, 1.442695
    %v1577 = vpow.pop %v1576
    %v1578 = vmul.f32 %v1556, 1.442695
    %v1579 = vpow.pop %v1578
    %v1580 = vmul.f32 %v1557, 1.442695
    %v1581 = vpow.pop %v1580
    %v1582 = vsel %vm689, %v1559, 0.0
    %1583 = vadd.xlane.f32.xlu0 %v1582
    %v1584 = vpop.xlane.xlu0 %1583
    %v1585 = vsel %vm689, %v1561, 0.0
    %1586 = vadd.xlane.f32.xlu0 %v1585
    %v1587 = vpop.xlane.xlu0 %1586
    %v1588 = vsel %vm689, %v1563, 0.0
    %1589 = vadd.xlane.f32.xlu0 %v1588
    %v1590 = vpop.xlane.xlu0 %1589
    %v1591 = vsel %vm689, %v1565, 0.0
    %1592 = vadd.xlane.f32.xlu0 %v1591
    %v1593 = vpop.xlane.xlu0 %1592
    %v1594 = vsel %vm689, %v1567, 0.0
    %1595 = vadd.xlane.f32.xlu0 %v1594
    %v1596 = vpop.xlane.xlu0 %1595
    %v1597 = vsel %vm689, %v1569, 0.0
    %1598 = vadd.xlane.f32.xlu0 %v1597
    %v1599 = vpop.xlane.xlu0 %1598
    %v1600 = vsel %vm689, %v1571, 0.0
    %1601 = vadd.xlane.f32.xlu0 %v1600
    %v1602 = vpop.xlane.xlu0 %1601
    %v1603 = vsel %vm689, %v1573, 0.0
    %1604 = vadd.xlane.f32.xlu0 %v1603
    %v1605 = vpop.xlane.xlu0 %1604
    %v1606 = vsel %vm689, %v1575, 0.0
    %1607 = vadd.xlane.f32.xlu0 %v1606
    %v1608 = vpop.xlane.xlu0 %1607
    %v1609 = vsel %vm689, %v1577, 0.0
    %1610 = vadd.xlane.f32.xlu0 %v1609
    %v1611 = vpop.xlane.xlu0 %1610
    %v1612 = vsel %vm689, %v1579, 0.0
    %1613 = vadd.xlane.f32.xlu0 %v1612
    %v1614 = vpop.xlane.xlu0 %1613
    %v1615 = vsel %vm689, %v1581, 0.0
    %1616 = vadd.xlane.f32.xlu0 %v1615
    %v1617 = vpop.xlane.xlu0 %1616
    %v1618 = vrcp.pop %v1584
    %v1619 = vrcp.pop %v1587
    %v1620 = vrcp.pop %v1590
    %v1621 = vrcp.pop %v1593
    %v1622 = vrcp.pop %v1596
    %v1623 = vrcp.pop %v1599
    %v1624 = vrcp.pop %v1602
    %v1625 = vrcp.pop %v1605
    %v1626 = vrcp.pop %v1608
    %v1627 = vrcp.pop %v1611
    %v1628 = vrcp.pop %v1614
    %v1629 = vrcp.pop %v1617
    %v1630 = vmul.f32 %v1559, %v1618
    %v1631 = vmul.f32 %v1561, %v1619
    %v1632 = vmul.f32 %v1563, %v1620
    %v1633 = vmul.f32 %v1565, %v1621
    %v1634 = vmul.f32 %v1567, %v1622
    %v1635 = vmul.f32 %v1569, %v1623
    %v1636 = vmul.f32 %v1571, %v1624
    %v1637 = vmul.f32 %v1573, %v1625
    %v1638 = vmul.f32 %v1575, %v1626
    %v1639 = vmul.f32 %v1577, %v1627
    %v1640 = vmul.f32 %v1579, %v1628
    %v1641 = vmul.f32 %v1581, %v1629
    %v1642 = vpack.c.bf16 %v1631, %v1630
    %v1643 = vpack.c.bf16 %v1633, %v1632
    %v1644 = vpack.c.bf16 %v1635, %v1634
    %v1645 = vpack.c.bf16 %v1637, %v1636
    %v1646 = vpack.c.bf16 %v1639, %v1638
    %v1647 = vpack.c.bf16 %v1641, %v1640
    %v1649 = vsel %vm689, %v1642, 0
    %v1652 = vsel %vm689, %v1643, 0
    %v1655 = vsel %vm689, %v1644, 0
    %v1658 = vsel %vm689, %v1645, 0
    %v1661 = vsel %vm689, %v1646, 0
    %v1664 = vsel %vm689, %v1647, 0
    %v1666 = vsel %vm151, %v1125, 0
    %1668 = vmatprep.subr.bf16.mxu0 0
    %1669 = vmatpush1.bf16.msra.mxu0 %v1124
    %1670 = vmatprep.subr.bf16.mxu0 0
    %1671 = vmatpush1.bf16.msra.mxu0 %v1666
    %1672 = vmatprep.subr.bf16.mxu0 0
    %1673 = vmatpush1.bf16.msra.mxu0 0
    %1674 = vmatprep.subr.bf16.mxu0 0
    %1675 = vmatpush1.bf16.msra.mxu0 0
    %1676 = vmatprep.subr.bf16.mxu0 0
    %1677 = vmatpush1.bf16.msra.mxu0 0
    %1678 = vmatprep.subr.bf16.mxu0 0
    %1679 = vmatpush1.bf16.msra.mxu0 0
    %1680 = vmatprep.subr.bf16.mxu0 0
    %1681 = vmatpush1.bf16.msra.mxu0 0
    %1682 = vmatprep.subr.bf16.mxu0 0
    %1683 = vmatpush1.bf16.msra.mxu0 0
    %1684 = vmatprep.subr.bf16.mxu0 0
    %1685 = vmatpush1.bf16.msra.mxu0 0
    %1686 = vmatprep.subr.bf16.mxu0 0
    %1687 = vmatpush1.bf16.msra.mxu0 0
    %1688 = vmatprep.subr.bf16.mxu0 0
    %1689 = vmatpush1.bf16.msra.mxu0 0
    %1690 = vmatprep.subr.bf16.mxu0 0
    %1691 = vmatpush1.bf16.msra.mxu0 0
    %1692 = vmatprep.subr.bf16.mxu0 0
    %1693 = vmatpush1.bf16.msra.mxu0 0
    %1694 = vmatprep.subr.bf16.mxu0 0
    %1695 = vmatpush1.bf16.msra.mxu0 0
    %1696 = vmatprep.subr.bf16.mxu0 0
    %1697 = vmatpush1.bf16.msra.mxu0 0
    %1698 = vmatprep.subr.bf16.mxu0 0
    %1699 = vmatpush1.bf16.msra.mxu0 0
    %1700 = vmatprep.mubr.bf16.mxu0 0
    %1701 = vmatmul.mubr.bf16.gmra.mrb[0].mxu0 %v1649
    %v1702 = vpop.f32.mrb[0].mxu0
    %v1703 = vadd.f32 0.0, %v1702
    %v1704 = vpop.f32.mrb[0].mxu0
    %v1705 = vpop.f32.mrb[0].mxu0
    %v1706 = vadd.f32 0.0, %v1705
    %v1707 = vpop.f32.mrb[0].mxu0
    %1708 = vmatprep.mubr.bf16.mxu0 0
    %1709 = vmatmul.mubr.bf16.gmra.mrb[0].mxu0 %v1652
    %v1710 = vpop.f32.mrb[0].mxu0
    %v1711 = vadd.f32 0.0, %v1710
    %v1712 = vpop.f32.mrb[0].mxu0
    %v1713 = vpop.f32.mrb[0].mxu0
    %v1714 = vadd.f32 0.0, %v1713
    %v1715 = vpop.f32.mrb[0].mxu0
    %1716 = vmatprep.mubr.bf16.mxu0 0
    %1717 = vmatmul.mubr.bf16.gmra.mrb[0].mxu0 %v1655
    %v1718 = vpop.f32.mrb[0].mxu0
    %v1719 = vadd.f32 0.0, %v1718
    %v1720 = vpop.f32.mrb[0].mxu0
    %v1721 = vpop.f32.mrb[0].mxu0
    %v1722 = vadd.f32 0.0, %v1721
    %v1723 = vpop.f32.mrb[0].mxu0
    %1724 = vmatprep.mubr.bf16.mxu0 0
    %1725 = vmatmul.mubr.bf16.gmra.mrb[0].mxu0 %v1658
    %v1726 = vpop.f32.mrb[0].mxu0
    %v1727 = vadd.f32 0.0, %v1726
    %v1728 = vpop.f32.mrb[0].mxu0
    %v1729 = vpop.f32.mrb[0].mxu0
    %v1730 = vadd.f32 0.0, %v1729
    %v1731 = vpop.f32.mrb[0].mxu0
    %1732 = vmatprep.mubr.bf16.mxu0 0
    %1733 = vmatmul.mubr.bf16.gmra.mrb[0].mxu0 %v1661
    %v1734 = vpop.f32.mrb[0].mxu0
    %v1735 = vadd.f32 0.0, %v1734
    %v1736 = vpop.f32.mrb[0].mxu0
    %v1737 = vpop.f32.mrb[0].mxu0
    %v1738 = vadd.f32 0.0, %v1737
    %v1739 = vpop.f32.mrb[0].mxu0
    %1740 = vmatprep.mubr.bf16.mxu0 0
    %1741 = vmatmul.mubr.bf16.gmra.mrb[0].mxu0 %v1664
    %v1742 = vpop.f32.mrb[0].mxu0
    %v1743 = vadd.f32 0.0, %v1742
    %v1744 = vpop.f32.mrb[0].mxu0
    %v1745 = vpop.f32.mrb[0].mxu0
    %v1746 = vadd.f32 0.0, %v1745
    %v1747 = vpop.f32.mrb[0].mxu0
    %1748 = vdwg.mxu0
    %v1749 = vsel %vm1014, %v1703, 0.0
    %v1750 = vsel %vm1014, %v1706, 0.0
    %v1751 = vsel %vm1014, %v1711, 0.0
    %v1752 = vadd.f32 %v1749, 0.0
    %v1753 = vadd.f32 %v1750, 0.0
    %v1754 = vadd.f32 %v1751, 0.0
    %v1755 = vsel %vm1022, %v1714, 0.0
    %v1756 = vsel %vm1022, %v1719, 0.0
    %v1757 = vsel %vm1022, %v1722, 0.0
    %v1758 = vadd.f32 %v1752, %v1755
    %v1759 = vadd.f32 %v1753, %v1756
    %v1760 = vadd.f32 %v1754, %v1757
    %v1761 = vsel %vm1030, %v1727, 0.0
    %v1762 = vsel %vm1030, %v1730, 0.0
    %v1763 = vsel %vm1030, %v1735, 0.0
    %v1764 = vadd.f32 %v1758, %v1761
    %v1765 = vadd.f32 %v1759, %v1762
    %v1766 = vadd.f32 %v1760, %v1763
    %v1767 = vsel %vm1038, %v1738, 0.0
    %v1768 = vsel %vm1038, %v1743, 0.0
    %v1769 = vsel %vm1038, %v1746, 0.0
    %v1770 = vadd.f32 %v1764, %v1767
    %v1771 = vadd.f32 %v1765, %v1768
    %v1772 = vadd.f32 %v1766, %v1769
    %v1773 = vld [vmem:[%s6 + $0x1] sm:$0x1]
    %v1774 = vlaneseq
    %v1775 = vshrl.u32 %v1774, 7
    %v1776 = vsub.s32 0, %v1775
    %v1777 = vrot.slane %v1773, %v1776
    %v1778 = vadd.f32 %v1770, %v1777
    %v1779 = vadd.f32 %v1771, %v1777
    %v1780 = vadd.f32 %v1772, %v1777
    %v1781 = vmax.f32 %v1778, 0.0
    %v1782 = vmax.f32 %v1779, 0.0
    %v1783 = vmax.f32 %v1780, 0.0
    %s1784 = scalar_lea.vmem %s4, 208
    %v1785 = vld [vmem:[%s1784] sm:$0xf]
    %v1786 = vld [vmem:[%s1784 + $0x4] sm:$0x3]
    %v1787 = vpack.c.bf16 %v1782, %v1781
    %v1788 = vpack.c.bf16 %v1783, %v1783
    %v1791 = vunpack.c.l.b16 %v1785
    %v1792 = vunpack.c.l.b16 %v1786
    %v1793 = vpack.c.b16 %v1792, %v1791
    %v1795 = vsel %vm442, %v1787, 0
    %v1798 = vsel %vm442, %v1788, 0
    %v1801 = vsel %vm1072, %v1793, 0
    %1803 = vmatprep.subr.bf16.mxu0 0
    %1804 = vmatpush1.bf16.msra.mxu0 %v1801
    %1805 = vmatprep.subr.bf16.mxu0 0
    %1806 = vmatpush1.bf16.msra.mxu0 0
    %1807 = vmatprep.subr.bf16.mxu0 0
    %1808 = vmatpush1.bf16.msra.mxu0 0
    %1809 = vmatprep.subr.bf16.mxu0 0
    %1810 = vmatpush1.bf16.msra.mxu0 0
    %1811 = vmatprep.subr.bf16.mxu0 0
    %1812 = vmatpush1.bf16.msra.mxu0 0
    %1813 = vmatprep.subr.bf16.mxu0 0
    %1814 = vmatpush1.bf16.msra.mxu0 0
    %1815 = vmatprep.subr.bf16.mxu0 0
    %1816 = vmatpush1.bf16.msra.mxu0 0
    %1817 = vmatprep.subr.bf16.mxu0 0
    %1818 = vmatpush1.bf16.msra.mxu0 0
    %1819 = vmatprep.subr.bf16.mxu0 0
    %1820 = vmatpush1.bf16.msra.mxu0 0
    %1821 = vmatprep.subr.bf16.mxu0 0
    %1822 = vmatpush1.bf16.msra.mxu0 0
    %1823 = vmatprep.subr.bf16.mxu0 0
    %1824 = vmatpush1.bf16.msra.mxu0 0
    %1825 = vmatprep.subr.bf16.mxu0 0
    %1826 = vmatpush1.bf16.msra.mxu0 0
    %1827 = vmatprep.subr.bf16.mxu0 0
    %1828 = vmatpush1.bf16.msra.mxu0 0
    %1829 = vmatprep.subr.bf16.mxu0 0
    %1830 = vmatpush1.bf16.msra.mxu0 0
    %1831 = vmatprep.subr.bf16.mxu0 0
    %1832 = vmatpush1.bf16.msra.mxu0 0
    %1833 = vmatprep.subr.bf16.mxu0 0
    %1834 = vmatpush1.bf16.msra.mxu0 0
    %1835 = vmatprep.mubr.bf16.mxu0 0
    %1836 = vmatmul.mubr.bf16.gmra.mrb[0].mxu0 %v1795
    %v1837 = vpop.f32.mrb[0].mxu0
    %v1838 = vadd.f32 0.0, %v1837
    %v1839 = vpop.f32.mrb[0].mxu0
    %v1840 = vpop.f32.mrb[0].mxu0
    %v1841 = vadd.f32 0.0, %v1840
    %v1842 = vpop.f32.mrb[0].mxu0
    %1843 = vmatprep.mubr.bf16.mxu0 0
    %1844 = vmatmul.mubr.bf16.gmra.mrb[0].mxu0 %v1798
    %v1845 = vpop.f32.mrb[0].mxu0
    %v1846 = vadd.f32 0.0, %v1845
    %v1847 = vpop.f32.mrb[0].mxu0
    %v1848 = vpop.f32.mrb[0].mxu0
    %v1849 = vpop.f32.mrb[0].mxu0
    %1850 = vdwg.mxu0
    %v1851 = vpack.c.bf16 %v1841, %v1838
    %v1852 = vpack.c.bf16 %v1846, %v1846
    %v1853 = vld [vmem:[%s1784 + $0x8] sm:$0xf]
    %v1854 = vld [vmem:[%s1784 + $0xc] sm:$0xf]
    %v1855 = vld [vmem:[%s1784 + $0x10] sm:$0xf]
    %v1856 = vld [vmem:[%s1784 + $0x14] sm:$0xf]
    %v1857 = vld [vmem:[%s1784 + $0x18] sm:$0xf]
    %v1858 = vld [vmem:[%s1784 + $0x1c] sm:$0xf]
    %v1859 = vld [vmem:[%s1784 + $0x20] sm:$0xf]
    %v1860 = vld [vmem:[%s1784 + $0x24] sm:$0xf]
    %v1861 = vld [vmem:[%s1784 + $0x28] sm:$0xf]
    %v1862 = vld [vmem:[%s1784 + $0x2c] sm:$0xf]
    %v1863 = vld [vmem:[%s1784 + $0x30] sm:$0xf]
    %v1864 = vld [vmem:[%s1784 + $0x34] sm:$0xf]
    %v1865 = vld [vmem:[%s1784 + $0x38] sm:$0xf]
    %v1866 = vld [vmem:[%s1784 + $0x3c] sm:$0xf]
    %v1867 = vld [vmem:[%s1784 + $0x40] sm:$0xf]
    %v1868 = vld [vmem:[%s1784 + $0x44] sm:$0xf]
    %v1869 = vld [vmem:[%s1784 + $0x48] sm:$0xf]
    %v1870 = vld [vmem:[%s1784 + $0x4c] sm:$0xf]
    %v1871 = vld [vmem:[%s1784 + $0x50] sm:$0xf]
    %v1872 = vld [vmem:[%s1784 + $0x54] sm:$0xf]
    %v1873 = vld [vmem:[%s1784 + $0x58] sm:$0xf]
    %v1874 = vld [vmem:[%s1784 + $0x5c] sm:$0xf]
    %v1875 = vld [vmem:[%s1784 + $0x60] sm:$0xf]
    %v1876 = vld [vmem:[%s1784 + $0x64] sm:$0xf]
    %v1889 = vunpack.c.l.b16 %v1853
    %v1890 = vunpack.c.l.b16 %v1854
    %v1891 = vunpack.c.l.b16 %v1855
    %v1892 = vunpack.c.l.b16 %v1856
    %v1893 = vunpack.c.l.b16 %v1857
    %v1894 = vunpack.c.l.b16 %v1858
    %v1895 = vunpack.c.l.b16 %v1859
    %v1896 = vunpack.c.l.b16 %v1860
    %v1897 = vunpack.c.l.b16 %v1861
    %v1898 = vunpack.c.l.b16 %v1862
    %v1899 = vunpack.c.l.b16 %v1863
    %v1900 = vunpack.c.l.b16 %v1864
    %v1901 = vpack.c.b16 %v1890, %v1889
    %v1902 = vpack.c.b16 %v1892, %v1891
    %v1903 = vpack.c.b16 %v1894, %v1893
    %v1904 = vpack.c.b16 %v1896, %v1895
    %v1905 = vpack.c.b16 %v1898, %v1897
    %v1906 = vpack.c.b16 %v1900, %v1899
    %v1908 = vsel %vm442, %v1901, 0
    %v1911 = vsel %vm442, %v1902, 0
    %v1914 = vsel %vm442, %v1903, 0
    %v1917 = vsel %vm442, %v1904, 0
    %v1920 = vsel %vm442, %v1905, 0
    %v1923 = vsel %vm442, %v1906, 0
    %v1926 = vsel %vm442, %v1851, 0
    %v1929 = vsel %vm442, %v1852, 0
    %1931 = vmatprep.subr.bf16.mxu0 0
    %1932 = vmatpush1.bf16.xpose.msra.mxu0 %v1926
    %1933 = vmatprep.subr.bf16.mxu0 0
    %1934 = vmatpush1.bf16.xpose.msra.mxu0 %v1929
    %1935 = vmatprep.subr.bf16.mxu0 0
    %1936 = vmatpush1.bf16.xpose.msra.mxu0 0
    %1937 = vmatprep.subr.bf16.mxu0 0
    %1938 = vmatpush1.bf16.xpose.msra.mxu0 0
    %1939 = vmatprep.subr.bf16.mxu0 0
    %1940 = vmatpush1.bf16.xpose.msra.mxu0 0
    %1941 = vmatprep.subr.bf16.mxu0 0
    %1942 = vmatpush1.bf16.xpose.msra.mxu0 0
    %1943 = vmatprep.subr.bf16.mxu0 0
    %1944 = vmatpush1.bf16.xpose.msra.mxu0 0
    %1945 = vmatprep.subr.bf16.mxu0 0
    %1946 = vmatpush1.bf16.xpose.msra.mxu0 0
    %1947 = vmatprep.subr.bf16.mxu0 0
    %1948 = vmatpush1.bf16.xpose.msra.mxu0 0
    %1949 = vmatprep.subr.bf16.mxu0 0
    %1950 = vmatpush1.bf16.xpose.msra.mxu0 0
    %1951 = vmatprep.subr.bf16.mxu0 0
    %1952 = vmatpush1.bf16.xpose.msra.mxu0 0
    %1953 = vmatprep.subr.bf16.mxu0 0
    %1954 = vmatpush1.bf16.xpose.msra.mxu0 0
    %1955 = vmatprep.subr.bf16.mxu0 0
    %1956 = vmatpush1.bf16.xpose.msra.mxu0 0
    %1957 = vmatprep.subr.bf16.mxu0 0
    %1958 = vmatpush1.bf16.xpose.msra.mxu0 0
    %1959 = vmatprep.subr.bf16.mxu0 0
    %1960 = vmatpush1.bf16.xpose.msra.mxu0 0
    %1961 = vmatprep.subr.bf16.mxu0 0
    %1962 = vmatpush1.bf16.xpose.msra.mxu0 0
    %1963 = vmatprep.mubr.bf16.mxu0 0
    %1964 = vmatmul.mubr.bf16.gmra.mrb[0].mxu0 %v1908
    %v1965 = vpop.f32.mrb[0].mxu0
    %v1966 = vadd.f32 0.0, %v1965
    %v1967 = vpop.f32.mrb[0].mxu0
    %v1968 = vpop.f32.mrb[0].mxu0
    %v1969 = vadd.f32 0.0, %v1968
    %v1970 = vpop.f32.mrb[0].mxu0
    %1971 = vmatprep.mubr.bf16.mxu0 0
    %1972 = vmatmul.mubr.bf16.gmra.mrb[0].mxu0 %v1911
    %v1973 = vpop.f32.mrb[0].mxu0
    %v1974 = vadd.f32 0.0, %v1973
    %v1975 = vpop.f32.mrb[0].mxu0
    %v1976 = vpop.f32.mrb[0].mxu0
    %v1977 = vadd.f32 0.0, %v1976
    %v1978 = vpop.f32.mrb[0].mxu0
    %1979 = vmatprep.mubr.bf16.mxu0 0
    %1980 = vmatmul.mubr.bf16.gmra.mrb[0].mxu0 %v1914
    %v1981 = vpop.f32.mrb[0].mxu0
    %v1982 = vadd.f32 0.0, %v1981
    %v1983 = vpop.f32.mrb[0].mxu0
    %v1984 = vpop.f32.mrb[0].mxu0
    %v1985 = vadd.f32 0.0, %v1984
    %v1986 = vpop.f32.mrb[0].mxu0
    %1987 = vmatprep.mubr.bf16.mxu0 0
    %1988 = vmatmul.mubr.bf16.gmra.mrb[0].mxu0 %v1917
    %v1989 = vpop.f32.mrb[0].mxu0
    %v1990 = vadd.f32 0.0, %v1989
    %v1991 = vpop.f32.mrb[0].mxu0
    %v1992 = vpop.f32.mrb[0].mxu0
    %v1993 = vadd.f32 0.0, %v1992
    %v1994 = vpop.f32.mrb[0].mxu0
    %1995 = vmatprep.mubr.bf16.mxu0 0
    %1996 = vmatmul.mubr.bf16.gmra.mrb[0].mxu0 %v1920
    %v1997 = vpop.f32.mrb[0].mxu0
    %v1998 = vadd.f32 0.0, %v1997
    %v1999 = vpop.f32.mrb[0].mxu0
    %v2000 = vpop.f32.mrb[0].mxu0
    %v2001 = vadd.f32 0.0, %v2000
    %v2002 = vpop.f32.mrb[0].mxu0
    %2003 = vmatprep.mubr.bf16.mxu0 0
    %2004 = vmatmul.mubr.bf16.gmra.mrb[0].mxu0 %v1923
    %v2005 = vpop.f32.mrb[0].mxu0
    %v2006 = vadd.f32 0.0, %v2005
    %v2007 = vpop.f32.mrb[0].mxu0
    %v2008 = vpop.f32.mrb[0].mxu0
    %v2009 = vadd.f32 0.0, %v2008
    %v2010 = vpop.f32.mrb[0].mxu0
    %2011 = vdwg.mxu0
    %v2024 = vunpack.c.l.b16 %v1865
    %v2025 = vunpack.c.l.b16 %v1866
    %v2026 = vunpack.c.l.b16 %v1867
    %v2027 = vunpack.c.l.b16 %v1868
    %v2028 = vunpack.c.l.b16 %v1869
    %v2029 = vunpack.c.l.b16 %v1870
    %v2030 = vunpack.c.l.b16 %v1871
    %v2031 = vunpack.c.l.b16 %v1872
    %v2032 = vunpack.c.l.b16 %v1873
    %v2033 = vunpack.c.l.b16 %v1874
    %v2034 = vunpack.c.l.b16 %v1875
    %v2035 = vunpack.c.l.b16 %v1876
    %v2036 = vpack.c.b16 %v2025, %v2024
    %v2037 = vpack.c.b16 %v2027, %v2026
    %v2038 = vpack.c.b16 %v2029, %v2028
    %v2039 = vpack.c.b16 %v2031, %v2030
    %v2040 = vpack.c.b16 %v2033, %v2032
    %v2041 = vpack.c.b16 %v2035, %v2034
    %v2043 = vsel %vm442, %v2036, 0
    %v2046 = vsel %vm442, %v2037, 0
    %v2049 = vsel %vm442, %v2038, 0
    %v2052 = vsel %vm442, %v2039, 0
    %v2055 = vsel %vm442, %v2040, 0
    %v2058 = vsel %vm442, %v2041, 0
    %2060 = vmatprep.subr.bf16.mxu0 0
    %2061 = vmatpush1.bf16.xpose.msra.mxu0 %v1926
    %2062 = vmatprep.subr.bf16.mxu0 0
    %2063 = vmatpush1.bf16.xpose.msra.mxu0 %v1929
    %2064 = vmatprep.subr.bf16.mxu0 0
    %2065 = vmatpush1.bf16.xpose.msra.mxu0 0
    %2066 = vmatprep.subr.bf16.mxu0 0
    %2067 = vmatpush1.bf16.xpose.msra.mxu0 0
    %2068 = vmatprep.subr.bf16.mxu0 0
    %2069 = vmatpush1.bf16.xpose.msra.mxu0 0
    %2070 = vmatprep.subr.bf16.mxu0 0
    %2071 = vmatpush1.bf16.xpose.msra.mxu0 0
    %2072 = vmatprep.subr.bf16.mxu0 0
    %2073 = vmatpush1.bf16.xpose.msra.mxu0 0
    %2074 = vmatprep.subr.bf16.mxu0 0
    %2075 = vmatpush1.bf16.xpose.msra.mxu0 0
    %2076 = vmatprep.subr.bf16.mxu0 0
    %2077 = vmatpush1.bf16.xpose.msra.mxu0 0
    %2078 = vmatprep.subr.bf16.mxu0 0
    %2079 = vmatpush1.bf16.xpose.msra.mxu0 0
    %2080 = vmatprep.subr.bf16.mxu0 0
    %2081 = vmatpush1.bf16.xpose.msra.mxu0 0
    %2082 = vmatprep.subr.bf16.mxu0 0
    %2083 = vmatpush1.bf16.xpose.msra.mxu0 0
    %2084 = vmatprep.subr.bf16.mxu0 0
    %2085 = vmatpush1.bf16.xpose.msra.mxu0 0
    %2086 = vmatprep.subr.bf16.mxu0 0
    %2087 = vmatpush1.bf16.xpose.msra.mxu0 0
    %2088 = vmatprep.subr.bf16.mxu0 0
    %2089 = vmatpush1.bf16.xpose.msra.mxu0 0
    %2090 = vmatprep.subr.bf16.mxu0 0
    %2091 = vmatpush1.bf16.xpose.msra.mxu0 0
    %2092 = vmatprep.mubr.bf16.mxu0 0
    %2093 = vmatmul.mubr.bf16.gmra.mrb[0].mxu0 %v2043
    %v2094 = vpop.f32.mrb[0].mxu0
    %v2095 = vadd.f32 0.0, %v2094
    %v2096 = vpop.f32.mrb[0].mxu0
    %v2097 = vpop.f32.mrb[0].mxu0
    %v2098 = vadd.f32 0.0, %v2097
    %v2099 = vpop.f32.mrb[0].mxu0
    %2100 = vmatprep.mubr.bf16.mxu0 0
    %2101 = vmatmul.mubr.bf16.gmra.mrb[0].mxu0 %v2046
    %v2102 = vpop.f32.mrb[0].mxu0
    %v2103 = vadd.f32 0.0, %v2102
    %v2104 = vpop.f32.mrb[0].mxu0
    %v2105 = vpop.f32.mrb[0].mxu0
    %v2106 = vadd.f32 0.0, %v2105
    %v2107 = vpop.f32.mrb[0].mxu0
    %2108 = vmatprep.mubr.bf16.mxu0 0
    %2109 = vmatmul.mubr.bf16.gmra.mrb[0].mxu0 %v2049
    %v2110 = vpop.f32.mrb[0].mxu0
    %v2111 = vadd.f32 0.0, %v2110
    %v2112 = vpop.f32.mrb[0].mxu0
    %v2113 = vpop.f32.mrb[0].mxu0
    %v2114 = vadd.f32 0.0, %v2113
    %v2115 = vpop.f32.mrb[0].mxu0
    %2116 = vmatprep.mubr.bf16.mxu0 0
    %2117 = vmatmul.mubr.bf16.gmra.mrb[0].mxu0 %v2052
    %v2118 = vpop.f32.mrb[0].mxu0
    %v2119 = vadd.f32 0.0, %v2118
    %v2120 = vpop.f32.mrb[0].mxu0
    %v2121 = vpop.f32.mrb[0].mxu0
    %v2122 = vadd.f32 0.0, %v2121
    %v2123 = vpop.f32.mrb[0].mxu0
    %2124 = vmatprep.mubr.bf16.mxu0 0
    %2125 = vmatmul.mubr.bf16.gmra.mrb[0].mxu0 %v2055
    %v2126 = vpop.f32.mrb[0].mxu0
    %v2127 = vadd.f32 0.0, %v2126
    %v2128 = vpop.f32.mrb[0].mxu0
    %v2129 = vpop.f32.mrb[0].mxu0
    %v2130 = vadd.f32 0.0, %v2129
    %v2131 = vpop.f32.mrb[0].mxu0
    %2132 = vmatprep.mubr.bf16.mxu0 0
    %2133 = vmatmul.mubr.bf16.gmra.mrb[0].mxu0 %v2058
    %v2134 = vpop.f32.mrb[0].mxu0
    %v2135 = vadd.f32 0.0, %v2134
    %v2136 = vpop.f32.mrb[0].mxu0
    %v2137 = vpop.f32.mrb[0].mxu0
    %v2138 = vadd.f32 0.0, %v2137
    %v2139 = vpop.f32.mrb[0].mxu0
    %2140 = vdwg.mxu0
    %v2141 = vmul.f32 %v2095, %v359
    %v2142 = vmul.f32 %v2098, %v360
    %v2143 = vmul.f32 %v2103, %v361
    %v2144 = vmul.f32 %v2106, %v359
    %v2145 = vmul.f32 %v2111, %v360
    %v2146 = vmul.f32 %v2114, %v361
    %v2147 = vmul.f32 %v2119, %v359
    %v2148 = vmul.f32 %v2122, %v360
    %v2149 = vmul.f32 %v2127, %v361
    %v2150 = vmul.f32 %v2130, %v359
    %v2151 = vmul.f32 %v2135, %v360
    %v2152 = vmul.f32 %v2138, %v361
    %v2153 = vsel %vm689, %v2141, 0.0
    %2154 = vadd.xlane.f32.xlu0 %v2153
    %v2155 = vpop.xlane.xlu0 %2154
    %v2156 = vsel %vm689, %v2142, 0.0
    %2157 = vadd.xlane.f32.xlu0 %v2156
    %v2158 = vpop.xlane.xlu0 %2157
    %v2159 = vsel %vm689, %v2143, 0.0
    %2160 = vadd.xlane.f32.xlu0 %v2159
    %v2161 = vpop.xlane.xlu0 %2160
    %v2162 = vsel %vm689, %v2144, 0.0
    %2163 = vadd.xlane.f32.xlu0 %v2162
    %v2164 = vpop.xlane.xlu0 %2163
    %v2165 = vsel %vm689, %v2145, 0.0
    %2166 = vadd.xlane.f32.xlu0 %v2165
    %v2167 = vpop.xlane.xlu0 %2166
    %v2168 = vsel %vm689, %v2146, 0.0
    %2169 = vadd.xlane.f32.xlu0 %v2168
    %v2170 = vpop.xlane.xlu0 %2169
    %v2171 = vsel %vm689, %v2147, 0.0
    %2172 = vadd.xlane.f32.xlu0 %v2171
    %v2173 = vpop.xlane.xlu0 %2172
    %v2174 = vsel %vm689, %v2148, 0.0
    %2175 = vadd.xlane.f32.xlu0 %v2174
    %v2176 = vpop.xlane.xlu0 %2175
    %v2177 = vsel %vm689, %v2149, 0.0
    %2178 = vadd.xlane.f32.xlu0 %v2177
    %v2179 = vpop.xlane.xlu0 %2178
    %v2180 = vsel %vm689, %v2150, 0.0
    %2181 = vadd.xlane.f32.xlu0 %v2180
    %v2182 = vpop.xlane.xlu0 %2181
    %v2183 = vsel %vm689, %v2151, 0.0
    %2184 = vadd.xlane.f32.xlu0 %v2183
    %v2185 = vpop.xlane.xlu0 %2184
    %v2186 = vsel %vm689, %v2152, 0.0
    %2187 = vadd.xlane.f32.xlu0 %v2186
    %v2188 = vpop.xlane.xlu0 %2187
    %v2189 = vadd.f32 %v2155, %v1966
    %v2190 = vadd.f32 %v2158, %v1969
    %v2191 = vadd.f32 %v2161, %v1974
    %v2192 = vadd.f32 %v2164, %v1977
    %v2193 = vadd.f32 %v2167, %v1982
    %v2194 = vadd.f32 %v2170, %v1985
    %v2195 = vadd.f32 %v2173, %v1990
    %v2196 = vadd.f32 %v2176, %v1993
    %v2197 = vadd.f32 %v2179, %v1998
    %v2198 = vadd.f32 %v2182, %v2001
    %v2199 = vadd.f32 %v2185, %v2006
    %v2200 = vadd.f32 %v2188, %v2009
    %v2201 = vmul.f32 %v2189, 0.2
    %v2202 = vmul.f32 %v2190, 0.2
    %v2203 = vmul.f32 %v2191, 0.2
    %v2204 = vmul.f32 %v2192, 0.2
    %v2205 = vmul.f32 %v2193, 0.2
    %v2206 = vmul.f32 %v2194, 0.2
    %v2207 = vmul.f32 %v2195, 0.2
    %v2208 = vmul.f32 %v2196, 0.2
    %v2209 = vmul.f32 %v2197, 0.2
    %v2210 = vmul.f32 %v2198, 0.2
    %v2211 = vmul.f32 %v2199, 0.2
    %v2212 = vmul.f32 %v2200, 0.2
    %v2213 = vmax.f32 %v2189, %v2201
    %v2214 = vmax.f32 %v2190, %v2202
    %v2215 = vmax.f32 %v2191, %v2203
    %v2216 = vmax.f32 %v2192, %v2204
    %v2217 = vmax.f32 %v2193, %v2205
    %v2218 = vmax.f32 %v2194, %v2206
    %v2219 = vmax.f32 %v2195, %v2207
    %v2220 = vmax.f32 %v2196, %v2208
    %v2221 = vmax.f32 %v2197, %v2209
    %v2222 = vmax.f32 %v2198, %v2210
    %v2223 = vmax.f32 %v2199, %v2211
    %v2224 = vmax.f32 %v2200, %v2212
    %v2225 = vadd.f32 %v2213, %v371
    %v2226 = vadd.f32 %v2214, %v372
    %v2227 = vadd.f32 %v2215, %v373
    %v2228 = vadd.f32 %v2216, %v371
    %v2229 = vadd.f32 %v2217, %v372
    %v2230 = vadd.f32 %v2218, %v373
    %v2231 = vadd.f32 %v2219, %v371
    %v2232 = vadd.f32 %v2220, %v372
    %v2233 = vadd.f32 %v2221, %v373
    %v2234 = vadd.f32 %v2222, %v371
    %v2235 = vadd.f32 %v2223, %v372
    %v2236 = vadd.f32 %v2224, %v373
    %v2237 = vsel %vm689, %v2225, -inf
    %2238 = vmax.xlane.f32.xlu0 %v2237
    %v2239 = vpop.xlane.xlu0 %2238
    %v2240 = vsel %vm689, %v2226, -inf
    %2241 = vmax.xlane.f32.xlu0 %v2240
    %v2242 = vpop.xlane.xlu0 %2241
    %v2243 = vsel %vm689, %v2227, -inf
    %2244 = vmax.xlane.f32.xlu0 %v2243
    %v2245 = vpop.xlane.xlu0 %2244
    %v2246 = vsel %vm689, %v2228, -inf
    %2247 = vmax.xlane.f32.xlu0 %v2246
    %v2248 = vpop.xlane.xlu0 %2247
    %v2249 = vsel %vm689, %v2229, -inf
    %2250 = vmax.xlane.f32.xlu0 %v2249
    %v2251 = vpop.xlane.xlu0 %2250
    %v2252 = vsel %vm689, %v2230, -inf
    %2253 = vmax.xlane.f32.xlu0 %v2252
    %v2254 = vpop.xlane.xlu0 %2253
    %v2255 = vsel %vm689, %v2231, -inf
    %2256 = vmax.xlane.f32.xlu0 %v2255
    %v2257 = vpop.xlane.xlu0 %2256
    %v2258 = vsel %vm689, %v2232, -inf
    %2259 = vmax.xlane.f32.xlu0 %v2258
    %v2260 = vpop.xlane.xlu0 %2259
    %v2261 = vsel %vm689, %v2233, -inf
    %2262 = vmax.xlane.f32.xlu0 %v2261
    %v2263 = vpop.xlane.xlu0 %2262
    %v2264 = vsel %vm689, %v2234, -inf
    %2265 = vmax.xlane.f32.xlu0 %v2264
    %v2266 = vpop.xlane.xlu0 %2265
    %v2267 = vsel %vm689, %v2235, -inf
    %2268 = vmax.xlane.f32.xlu0 %v2267
    %v2269 = vpop.xlane.xlu0 %2268
    %v2270 = vsel %vm689, %v2236, -inf
    %2271 = vmax.xlane.f32.xlu0 %v2270
    %v2272 = vpop.xlane.xlu0 %2271
    %v2273 = vsub.f32 %v2225, %v2239
    %v2274 = vsub.f32 %v2226, %v2242
    %v2275 = vsub.f32 %v2227, %v2245
    %v2276 = vsub.f32 %v2228, %v2248
    %v2277 = vsub.f32 %v2229, %v2251
    %v2278 = vsub.f32 %v2230, %v2254
    %v2279 = vsub.f32 %v2231, %v2257
    %v2280 = vsub.f32 %v2232, %v2260
    %v2281 = vsub.f32 %v2233, %v2263
    %v2282 = vsub.f32 %v2234, %v2266
    %v2283 = vsub.f32 %v2235, %v2269
    %v2284 = vsub.f32 %v2236, %v2272
    %v2285 = vmul.f32 %v2273, 1.442695
    %v2286 = vpow.pop %v2285
    %v2287 = vmul.f32 %v2274, 1.442695
    %v2288 = vpow.pop %v2287
    %v2289 = vmul.f32 %v2275, 1.442695
    %v2290 = vpow.pop %v2289
    %v2291 = vmul.f32 %v2276, 1.442695
    %v2292 = vpow.pop %v2291
    %v2293 = vmul.f32 %v2277, 1.442695
    %v2294 = vpow.pop %v2293
    %v2295 = vmul.f32 %v2278, 1.442695
    %v2296 = vpow.pop %v2295
    %v2297 = vmul.f32 %v2279, 1.442695
    %v2298 = vpow.pop %v2297
    %v2299 = vmul.f32 %v2280, 1.442695
    %v2300 = vpow.pop %v2299
    %v2301 = vmul.f32 %v2281, 1.442695
    %v2302 = vpow.pop %v2301
    %v2303 = vmul.f32 %v2282, 1.442695
    %v2304 = vpow.pop %v2303
    %v2305 = vmul.f32 %v2283, 1.442695
    %v2306 = vpow.pop %v2305
    %v2307 = vmul.f32 %v2284, 1.442695
    %v2308 = vpow.pop %v2307
    %v2309 = vsel %vm689, %v2286, 0.0
    %2310 = vadd.xlane.f32.xlu0 %v2309
    %v2311 = vpop.xlane.xlu0 %2310
    %v2312 = vsel %vm689, %v2288, 0.0
    %2313 = vadd.xlane.f32.xlu0 %v2312
    %v2314 = vpop.xlane.xlu0 %2313
    %v2315 = vsel %vm689, %v2290, 0.0
    %2316 = vadd.xlane.f32.xlu0 %v2315
    %v2317 = vpop.xlane.xlu0 %2316
    %v2318 = vsel %vm689, %v2292, 0.0
    %2319 = vadd.xlane.f32.xlu0 %v2318
    %v2320 = vpop.xlane.xlu0 %2319
    %v2321 = vsel %vm689, %v2294, 0.0
    %2322 = vadd.xlane.f32.xlu0 %v2321
    %v2323 = vpop.xlane.xlu0 %2322
    %v2324 = vsel %vm689, %v2296, 0.0
    %2325 = vadd.xlane.f32.xlu0 %v2324
    %v2326 = vpop.xlane.xlu0 %2325
    %v2327 = vsel %vm689, %v2298, 0.0
    %2328 = vadd.xlane.f32.xlu0 %v2327
    %v2329 = vpop.xlane.xlu0 %2328
    %v2330 = vsel %vm689, %v2300, 0.0
    %2331 = vadd.xlane.f32.xlu0 %v2330
    %v2332 = vpop.xlane.xlu0 %2331
    %v2333 = vsel %vm689, %v2302, 0.0
    %2334 = vadd.xlane.f32.xlu0 %v2333
    %v2335 = vpop.xlane.xlu0 %2334
    %v2336 = vsel %vm689, %v2304, 0.0
    %2337 = vadd.xlane.f32.xlu0 %v2336
    %v2338 = vpop.xlane.xlu0 %2337
    %v2339 = vsel %vm689, %v2306, 0.0
    %2340 = vadd.xlane.f32.xlu0 %v2339
    %v2341 = vpop.xlane.xlu0 %2340
    %v2342 = vsel %vm689, %v2308, 0.0
    %2343 = vadd.xlane.f32.xlu0 %v2342
    %v2344 = vpop.xlane.xlu0 %2343
    %v2345 = vrcp.pop %v2311
    %v2346 = vrcp.pop %v2314
    %v2347 = vrcp.pop %v2317
    %v2348 = vrcp.pop %v2320
    %v2349 = vrcp.pop %v2323
    %v2350 = vrcp.pop %v2326
    %v2351 = vrcp.pop %v2329
    %v2352 = vrcp.pop %v2332
    %v2353 = vrcp.pop %v2335
    %v2354 = vrcp.pop %v2338
    %v2355 = vrcp.pop %v2341
    %v2356 = vrcp.pop %v2344
    %v2357 = vmul.f32 %v2286, %v2345
    %v2358 = vmul.f32 %v2288, %v2346
    %v2359 = vmul.f32 %v2290, %v2347
    %v2360 = vmul.f32 %v2292, %v2348
    %v2361 = vmul.f32 %v2294, %v2349
    %v2362 = vmul.f32 %v2296, %v2350
    %v2363 = vmul.f32 %v2298, %v2351
    %v2364 = vmul.f32 %v2300, %v2352
    %v2365 = vmul.f32 %v2302, %v2353
    %v2366 = vmul.f32 %v2304, %v2354
    %v2367 = vmul.f32 %v2306, %v2355
    %v2368 = vmul.f32 %v2308, %v2356
    %v2369 = vpack.c.bf16 %v2358, %v2357
    %v2370 = vpack.c.bf16 %v2360, %v2359
    %v2371 = vpack.c.bf16 %v2362, %v2361
    %v2372 = vpack.c.bf16 %v2364, %v2363
    %v2373 = vpack.c.bf16 %v2366, %v2365
    %v2374 = vpack.c.bf16 %v2368, %v2367
    %v2376 = vsel %vm689, %v2369, 0
    %v2379 = vsel %vm689, %v2370, 0
    %v2382 = vsel %vm689, %v2371, 0
    %v2385 = vsel %vm689, %v2372, 0
    %v2388 = vsel %vm689, %v2373, 0
    %v2391 = vsel %vm689, %v2374, 0
    %v2393 = vsel %vm151, %v1852, 0
    %2395 = vmatprep.subr.bf16.mxu0 0
    %2396 = vmatpush1.bf16.msra.mxu0 %v1851
    %2397 = vmatprep.subr.bf16.mxu0 0
    %2398 = vmatpush1.bf16.msra.mxu0 %v2393
    %2399 = vmatprep.subr.bf16.mxu0 0
    %2400 = vmatpush1.bf16.msra.mxu0 0
    %2401 = vmatprep.subr.bf16.mxu0 0
    %2402 = vmatpush1.bf16.msra.mxu0 0
    %2403 = vmatprep.subr.bf16.mxu0 0
    %2404 = vmatpush1.bf16.msra.mxu0 0
    %2405 = vmatprep.subr.bf16.mxu0 0
    %2406 = vmatpush1.bf16.msra.mxu0 0
    %2407 = vmatprep.subr.bf16.mxu0 0
    %2408 = vmatpush1.bf16.msra.mxu0 0
    %2409 = vmatprep.subr.bf16.mxu0 0
    %2410 = vmatpush1.bf16.msra.mxu0 0
    %2411 = vmatprep.subr.bf16.mxu0 0
    %2412 = vmatpush1.bf16.msra.mxu0 0
    %2413 = vmatprep.subr.bf16.mxu0 0
    %2414 = vmatpush1.bf16.msra.mxu0 0
    %2415 = vmatprep.subr.bf16.mxu0 0
    %2416 = vmatpush1.bf16.msra.mxu0 0
    %2417 = vmatprep.subr.bf16.mxu0 0
    %2418 = vmatpush1.bf16.msra.mxu0 0
    %2419 = vmatprep.subr.bf16.mxu0 0
    %2420 = vmatpush1.bf16.msra.mxu0 0
    %2421 = vmatprep.subr.bf16.mxu0 0
    %2422 = vmatpush1.bf16.msra.mxu0 0
    %2423 = vmatprep.subr.bf16.mxu0 0
    %2424 = vmatpush1.bf16.msra.mxu0 0
    %2425 = vmatprep.subr.bf16.mxu0 0
    %2426 = vmatpush1.bf16.msra.mxu0 0
    %2427 = vmatprep.mubr.bf16.mxu0 0
    %2428 = vmatmul.mubr.bf16.gmra.mrb[0].mxu0 %v2376
    %v2429 = vpop.f32.mrb[0].mxu0
    %v2430 = vadd.f32 0.0, %v2429
    %v2431 = vpop.f32.mrb[0].mxu0
    %v2432 = vpop.f32.mrb[0].mxu0
    %v2433 = vadd.f32 0.0, %v2432
    %v2434 = vpop.f32.mrb[0].mxu0
    %2435 = vmatprep.mubr.bf16.mxu0 0
    %2436 = vmatmul.mubr.bf16.gmra.mrb[0].mxu0 %v2379
    %v2437 = vpop.f32.mrb[0].mxu0
    %v2438 = vadd.f32 0.0, %v2437
    %v2439 = vpop.f32.mrb[0].mxu0
    %v2440 = vpop.f32.mrb[0].mxu0
    %v2441 = vadd.f32 0.0, %v2440
    %v2442 = vpop.f32.mrb[0].mxu0
    %2443 = vmatprep.mubr.bf16.mxu0 0
    %2444 = vmatmul.mubr.bf16.gmra.mrb[0].mxu0 %v2382
    %v2445 = vpop.f32.mrb[0].mxu0
    %v2446 = vadd.f32 0.0, %v2445
    %v2447 = vpop.f32.mrb[0].mxu0
    %v2448 = vpop.f32.mrb[0].mxu0
    %v2449 = vadd.f32 0.0, %v2448
    %v2450 = vpop.f32.mrb[0].mxu0
    %2451 = vmatprep.mubr.bf16.mxu0 0
    %2452 = vmatmul.mubr.bf16.gmra.mrb[0].mxu0 %v2385
    %v2453 = vpop.f32.mrb[0].mxu0
    %v2454 = vadd.f32 0.0, %v2453
    %v2455 = vpop.f32.mrb[0].mxu0
    %v2456 = vpop.f32.mrb[0].mxu0
    %v2457 = vadd.f32 0.0, %v2456
    %v2458 = vpop.f32.mrb[0].mxu0
    %2459 = vmatprep.mubr.bf16.mxu0 0
    %2460 = vmatmul.mubr.bf16.gmra.mrb[0].mxu0 %v2388
    %v2461 = vpop.f32.mrb[0].mxu0
    %v2462 = vadd.f32 0.0, %v2461
    %v2463 = vpop.f32.mrb[0].mxu0
    %v2464 = vpop.f32.mrb[0].mxu0
    %v2465 = vadd.f32 0.0, %v2464
    %v2466 = vpop.f32.mrb[0].mxu0
    %2467 = vmatprep.mubr.bf16.mxu0 0
    %2468 = vmatmul.mubr.bf16.gmra.mrb[0].mxu0 %v2391
    %v2469 = vpop.f32.mrb[0].mxu0
    %v2470 = vadd.f32 0.0, %v2469
    %v2471 = vpop.f32.mrb[0].mxu0
    %v2472 = vpop.f32.mrb[0].mxu0
    %v2473 = vadd.f32 0.0, %v2472
    %v2474 = vpop.f32.mrb[0].mxu0
    %2475 = vdwg.mxu0
    %v2476 = vsel %vm1014, %v2430, 0.0
    %v2477 = vsel %vm1014, %v2433, 0.0
    %v2478 = vsel %vm1014, %v2438, 0.0
    %v2479 = vadd.f32 %v2476, 0.0
    %v2480 = vadd.f32 %v2477, 0.0
    %v2481 = vadd.f32 %v2478, 0.0
    %v2482 = vsel %vm1022, %v2441, 0.0
    %v2483 = vsel %vm1022, %v2446, 0.0
    %v2484 = vsel %vm1022, %v2449, 0.0
    %v2485 = vadd.f32 %v2479, %v2482
    %v2486 = vadd.f32 %v2480, %v2483
    %v2487 = vadd.f32 %v2481, %v2484
    %v2488 = vsel %vm1030, %v2454, 0.0
    %v2489 = vsel %vm1030, %v2457, 0.0
    %v2490 = vsel %vm1030, %v2462, 0.0
    %v2491 = vadd.f32 %v2485, %v2488
    %v2492 = vadd.f32 %v2486, %v2489
    %v2493 = vadd.f32 %v2487, %v2490
    %v2494 = vsel %vm1038, %v2465, 0.0
    %v2495 = vsel %vm1038, %v2470, 0.0
    %v2496 = vsel %vm1038, %v2473, 0.0
    %v2497 = vadd.f32 %v2491, %v2494
    %v2498 = vadd.f32 %v2492, %v2495
    %v2499 = vadd.f32 %v2493, %v2496
    %v2500 = vld [vmem:[%s6 + $0x2] sm:$0x1]
    %v2501 = vlaneseq
    %v2502 = vshrl.u32 %v2501, 7
    %v2503 = vsub.s32 0, %v2502
    %v2504 = vrot.slane %v2500, %v2503
    %v2505 = vadd.f32 %v2497, %v2504
    %v2506 = vadd.f32 %v2498, %v2504
    %v2507 = vadd.f32 %v2499, %v2504
    %v2508 = vmax.f32 %v2505, 0.0
    %v2509 = vmax.f32 %v2506, 0.0
    %v2510 = vmax.f32 %v2507, 0.0
    %s2511 = scalar_lea.vmem %s4, 312
    %v2512 = vld [vmem:[%s2511] sm:$0xf]
    %v2513 = vld [vmem:[%s2511 + $0x4] sm:$0x3]
    %v2514 = vpack.c.bf16 %v2509, %v2508
    %v2515 = vpack.c.bf16 %v2510, %v2510
    %v2518 = vunpack.c.l.b16 %v2512
    %v2519 = vunpack.c.l.b16 %v2513
    %v2520 = vpack.c.b16 %v2519, %v2518
    %v2522 = vsel %vm442, %v2514, 0
    %v2525 = vsel %vm442, %v2515, 0
    %v2528 = vsel %vm1072, %v2520, 0
    %2530 = vmatprep.subr.bf16.mxu0 0
    %2531 = vmatpush1.bf16.msra.mxu0 %v2528
    %2532 = vmatprep.subr.bf16.mxu0 0
    %2533 = vmatpush1.bf16.msra.mxu0 0
    %2534 = vmatprep.subr.bf16.mxu0 0
    %2535 = vmatpush1.bf16.msra.mxu0 0
    %2536 = vmatprep.subr.bf16.mxu0 0
    %2537 = vmatpush1.bf16.msra.mxu0 0
    %2538 = vmatprep.subr.bf16.mxu0 0
    %2539 = vmatpush1.bf16.msra.mxu0 0
    %2540 = vmatprep.subr.bf16.mxu0 0
    %2541 = vmatpush1.bf16.msra.mxu0 0
    %2542 = vmatprep.subr.bf16.mxu0 0
    %2543 = vmatpush1.bf16.msra.mxu0 0
    %2544 = vmatprep.subr.bf16.mxu0 0
    %2545 = vmatpush1.bf16.msra.mxu0 0
    %2546 = vmatprep.subr.bf16.mxu0 0
    %2547 = vmatpush1.bf16.msra.mxu0 0
    %2548 = vmatprep.subr.bf16.mxu0 0
    %2549 = vmatpush1.bf16.msra.mxu0 0
    %2550 = vmatprep.subr.bf16.mxu0 0
    %2551 = vmatpush1.bf16.msra.mxu0 0
    %2552 = vmatprep.subr.bf16.mxu0 0
    %2553 = vmatpush1.bf16.msra.mxu0 0
    %2554 = vmatprep.subr.bf16.mxu0 0
    %2555 = vmatpush1.bf16.msra.mxu0 0
    %2556 = vmatprep.subr.bf16.mxu0 0
    %2557 = vmatpush1.bf16.msra.mxu0 0
    %2558 = vmatprep.subr.bf16.mxu0 0
    %2559 = vmatpush1.bf16.msra.mxu0 0
    %2560 = vmatprep.subr.bf16.mxu0 0
    %2561 = vmatpush1.bf16.msra.mxu0 0
    %2562 = vmatprep.mubr.bf16.mxu0 0
    %2563 = vmatmul.mubr.bf16.gmra.mrb[0].mxu0 %v2522
    %v2564 = vpop.f32.mrb[0].mxu0
    %v2565 = vadd.f32 0.0, %v2564
    %v2566 = vpop.f32.mrb[0].mxu0
    %v2567 = vpop.f32.mrb[0].mxu0
    %v2568 = vadd.f32 0.0, %v2567
    %v2569 = vpop.f32.mrb[0].mxu0
    %2570 = vmatprep.mubr.bf16.mxu0 0
    %2571 = vmatmul.mubr.bf16.gmra.mrb[0].mxu0 %v2525
    %v2572 = vpop.f32.mrb[0].mxu0
    %v2573 = vadd.f32 0.0, %v2572
    %v2574 = vpop.f32.mrb[0].mxu0
    %v2575 = vpop.f32.mrb[0].mxu0
    %v2576 = vpop.f32.mrb[0].mxu0
    %2577 = vdwg.mxu0
    %v2578 = vpack.c.bf16 %v2568, %v2565
    %v2579 = vpack.c.bf16 %v2573, %v2573
    %v2580 = vld [vmem:[%s2511 + $0x8] sm:$0xf]
    %v2581 = vld [vmem:[%s2511 + $0xc] sm:$0xf]
    %v2582 = vld [vmem:[%s2511 + $0x10] sm:$0xf]
    %v2583 = vld [vmem:[%s2511 + $0x14] sm:$0xf]
    %v2584 = vld [vmem:[%s2511 + $0x18] sm:$0xf]
    %v2585 = vld [vmem:[%s2511 + $0x1c] sm:$0xf]
    %v2586 = vld [vmem:[%s2511 + $0x20] sm:$0xf]
    %v2587 = vld [vmem:[%s2511 + $0x24] sm:$0xf]
    %v2588 = vld [vmem:[%s2511 + $0x28] sm:$0xf]
    %v2589 = vld [vmem:[%s2511 + $0x2c] sm:$0xf]
    %v2590 = vld [vmem:[%s2511 + $0x30] sm:$0xf]
    %v2591 = vld [vmem:[%s2511 + $0x34] sm:$0xf]
    %v2592 = vld [vmem:[%s2511 + $0x38] sm:$0xf]
    %v2593 = vld [vmem:[%s2511 + $0x3c] sm:$0xf]
    %v2594 = vld [vmem:[%s2511 + $0x40] sm:$0xf]
    %v2595 = vld [vmem:[%s2511 + $0x44] sm:$0xf]
    %v2596 = vld [vmem:[%s2511 + $0x48] sm:$0xf]
    %v2597 = vld [vmem:[%s2511 + $0x4c] sm:$0xf]
    %v2598 = vld [vmem:[%s2511 + $0x50] sm:$0xf]
    %v2599 = vld [vmem:[%s2511 + $0x54] sm:$0xf]
    %v2600 = vld [vmem:[%s2511 + $0x58] sm:$0xf]
    %v2601 = vld [vmem:[%s2511 + $0x5c] sm:$0xf]
    %v2602 = vld [vmem:[%s2511 + $0x60] sm:$0xf]
    %v2603 = vld [vmem:[%s2511 + $0x64] sm:$0xf]
    %v2616 = vunpack.c.l.b16 %v2580
    %v2617 = vunpack.c.l.b16 %v2581
    %v2618 = vunpack.c.l.b16 %v2582
    %v2619 = vunpack.c.l.b16 %v2583
    %v2620 = vunpack.c.l.b16 %v2584
    %v2621 = vunpack.c.l.b16 %v2585
    %v2622 = vunpack.c.l.b16 %v2586
    %v2623 = vunpack.c.l.b16 %v2587
    %v2624 = vunpack.c.l.b16 %v2588
    %v2625 = vunpack.c.l.b16 %v2589
    %v2626 = vunpack.c.l.b16 %v2590
    %v2627 = vunpack.c.l.b16 %v2591
    %v2628 = vpack.c.b16 %v2617, %v2616
    %v2629 = vpack.c.b16 %v2619, %v2618
    %v2630 = vpack.c.b16 %v2621, %v2620
    %v2631 = vpack.c.b16 %v2623, %v2622
    %v2632 = vpack.c.b16 %v2625, %v2624
    %v2633 = vpack.c.b16 %v2627, %v2626
    %v2635 = vsel %vm442, %v2628, 0
    %v2638 = vsel %vm442, %v2629, 0
    %v2641 = vsel %vm442, %v2630, 0
    %v2644 = vsel %vm442, %v2631, 0
    %v2647 = vsel %vm442, %v2632, 0
    %v2650 = vsel %vm442, %v2633, 0
    %v2653 = vsel %vm442, %v2578, 0
    %v2656 = vsel %vm442, %v2579, 0
    %2658 = vmatprep.subr.bf16.mxu0 0
    %2659 = vmatpush1.bf16.xpose.msra.mxu0 %v2653
    %2660 = vmatprep.subr.bf16.mxu0 0
    %2661 = vmatpush1.bf16.xpose.msra.mxu0 %v2656
    %2662 = vmatprep.subr.bf16.mxu0 0
    %2663 = vmatpush1.bf16.xpose.msra.mxu0 0
    %2664 = vmatprep.subr.bf16.mxu0 0
    %2665 = vmatpush1.bf16.xpose.msra.mxu0 0
    %2666 = vmatprep.subr.bf16.mxu0 0
    %2667 = vmatpush1.bf16.xpose.msra.mxu0 0
    %2668 = vmatprep.subr.bf16.mxu0 0
    %2669 = vmatpush1.bf16.xpose.msra.mxu0 0
    %2670 = vmatprep.subr.bf16.mxu0 0
    %2671 = vmatpush1.bf16.xpose.msra.mxu0 0
    %2672 = vmatprep.subr.bf16.mxu0 0
    %2673 = vmatpush1.bf16.xpose.msra.mxu0 0
    %2674 = vmatprep.subr.bf16.mxu0 0
    %2675 = vmatpush1.bf16.xpose.msra.mxu0 0
    %2676 = vmatprep.subr.bf16.mxu0 0
    %2677 = vmatpush1.bf16.xpose.msra.mxu0 0
    %2678 = vmatprep.subr.bf16.mxu0 0
    %2679 = vmatpush1.bf16.xpose.msra.mxu0 0
    %2680 = vmatprep.subr.bf16.mxu0 0
    %2681 = vmatpush1.bf16.xpose.msra.mxu0 0
    %2682 = vmatprep.subr.bf16.mxu0 0
    %2683 = vmatpush1.bf16.xpose.msra.mxu0 0
    %2684 = vmatprep.subr.bf16.mxu0 0
    %2685 = vmatpush1.bf16.xpose.msra.mxu0 0
    %2686 = vmatprep.subr.bf16.mxu0 0
    %2687 = vmatpush1.bf16.xpose.msra.mxu0 0
    %2688 = vmatprep.subr.bf16.mxu0 0
    %2689 = vmatpush1.bf16.xpose.msra.mxu0 0
    %2690 = vmatprep.mubr.bf16.mxu0 0
    %2691 = vmatmul.mubr.bf16.gmra.mrb[0].mxu0 %v2635
    %v2692 = vpop.f32.mrb[0].mxu0
    %v2693 = vadd.f32 0.0, %v2692
    %v2694 = vpop.f32.mrb[0].mxu0
    %v2695 = vpop.f32.mrb[0].mxu0
    %v2696 = vadd.f32 0.0, %v2695
    %v2697 = vpop.f32.mrb[0].mxu0
    %2698 = vmatprep.mubr.bf16.mxu0 0
    %2699 = vmatmul.mubr.bf16.gmra.mrb[0].mxu0 %v2638
    %v2700 = vpop.f32.mrb[0].mxu0
    %v2701 = vadd.f32 0.0, %v2700
    %v2702 = vpop.f32.mrb[0].mxu0
    %v2703 = vpop.f32.mrb[0].mxu0
    %v2704 = vadd.f32 0.0, %v2703
    %v2705 = vpop.f32.mrb[0].mxu0
    %2706 = vmatprep.mubr.bf16.mxu0 0
    %2707 = vmatmul.mubr.bf16.gmra.mrb[0].mxu0 %v2641
    %v2708 = vpop.f32.mrb[0].mxu0
    %v2709 = vadd.f32 0.0, %v2708
    %v2710 = vpop.f32.mrb[0].mxu0
    %v2711 = vpop.f32.mrb[0].mxu0
    %v2712 = vadd.f32 0.0, %v2711
    %v2713 = vpop.f32.mrb[0].mxu0
    %2714 = vmatprep.mubr.bf16.mxu0 0
    %2715 = vmatmul.mubr.bf16.gmra.mrb[0].mxu0 %v2644
    %v2716 = vpop.f32.mrb[0].mxu0
    %v2717 = vadd.f32 0.0, %v2716
    %v2718 = vpop.f32.mrb[0].mxu0
    %v2719 = vpop.f32.mrb[0].mxu0
    %v2720 = vadd.f32 0.0, %v2719
    %v2721 = vpop.f32.mrb[0].mxu0
    %2722 = vmatprep.mubr.bf16.mxu0 0
    %2723 = vmatmul.mubr.bf16.gmra.mrb[0].mxu0 %v2647
    %v2724 = vpop.f32.mrb[0].mxu0
    %v2725 = vadd.f32 0.0, %v2724
    %v2726 = vpop.f32.mrb[0].mxu0
    %v2727 = vpop.f32.mrb[0].mxu0
    %v2728 = vadd.f32 0.0, %v2727
    %v2729 = vpop.f32.mrb[0].mxu0
    %2730 = vmatprep.mubr.bf16.mxu0 0
    %2731 = vmatmul.mubr.bf16.gmra.mrb[0].mxu0 %v2650
    %v2732 = vpop.f32.mrb[0].mxu0
    %v2733 = vadd.f32 0.0, %v2732
    %v2734 = vpop.f32.mrb[0].mxu0
    %v2735 = vpop.f32.mrb[0].mxu0
    %v2736 = vadd.f32 0.0, %v2735
    %v2737 = vpop.f32.mrb[0].mxu0
    %2738 = vdwg.mxu0
    %v2751 = vunpack.c.l.b16 %v2592
    %v2752 = vunpack.c.l.b16 %v2593
    %v2753 = vunpack.c.l.b16 %v2594
    %v2754 = vunpack.c.l.b16 %v2595
    %v2755 = vunpack.c.l.b16 %v2596
    %v2756 = vunpack.c.l.b16 %v2597
    %v2757 = vunpack.c.l.b16 %v2598
    %v2758 = vunpack.c.l.b16 %v2599
    %v2759 = vunpack.c.l.b16 %v2600
    %v2760 = vunpack.c.l.b16 %v2601
    %v2761 = vunpack.c.l.b16 %v2602
    %v2762 = vunpack.c.l.b16 %v2603
    %v2763 = vpack.c.b16 %v2752, %v2751
    %v2764 = vpack.c.b16 %v2754, %v2753
    %v2765 = vpack.c.b16 %v2756, %v2755
    %v2766 = vpack.c.b16 %v2758, %v2757
    %v2767 = vpack.c.b16 %v2760, %v2759
    %v2768 = vpack.c.b16 %v2762, %v2761
    %v2770 = vsel %vm442, %v2763, 0
    %v2773 = vsel %vm442, %v2764, 0
    %v2776 = vsel %vm442, %v2765, 0
    %v2779 = vsel %vm442, %v2766, 0
    %v2782 = vsel %vm442, %v2767, 0
    %v2785 = vsel %vm442, %v2768, 0
    %2787 = vmatprep.subr.bf16.mxu0 0
    %2788 = vmatpush1.bf16.xpose.msra.mxu0 %v2653
    %2789 = vmatprep.subr.bf16.mxu0 0
    %2790 = vmatpush1.bf16.xpose.msra.mxu0 %v2656
    %2791 = vmatprep.subr.bf16.mxu0 0
    %2792 = vmatpush1.bf16.xpose.msra.mxu0 0
    %2793 = vmatprep.subr.bf16.mxu0 0
    %2794 = vmatpush1.bf16.xpose.msra.mxu0 0
    %2795 = vmatprep.subr.bf16.mxu0 0
    %2796 = vmatpush1.bf16.xpose.msra.mxu0 0
    %2797 = vmatprep.subr.bf16.mxu0 0
    %2798 = vmatpush1.bf16.xpose.msra.mxu0 0
    %2799 = vmatprep.subr.bf16.mxu0 0
    %2800 = vmatpush1.bf16.xpose.msra.mxu0 0
    %2801 = vmatprep.subr.bf16.mxu0 0
    %2802 = vmatpush1.bf16.xpose.msra.mxu0 0
    %2803 = vmatprep.subr.bf16.mxu0 0
    %2804 = vmatpush1.bf16.xpose.msra.mxu0 0
    %2805 = vmatprep.subr.bf16.mxu0 0
    %2806 = vmatpush1.bf16.xpose.msra.mxu0 0
    %2807 = vmatprep.subr.bf16.mxu0 0
    %2808 = vmatpush1.bf16.xpose.msra.mxu0 0
    %2809 = vmatprep.subr.bf16.mxu0 0
    %2810 = vmatpush1.bf16.xpose.msra.mxu0 0
    %2811 = vmatprep.subr.bf16.mxu0 0
    %2812 = vmatpush1.bf16.xpose.msra.mxu0 0
    %2813 = vmatprep.subr.bf16.mxu0 0
    %2814 = vmatpush1.bf16.xpose.msra.mxu0 0
    %2815 = vmatprep.subr.bf16.mxu0 0
    %2816 = vmatpush1.bf16.xpose.msra.mxu0 0
    %2817 = vmatprep.subr.bf16.mxu0 0
    %2818 = vmatpush1.bf16.xpose.msra.mxu0 0
    %2819 = vmatprep.mubr.bf16.mxu0 0
    %2820 = vmatmul.mubr.bf16.gmra.mrb[0].mxu0 %v2770
    %v2821 = vpop.f32.mrb[0].mxu0
    %v2822 = vadd.f32 0.0, %v2821
    %v2823 = vpop.f32.mrb[0].mxu0
    %v2824 = vpop.f32.mrb[0].mxu0
    %v2825 = vadd.f32 0.0, %v2824
    %v2826 = vpop.f32.mrb[0].mxu0
    %2827 = vmatprep.mubr.bf16.mxu0 0
    %2828 = vmatmul.mubr.bf16.gmra.mrb[0].mxu0 %v2773
    %v2829 = vpop.f32.mrb[0].mxu0
    %v2830 = vadd.f32 0.0, %v2829
    %v2831 = vpop.f32.mrb[0].mxu0
    %v2832 = vpop.f32.mrb[0].mxu0
    %v2833 = vadd.f32 0.0, %v2832
    %v2834 = vpop.f32.mrb[0].mxu0
    %2835 = vmatprep.mubr.bf16.mxu0 0
    %2836 = vmatmul.mubr.bf16.gmra.mrb[0].mxu0 %v2776
    %v2837 = vpop.f32.mrb[0].mxu0
    %v2838 = vadd.f32 0.0, %v2837
    %v2839 = vpop.f32.mrb[0].mxu0
    %v2840 = vpop.f32.mrb[0].mxu0
    %v2841 = vadd.f32 0.0, %v2840
    %v2842 = vpop.f32.mrb[0].mxu0
    %2843 = vmatprep.mubr.bf16.mxu0 0
    %2844 = vmatmul.mubr.bf16.gmra.mrb[0].mxu0 %v2779
    %v2845 = vpop.f32.mrb[0].mxu0
    %v2846 = vadd.f32 0.0, %v2845
    %v2847 = vpop.f32.mrb[0].mxu0
    %v2848 = vpop.f32.mrb[0].mxu0
    %v2849 = vadd.f32 0.0, %v2848
    %v2850 = vpop.f32.mrb[0].mxu0
    %2851 = vmatprep.mubr.bf16.mxu0 0
    %2852 = vmatmul.mubr.bf16.gmra.mrb[0].mxu0 %v2782
    %v2853 = vpop.f32.mrb[0].mxu0
    %v2854 = vadd.f32 0.0, %v2853
    %v2855 = vpop.f32.mrb[0].mxu0
    %v2856 = vpop.f32.mrb[0].mxu0
    %v2857 = vadd.f32 0.0, %v2856
    %v2858 = vpop.f32.mrb[0].mxu0
    %2859 = vmatprep.mubr.bf16.mxu0 0
    %2860 = vmatmul.mubr.bf16.gmra.mrb[0].mxu0 %v2785
    %v2861 = vpop.f32.mrb[0].mxu0
    %v2862 = vadd.f32 0.0, %v2861
    %v2863 = vpop.f32.mrb[0].mxu0
    %v2864 = vpop.f32.mrb[0].mxu0
    %v2865 = vadd.f32 0.0, %v2864
    %v2866 = vpop.f32.mrb[0].mxu0
    %2867 = vdwg.mxu0
    %v2868 = vmul.f32 %v2822, %v359
    %v2869 = vmul.f32 %v2825, %v360
    %v2870 = vmul.f32 %v2830, %v361
    %v2871 = vmul.f32 %v2833, %v359
    %v2872 = vmul.f32 %v2838, %v360
    %v2873 = vmul.f32 %v2841, %v361
    %v2874 = vmul.f32 %v2846, %v359
    %v2875 = vmul.f32 %v2849, %v360
    %v2876 = vmul.f32 %v2854, %v361
    %v2877 = vmul.f32 %v2857, %v359
    %v2878 = vmul.f32 %v2862, %v360
    %v2879 = vmul.f32 %v2865, %v361
    %v2880 = vsel %vm689, %v2868, 0.0
    %2881 = vadd.xlane.f32.xlu0 %v2880
    %v2882 = vpop.xlane.xlu0 %2881
    %v2883 = vsel %vm689, %v2869, 0.0
    %2884 = vadd.xlane.f32.xlu0 %v2883
    %v2885 = vpop.xlane.xlu0 %2884
    %v2886 = vsel %vm689, %v2870, 0.0
    %2887 = vadd.xlane.f32.xlu0 %v2886
    %v2888 = vpop.xlane.xlu0 %2887
    %v2889 = vsel %vm689, %v2871, 0.0
    %2890 = vadd.xlane.f32.xlu0 %v2889
    %v2891 = vpop.xlane.xlu0 %2890
    %v2892 = vsel %vm689, %v2872, 0.0
    %2893 = vadd.xlane.f32.xlu0 %v2892
    %v2894 = vpop.xlane.xlu0 %2893
    %v2895 = vsel %vm689, %v2873, 0.0
    %2896 = vadd.xlane.f32.xlu0 %v2895
    %v2897 = vpop.xlane.xlu0 %2896
    %v2898 = vsel %vm689, %v2874, 0.0
    %2899 = vadd.xlane.f32.xlu0 %v2898
    %v2900 = vpop.xlane.xlu0 %2899
    %v2901 = vsel %vm689, %v2875, 0.0
    %2902 = vadd.xlane.f32.xlu0 %v2901
    %v2903 = vpop.xlane.xlu0 %2902
    %v2904 = vsel %vm689, %v2876, 0.0
    %2905 = vadd.xlane.f32.xlu0 %v2904
    %v2906 = vpop.xlane.xlu0 %2905
    %v2907 = vsel %vm689, %v2877, 0.0
    %2908 = vadd.xlane.f32.xlu0 %v2907
    %v2909 = vpop.xlane.xlu0 %2908
    %v2910 = vsel %vm689, %v2878, 0.0
    %2911 = vadd.xlane.f32.xlu0 %v2910
    %v2912 = vpop.xlane.xlu0 %2911
    %v2913 = vsel %vm689, %v2879, 0.0
    %2914 = vadd.xlane.f32.xlu0 %v2913
    %v2915 = vpop.xlane.xlu0 %2914
    %v2916 = vadd.f32 %v2882, %v2693
    %v2917 = vadd.f32 %v2885, %v2696
    %v2918 = vadd.f32 %v2888, %v2701
    %v2919 = vadd.f32 %v2891, %v2704
    %v2920 = vadd.f32 %v2894, %v2709
    %v2921 = vadd.f32 %v2897, %v2712
    %v2922 = vadd.f32 %v2900, %v2717
    %v2923 = vadd.f32 %v2903, %v2720
    %v2924 = vadd.f32 %v2906, %v2725
    %v2925 = vadd.f32 %v2909, %v2728
    %v2926 = vadd.f32 %v2912, %v2733
    %v2927 = vadd.f32 %v2915, %v2736
    %v2928 = vmul.f32 %v2916, 0.2
    %v2929 = vmul.f32 %v2917, 0.2
    %v2930 = vmul.f32 %v2918, 0.2
    %v2931 = vmul.f32 %v2919, 0.2
    %v2932 = vmul.f32 %v2920, 0.2
    %v2933 = vmul.f32 %v2921, 0.2
    %v2934 = vmul.f32 %v2922, 0.2
    %v2935 = vmul.f32 %v2923, 0.2
    %v2936 = vmul.f32 %v2924, 0.2
    %v2937 = vmul.f32 %v2925, 0.2
    %v2938 = vmul.f32 %v2926, 0.2
    %v2939 = vmul.f32 %v2927, 0.2
    %v2940 = vmax.f32 %v2916, %v2928
    %v2941 = vmax.f32 %v2917, %v2929
    %v2942 = vmax.f32 %v2918, %v2930
    %v2943 = vmax.f32 %v2919, %v2931
    %v2944 = vmax.f32 %v2920, %v2932
    %v2945 = vmax.f32 %v2921, %v2933
    %v2946 = vmax.f32 %v2922, %v2934
    %v2947 = vmax.f32 %v2923, %v2935
    %v2948 = vmax.f32 %v2924, %v2936
    %v2949 = vmax.f32 %v2925, %v2937
    %v2950 = vmax.f32 %v2926, %v2938
    %v2951 = vmax.f32 %v2927, %v2939
    %v2952 = vadd.f32 %v2940, %v371
    %v2953 = vadd.f32 %v2941, %v372
    %v2954 = vadd.f32 %v2942, %v373
    %v2955 = vadd.f32 %v2943, %v371
    %v2956 = vadd.f32 %v2944, %v372
    %v2957 = vadd.f32 %v2945, %v373
    %v2958 = vadd.f32 %v2946, %v371
    %v2959 = vadd.f32 %v2947, %v372
    %v2960 = vadd.f32 %v2948, %v373
    %v2961 = vadd.f32 %v2949, %v371
    %v2962 = vadd.f32 %v2950, %v372
    %v2963 = vadd.f32 %v2951, %v373
    %v2964 = vsel %vm689, %v2952, -inf
    %2965 = vmax.xlane.f32.xlu0 %v2964
    %v2966 = vpop.xlane.xlu0 %2965
    %v2967 = vsel %vm689, %v2953, -inf
    %2968 = vmax.xlane.f32.xlu0 %v2967
    %v2969 = vpop.xlane.xlu0 %2968
    %v2970 = vsel %vm689, %v2954, -inf
    %2971 = vmax.xlane.f32.xlu0 %v2970
    %v2972 = vpop.xlane.xlu0 %2971
    %v2973 = vsel %vm689, %v2955, -inf
    %2974 = vmax.xlane.f32.xlu0 %v2973
    %v2975 = vpop.xlane.xlu0 %2974
    %v2976 = vsel %vm689, %v2956, -inf
    %2977 = vmax.xlane.f32.xlu0 %v2976
    %v2978 = vpop.xlane.xlu0 %2977
    %v2979 = vsel %vm689, %v2957, -inf
    %2980 = vmax.xlane.f32.xlu0 %v2979
    %v2981 = vpop.xlane.xlu0 %2980
    %v2982 = vsel %vm689, %v2958, -inf
    %2983 = vmax.xlane.f32.xlu0 %v2982
    %v2984 = vpop.xlane.xlu0 %2983
    %v2985 = vsel %vm689, %v2959, -inf
    %2986 = vmax.xlane.f32.xlu0 %v2985
    %v2987 = vpop.xlane.xlu0 %2986
    %v2988 = vsel %vm689, %v2960, -inf
    %2989 = vmax.xlane.f32.xlu0 %v2988
    %v2990 = vpop.xlane.xlu0 %2989
    %v2991 = vsel %vm689, %v2961, -inf
    %2992 = vmax.xlane.f32.xlu0 %v2991
    %v2993 = vpop.xlane.xlu0 %2992
    %v2994 = vsel %vm689, %v2962, -inf
    %2995 = vmax.xlane.f32.xlu0 %v2994
    %v2996 = vpop.xlane.xlu0 %2995
    %v2997 = vsel %vm689, %v2963, -inf
    %2998 = vmax.xlane.f32.xlu0 %v2997
    %v2999 = vpop.xlane.xlu0 %2998
    %v3000 = vsub.f32 %v2952, %v2966
    %v3001 = vsub.f32 %v2953, %v2969
    %v3002 = vsub.f32 %v2954, %v2972
    %v3003 = vsub.f32 %v2955, %v2975
    %v3004 = vsub.f32 %v2956, %v2978
    %v3005 = vsub.f32 %v2957, %v2981
    %v3006 = vsub.f32 %v2958, %v2984
    %v3007 = vsub.f32 %v2959, %v2987
    %v3008 = vsub.f32 %v2960, %v2990
    %v3009 = vsub.f32 %v2961, %v2993
    %v3010 = vsub.f32 %v2962, %v2996
    %v3011 = vsub.f32 %v2963, %v2999
    %v3012 = vmul.f32 %v3000, 1.442695
    %v3013 = vpow.pop %v3012
    %v3014 = vmul.f32 %v3001, 1.442695
    %v3015 = vpow.pop %v3014
    %v3016 = vmul.f32 %v3002, 1.442695
    %v3017 = vpow.pop %v3016
    %v3018 = vmul.f32 %v3003, 1.442695
    %v3019 = vpow.pop %v3018
    %v3020 = vmul.f32 %v3004, 1.442695
    %v3021 = vpow.pop %v3020
    %v3022 = vmul.f32 %v3005, 1.442695
    %v3023 = vpow.pop %v3022
    %v3024 = vmul.f32 %v3006, 1.442695
    %v3025 = vpow.pop %v3024
    %v3026 = vmul.f32 %v3007, 1.442695
    %v3027 = vpow.pop %v3026
    %v3028 = vmul.f32 %v3008, 1.442695
    %v3029 = vpow.pop %v3028
    %v3030 = vmul.f32 %v3009, 1.442695
    %v3031 = vpow.pop %v3030
    %v3032 = vmul.f32 %v3010, 1.442695
    %v3033 = vpow.pop %v3032
    %v3034 = vmul.f32 %v3011, 1.442695
    %v3035 = vpow.pop %v3034
    %v3036 = vsel %vm689, %v3013, 0.0
    %3037 = vadd.xlane.f32.xlu0 %v3036
    %v3038 = vpop.xlane.xlu0 %3037
    %v3039 = vsel %vm689, %v3015, 0.0
    %3040 = vadd.xlane.f32.xlu0 %v3039
    %v3041 = vpop.xlane.xlu0 %3040
    %v3042 = vsel %vm689, %v3017, 0.0
    %3043 = vadd.xlane.f32.xlu0 %v3042
    %v3044 = vpop.xlane.xlu0 %3043
    %v3045 = vsel %vm689, %v3019, 0.0
    %3046 = vadd.xlane.f32.xlu0 %v3045
    %v3047 = vpop.xlane.xlu0 %3046
    %v3048 = vsel %vm689, %v3021, 0.0
    %3049 = vadd.xlane.f32.xlu0 %v3048
    %v3050 = vpop.xlane.xlu0 %3049
    %v3051 = vsel %vm689, %v3023, 0.0
    %3052 = vadd.xlane.f32.xlu0 %v3051
    %v3053 = vpop.xlane.xlu0 %3052
    %v3054 = vsel %vm689, %v3025, 0.0
    %3055 = vadd.xlane.f32.xlu0 %v3054
    %v3056 = vpop.xlane.xlu0 %3055
    %v3057 = vsel %vm689, %v3027, 0.0
    %3058 = vadd.xlane.f32.xlu0 %v3057
    %v3059 = vpop.xlane.xlu0 %3058
    %v3060 = vsel %vm689, %v3029, 0.0
    %3061 = vadd.xlane.f32.xlu0 %v3060
    %v3062 = vpop.xlane.xlu0 %3061
    %v3063 = vsel %vm689, %v3031, 0.0
    %3064 = vadd.xlane.f32.xlu0 %v3063
    %v3065 = vpop.xlane.xlu0 %3064
    %v3066 = vsel %vm689, %v3033, 0.0
    %3067 = vadd.xlane.f32.xlu0 %v3066
    %v3068 = vpop.xlane.xlu0 %3067
    %v3069 = vsel %vm689, %v3035, 0.0
    %3070 = vadd.xlane.f32.xlu0 %v3069
    %v3071 = vpop.xlane.xlu0 %3070
    %v3072 = vrcp.pop %v3038
    %v3073 = vrcp.pop %v3041
    %v3074 = vrcp.pop %v3044
    %v3075 = vrcp.pop %v3047
    %v3076 = vrcp.pop %v3050
    %v3077 = vrcp.pop %v3053
    %v3078 = vrcp.pop %v3056
    %v3079 = vrcp.pop %v3059
    %v3080 = vrcp.pop %v3062
    %v3081 = vrcp.pop %v3065
    %v3082 = vrcp.pop %v3068
    %v3083 = vrcp.pop %v3071
    %v3084 = vmul.f32 %v3013, %v3072
    %v3085 = vmul.f32 %v3015, %v3073
    %v3086 = vmul.f32 %v3017, %v3074
    %v3087 = vmul.f32 %v3019, %v3075
    %v3088 = vmul.f32 %v3021, %v3076
    %v3089 = vmul.f32 %v3023, %v3077
    %v3090 = vmul.f32 %v3025, %v3078
    %v3091 = vmul.f32 %v3027, %v3079
    %v3092 = vmul.f32 %v3029, %v3080
    %v3093 = vmul.f32 %v3031, %v3081
    %v3094 = vmul.f32 %v3033, %v3082
    %v3095 = vmul.f32 %v3035, %v3083
    %v3096 = vpack.c.bf16 %v3085, %v3084
    %v3097 = vpack.c.bf16 %v3087, %v3086
    %v3098 = vpack.c.bf16 %v3089, %v3088
    %v3099 = vpack.c.bf16 %v3091, %v3090
    %v3100 = vpack.c.bf16 %v3093, %v3092
    %v3101 = vpack.c.bf16 %v3095, %v3094
    %v3103 = vsel %vm689, %v3096, 0
    %v3106 = vsel %vm689, %v3097, 0
    %v3109 = vsel %vm689, %v3098, 0
    %v3112 = vsel %vm689, %v3099, 0
    %v3115 = vsel %vm689, %v3100, 0
    %v3118 = vsel %vm689, %v3101, 0
    %v3120 = vsel %vm151, %v2579, 0
    %3122 = vmatprep.subr.bf16.mxu0 0
    %3123 = vmatpush1.bf16.msra.mxu0 %v2578
    %3124 = vmatprep.subr.bf16.mxu0 0
    %3125 = vmatpush1.bf16.msra.mxu0 %v3120
    %3126 = vmatprep.subr.bf16.mxu0 0
    %3127 = vmatpush1.bf16.msra.mxu0 0
    %3128 = vmatprep.subr.bf16.mxu0 0
    %3129 = vmatpush1.bf16.msra.mxu0 0
    %3130 = vmatprep.subr.bf16.mxu0 0
    %3131 = vmatpush1.bf16.msra.mxu0 0
    %3132 = vmatprep.subr.bf16.mxu0 0
    %3133 = vmatpush1.bf16.msra.mxu0 0
    %3134 = vmatprep.subr.bf16.mxu0 0
    %3135 = vmatpush1.bf16.msra.mxu0 0
    %3136 = vmatprep.subr.bf16.mxu0 0
    %3137 = vmatpush1.bf16.msra.mxu0 0
    %3138 = vmatprep.subr.bf16.mxu0 0
    %3139 = vmatpush1.bf16.msra.mxu0 0
    %3140 = vmatprep.subr.bf16.mxu0 0
    %3141 = vmatpush1.bf16.msra.mxu0 0
    %3142 = vmatprep.subr.bf16.mxu0 0
    %3143 = vmatpush1.bf16.msra.mxu0 0
    %3144 = vmatprep.subr.bf16.mxu0 0
    %3145 = vmatpush1.bf16.msra.mxu0 0
    %3146 = vmatprep.subr.bf16.mxu0 0
    %3147 = vmatpush1.bf16.msra.mxu0 0
    %3148 = vmatprep.subr.bf16.mxu0 0
    %3149 = vmatpush1.bf16.msra.mxu0 0
    %3150 = vmatprep.subr.bf16.mxu0 0
    %3151 = vmatpush1.bf16.msra.mxu0 0
    %3152 = vmatprep.subr.bf16.mxu0 0
    %3153 = vmatpush1.bf16.msra.mxu0 0
    %3154 = vmatprep.mubr.bf16.mxu0 0
    %3155 = vmatmul.mubr.bf16.gmra.mrb[0].mxu0 %v3103
    %v3156 = vpop.f32.mrb[0].mxu0
    %v3157 = vadd.f32 0.0, %v3156
    %v3158 = vpop.f32.mrb[0].mxu0
    %v3159 = vpop.f32.mrb[0].mxu0
    %v3160 = vadd.f32 0.0, %v3159
    %v3161 = vpop.f32.mrb[0].mxu0
    %3162 = vmatprep.mubr.bf16.mxu0 0
    %3163 = vmatmul.mubr.bf16.gmra.mrb[0].mxu0 %v3106
    %v3164 = vpop.f32.mrb[0].mxu0
    %v3165 = vadd.f32 0.0, %v3164
    %v3166 = vpop.f32.mrb[0].mxu0
    %v3167 = vpop.f32.mrb[0].mxu0
    %v3168 = vadd.f32 0.0, %v3167
    %v3169 = vpop.f32.mrb[0].mxu0
    %3170 = vmatprep.mubr.bf16.mxu0 0
    %3171 = vmatmul.mubr.bf16.gmra.mrb[0].mxu0 %v3109
    %v3172 = vpop.f32.mrb[0].mxu0
    %v3173 = vadd.f32 0.0, %v3172
    %v3174 = vpop.f32.mrb[0].mxu0
    %v3175 = vpop.f32.mrb[0].mxu0
    %v3176 = vadd.f32 0.0, %v3175
    %v3177 = vpop.f32.mrb[0].mxu0
    %3178 = vmatprep.mubr.bf16.mxu0 0
    %3179 = vmatmul.mubr.bf16.gmra.mrb[0].mxu0 %v3112
    %v3180 = vpop.f32.mrb[0].mxu0
    %v3181 = vadd.f32 0.0, %v3180
    %v3182 = vpop.f32.mrb[0].mxu0
    %v3183 = vpop.f32.mrb[0].mxu0
    %v3184 = vadd.f32 0.0, %v3183
    %v3185 = vpop.f32.mrb[0].mxu0
    %3186 = vmatprep.mubr.bf16.mxu0 0
    %3187 = vmatmul.mubr.bf16.gmra.mrb[0].mxu0 %v3115
    %v3188 = vpop.f32.mrb[0].mxu0
    %v3189 = vadd.f32 0.0, %v3188
    %v3190 = vpop.f32.mrb[0].mxu0
    %v3191 = vpop.f32.mrb[0].mxu0
    %v3192 = vadd.f32 0.0, %v3191
    %v3193 = vpop.f32.mrb[0].mxu0
    %3194 = vmatprep.mubr.bf16.mxu0 0
    %3195 = vmatmul.mubr.bf16.gmra.mrb[0].mxu0 %v3118
    %v3196 = vpop.f32.mrb[0].mxu0
    %v3197 = vadd.f32 0.0, %v3196
    %v3198 = vpop.f32.mrb[0].mxu0
    %v3199 = vpop.f32.mrb[0].mxu0
    %v3200 = vadd.f32 0.0, %v3199
    %v3201 = vpop.f32.mrb[0].mxu0
    %3202 = vdwg.mxu0
    %v3203 = vsel %vm1014, %v3157, 0.0
    %v3204 = vsel %vm1014, %v3160, 0.0
    %v3205 = vsel %vm1014, %v3165, 0.0
    %v3206 = vadd.f32 %v3203, 0.0
    %v3207 = vadd.f32 %v3204, 0.0
    %v3208 = vadd.f32 %v3205, 0.0
    %v3209 = vsel %vm1022, %v3168, 0.0
    %v3210 = vsel %vm1022, %v3173, 0.0
    %v3211 = vsel %vm1022, %v3176, 0.0
    %v3212 = vadd.f32 %v3206, %v3209
    %v3213 = vadd.f32 %v3207, %v3210
    %v3214 = vadd.f32 %v3208, %v3211
    %v3215 = vsel %vm1030, %v3181, 0.0
    %v3216 = vsel %vm1030, %v3184, 0.0
    %v3217 = vsel %vm1030, %v3189, 0.0
    %v3218 = vadd.f32 %v3212, %v3215
    %v3219 = vadd.f32 %v3213, %v3216
    %v3220 = vadd.f32 %v3214, %v3217
    %v3221 = vsel %vm1038, %v3192, 0.0
    %v3222 = vsel %vm1038, %v3197, 0.0
    %v3223 = vsel %vm1038, %v3200, 0.0
    %v3224 = vadd.f32 %v3218, %v3221
    %v3225 = vadd.f32 %v3219, %v3222
    %v3226 = vadd.f32 %v3220, %v3223
    %v3227 = vld [vmem:[%s6 + $0x3] sm:$0x1]
    %v3228 = vlaneseq
    %v3229 = vshrl.u32 %v3228, 7
    %v3230 = vsub.s32 0, %v3229
    %v3231 = vrot.slane %v3227, %v3230
    %v3232 = vadd.f32 %v3224, %v3231
    %v3233 = vadd.f32 %v3225, %v3231
    %v3234 = vadd.f32 %v3226, %v3231
    %v3235 = vld [vmem:[%s5] sm:$0xf]
    %v3236 = vld [vmem:[%s5 + $0x4] sm:$0x3]
    %v3237 = vld [vmem:[%s5 + $0x8] sm:$0xf]
    %v3238 = vld [vmem:[%s5 + $0xc] sm:$0xf]
    %v3239 = vld [vmem:[%s5 + $0x10] sm:$0xf]
    %v3240 = vld [vmem:[%s5 + $0x14] sm:$0xf]
    %v3241 = vld [vmem:[%s5 + $0x18] sm:$0xf]
    %v3242 = vld [vmem:[%s5 + $0x1c] sm:$0xf]
    %v3243 = vld [vmem:[%s5 + $0x20] sm:$0xf]
    %v3244 = vld [vmem:[%s5 + $0x24] sm:$0xf]
    %v3245 = vld [vmem:[%s5 + $0x28] sm:$0xf]
    %v3246 = vld [vmem:[%s5 + $0x2c] sm:$0xf]
    %v3247 = vld [vmem:[%s5 + $0x30] sm:$0xf]
    %v3248 = vld [vmem:[%s5 + $0x34] sm:$0xf]
    %v3249 = vld [vmem:[%s5 + $0x38] sm:$0xf]
    %v3250 = vld [vmem:[%s5 + $0x3c] sm:$0xf]
    %v3251 = vld [vmem:[%s5 + $0x40] sm:$0xf]
    %v3252 = vld [vmem:[%s5 + $0x44] sm:$0xf]
    %v3253 = vld [vmem:[%s5 + $0x48] sm:$0x1]
    %v3254 = vld [vmem:[%s6 + $0x4] sm:$0x1]
    %v3255 = vld [vmem:[%s6 + $0x5] sm:$0x1]
    %v3256 = vld [vmem:[%s6 + $0x6] sm:$0x1]
    %v3257 = vpack.c.bf16 %v3233, %v3232
    %v3258 = vpack.c.bf16 %v3234, %v3234
    %v3259 = vlaneseq
    %v3260 = vshrl.u32 %v3259, 7
    %v3261 = vsub.s32 0, %v3260
    %v3262 = vrot.slane %v3254, %v3261
    %v3265 = vunpack.c.l.b16 %v3235
    %v3266 = vunpack.c.l.b16 %v3236
    %v3267 = vpack.c.b16 %v3266, %v3265
    %v3269 = vsel %vm442, %v3257, 0
    %v3272 = vsel %vm442, %v3258, 0
    %v3275 = vsel %vm1072, %v3267, 0
    %3277 = vmatprep.subr.bf16.mxu0 0
    %3278 = vmatpush1.bf16.msra.mxu0 %v3275
    %3279 = vmatprep.subr.bf16.mxu0 0
    %3280 = vmatpush1.bf16.msra.mxu0 0
    %3281 = vmatprep.subr.bf16.mxu0 0
    %3282 = vmatpush1.bf16.msra.mxu0 0
    %3283 = vmatprep.subr.bf16.mxu0 0
    %3284 = vmatpush1.bf16.msra.mxu0 0
    %3285 = vmatprep.subr.bf16.mxu0 0
    %3286 = vmatpush1.bf16.msra.mxu0 0
    %3287 = vmatprep.subr.bf16.mxu0 0
    %3288 = vmatpush1.bf16.msra.mxu0 0
    %3289 = vmatprep.subr.bf16.mxu0 0
    %3290 = vmatpush1.bf16.msra.mxu0 0
    %3291 = vmatprep.subr.bf16.mxu0 0
    %3292 = vmatpush1.bf16.msra.mxu0 0
    %3293 = vmatprep.subr.bf16.mxu0 0
    %3294 = vmatpush1.bf16.msra.mxu0 0
    %3295 = vmatprep.subr.bf16.mxu0 0
    %3296 = vmatpush1.bf16.msra.mxu0 0
    %3297 = vmatprep.subr.bf16.mxu0 0
    %3298 = vmatpush1.bf16.msra.mxu0 0
    %3299 = vmatprep.subr.bf16.mxu0 0
    %3300 = vmatpush1.bf16.msra.mxu0 0
    %3301 = vmatprep.subr.bf16.mxu0 0
    %3302 = vmatpush1.bf16.msra.mxu0 0
    %3303 = vmatprep.subr.bf16.mxu0 0
    %3304 = vmatpush1.bf16.msra.mxu0 0
    %3305 = vmatprep.subr.bf16.mxu0 0
    %3306 = vmatpush1.bf16.msra.mxu0 0
    %3307 = vmatprep.subr.bf16.mxu0 0
    %3308 = vmatpush1.bf16.msra.mxu0 0
    %3309 = vmatprep.mubr.bf16.mxu0 0
    %3310 = vmatmul.mubr.bf16.gmra.mrb[0].mxu0 %v3269
    %v3311 = vpop.f32.mrb[0].mxu0
    %v3312 = vadd.f32 %v3262, %v3311
    %v3313 = vpop.f32.mrb[0].mxu0
    %v3314 = vpop.f32.mrb[0].mxu0
    %v3315 = vadd.f32 %v3262, %v3314
    %v3316 = vpop.f32.mrb[0].mxu0
    %3317 = vmatprep.mubr.bf16.mxu0 0
    %3318 = vmatmul.mubr.bf16.gmra.mrb[0].mxu0 %v3272
    %v3319 = vpop.f32.mrb[0].mxu0
    %v3320 = vadd.f32 %v3262, %v3319
    %v3321 = vpop.f32.mrb[0].mxu0
    %v3322 = vpop.f32.mrb[0].mxu0
    %v3323 = vpop.f32.mrb[0].mxu0
    %3324 = vdwg.mxu0
    %v3325 = vmax.f32 %v3312, 0.0
    %v3326 = vmax.f32 %v3315, 0.0
    %v3327 = vmax.f32 %v3320, 0.0
    %v3328 = vpack.c.bf16 %v3326, %v3325
    %v3329 = vpack.c.bf16 %v3327, %v3327
    %v3330 = vlaneseq
    %v3331 = vshrl.u32 %v3330, 7
    %v3332 = vsub.s32 0, %v3331
    %v3333 = vrot.slane %v3255, %v3332
    %v3350 = vunpack.c.l.b16 %v3237
    %v3351 = vunpack.c.l.b16 %v3238
    %v3352 = vunpack.c.l.b16 %v3239
    %v3353 = vunpack.c.l.b16 %v3240
    %v3354 = vunpack.c.l.b16 %v3241
    %v3355 = vunpack.c.l.b16 %v3242
    %v3356 = vunpack.c.l.b16 %v3243
    %v3357 = vunpack.c.l.b16 %v3244
    %v3358 = vunpack.c.l.b16 %v3245
    %v3359 = vunpack.c.l.b16 %v3246
    %v3360 = vunpack.c.l.b16 %v3247
    %v3361 = vunpack.c.l.b16 %v3248
    %v3362 = vunpack.c.l.b16 %v3249
    %v3363 = vunpack.c.l.b16 %v3250
    %v3364 = vunpack.c.l.b16 %v3251
    %v3365 = vunpack.c.l.b16 %v3252
    %v3366 = vpack.c.b16 %v3351, %v3350
    %v3367 = vpack.c.b16 %v3353, %v3352
    %v3368 = vpack.c.b16 %v3355, %v3354
    %v3369 = vpack.c.b16 %v3357, %v3356
    %v3370 = vpack.c.b16 %v3359, %v3358
    %v3371 = vpack.c.b16 %v3361, %v3360
    %v3372 = vpack.c.b16 %v3363, %v3362
    %v3373 = vpack.c.b16 %v3365, %v3364
    %3382 = vmatprep.subr.bf16.mxu0 0
    %3383 = vmatpush1.bf16.msra.mxu0 %v3366
    %3384 = vmatprep.subr.bf16.mxu0 0
    %3385 = vmatpush1.bf16.msra.mxu0 %v3367
    %3386 = vmatprep.subr.bf16.mxu0 0
    %3387 = vmatpush1.bf16.msra.mxu0 %v3368
    %3388 = vmatprep.subr.bf16.mxu0 0
    %3389 = vmatpush1.bf16.msra.mxu0 %v3369
    %3390 = vmatprep.subr.bf16.mxu0 0
    %3391 = vmatpush1.bf16.msra.mxu0 %v3370
    %3392 = vmatprep.subr.bf16.mxu0 0
    %3393 = vmatpush1.bf16.msra.mxu0 %v3371
    %3394 = vmatprep.subr.bf16.mxu0 0
    %3395 = vmatpush1.bf16.msra.mxu0 %v3372
    %3396 = vmatprep.subr.bf16.mxu0 0
    %3397 = vmatpush1.bf16.msra.mxu0 %v3373
    %3398 = vmatprep.subr.bf16.mxu0 0
    %3399 = vmatpush1.bf16.msra.mxu0 0
    %3400 = vmatprep.subr.bf16.mxu0 0
    %3401 = vmatpush1.bf16.msra.mxu0 0
    %3402 = vmatprep.subr.bf16.mxu0 0
    %3403 = vmatpush1.bf16.msra.mxu0 0
    %3404 = vmatprep.subr.bf16.mxu0 0
    %3405 = vmatpush1.bf16.msra.mxu0 0
    %3406 = vmatprep.subr.bf16.mxu0 0
    %3407 = vmatpush1.bf16.msra.mxu0 0
    %3408 = vmatprep.subr.bf16.mxu0 0
    %3409 = vmatpush1.bf16.msra.mxu0 0
    %3410 = vmatprep.subr.bf16.mxu0 0
    %3411 = vmatpush1.bf16.msra.mxu0 0
    %3412 = vmatprep.subr.bf16.mxu0 0
    %3413 = vmatpush1.bf16.msra.mxu0 0
    %3414 = vmatprep.mubr.bf16.mxu0 0
    %3415 = vmatmul.mubr.bf16.gmra.mrb[0].mxu0 %v3328
    %v3416 = vpop.f32.mrb[0].mxu0
    %v3417 = vadd.f32 %v3333, %v3416
    %v3418 = vpop.f32.mrb[0].mxu0
    %v3419 = vpop.f32.mrb[0].mxu0
    %v3420 = vadd.f32 %v3333, %v3419
    %v3421 = vpop.f32.mrb[0].mxu0
    %3422 = vmatprep.mubr.bf16.mxu0 0
    %3423 = vmatmul.mubr.bf16.gmra.mrb[0].mxu0 %v3329
    %v3424 = vpop.f32.mrb[0].mxu0
    %v3425 = vadd.f32 %v3333, %v3424
    %v3426 = vpop.f32.mrb[0].mxu0
    %v3427 = vpop.f32.mrb[0].mxu0
    %v3428 = vpop.f32.mrb[0].mxu0
    %3429 = vdwg.mxu0
    %v3430 = vmax.f32 %v3417, 0.0
    %v3431 = vmax.f32 %v3420, 0.0
    %v3432 = vmax.f32 %v3425, 0.0
    %v3433 = vunpack.c.l.bf16 %v3253
    %v3434 = vlaneseq
    %v3435 = vshrl.u32 %v3434, 7
    %v3436 = vsub.s32 0, %v3435
    %v3437 = vrot.slane %v3433, %v3436
    %v3438 = vmul.f32 %v3430, %v3437
    %v3439 = vmul.f32 %v3431, %v3437
    %v3440 = vmul.f32 %v3432, %v3437
    %3441 = vadd.xlane.f32.xlu0 %v3438
    %v3442 = vpop.xlane.xlu0 %3441
    %3443 = vadd.xlane.f32.xlu0 %v3439
    %v3444 = vpop.xlane.xlu0 %3443
    %3445 = vadd.xlane.f32.xlu0 %v3440
    %v3446 = vpop.xlane.xlu0 %3445
    %v3447 = vlaneseq
    %v3448 = vshrl.u32 %v3447, 7
    %v3449 = vsub.s32 0, %v3448
    %v3450 = vrot.slane %v3256, %v3449
    %v3451 = vadd.f32 %v3442, %v3450
    %v3452 = vadd.f32 %v3444, %v3450
    %v3453 = vadd.f32 %v3446, %v3450
    %v3454 = vmax.f32 %v3451, 0.0
    %v3455 = vmax.f32 %v3452, 0.0
    %v3456 = vmax.f32 %v3453, 0.0
    %v3457 = vsel %vm64, %v3454, 0.0
    %v3458 = vsel %vm64, %v3455, 0.0
    %v3459 = vadd.f32 %v3457, %v3458
    %v3460 = vsel %vm64, %v3456, 0.0
    %v3461 = vadd.f32 %v3459, %v3460
    %v3462 = vrot.slane %v3461, 4
    %v3463 = vadd.f32 %v3461, %v3462
    %v3464 = vrot.slane %v3463, 2
    %v3465 = vadd.f32 %v3463, %v3464
    %v3466 = vrot.slane %v3465, 1
    %v3467 = vadd.f32 %v3465, %v3466
    %v3468 = vmul.f32 %v3467, 0.041666668
    %vm3469 = vcmask 0
    %3470 = vst.msk [vmem:[#allocation2] sm:$0x1] %vm3469, %v3468
    // Predicated region
    $region30: #{critic_swap_gnn_forward.1} parent=1 // pred_check
      _
    $region31: #{critic_swap_gnn_forward.1} parent=1 // pred_check_branch
      %3472 = sbr.rel (0) target = $region33
    $region32: #{critic_swap_gnn_forward.1} parent=1 // pred_region
      %s3474 = ssub.s32 16, 16
      %3475 = vsyncadd [#allocation3], %s3474
      %s3477 = sshll.u32 [#allocation2], 4
      %s3478 = int_to_ptr.vmem [resolvable:$true] %s3477
      %3480 = dma.vmem_to_hbm [thread:$0]  %s3478, 16, %s7, [#allocation3]
    $region33: #{critic_swap_gnn_forward.1} parent=1 // pred_fallthru
      _
    // Predicated region
    $region34: #{critic_swap_gnn_forward.1} parent=1 // pred_check
      _
    $region35: #{critic_swap_gnn_forward.1} parent=1 // pred_check_branch
      %3482 = sbr.rel (0) target = $region37
    $region36: #{critic_swap_gnn_forward.1} parent=1 // pred_region
      %3483 = dma.done [#allocation3], 16
    $region37: #{critic_swap_gnn_forward.1} parent=1 // pred_fallthru
      _
    %3484 = vsyncpa [#allocation3], 1

</llo_original>
